<compile_context>
chip_gen: v5e
topology: v5e:2x2
jax: 0.10.0
libtpu: 0.0.40
codegen_flags: <defaults>
</compile_context>

<pallas_src>
import math
import numpy as np
import jax
import jax.numpy as jnp
from jax.experimental import pallas as pl
from jax.experimental.pallas import tpu as pltpu

# ----------------------------- config ---------------------------------------
R = 2            # region_num (HAGuide always emits a 2-channel guide_map)
HS = 8           # hidden_scale
KSIZE = 15       # HAGuide gaussian kernel size (module default)
GN_EPS = 1e-5    # nn.GroupNorm default eps


# ----------------------------- gaussian kernel (HAGuide.__init__) -----------
def _norm_cdf(v):
    return 0.5 * (1.0 + math.erf(v / math.sqrt(2.0)))


def _gaussian_1d_base(kernlen, nsig):
    interval = (2 * nsig + 1.0) / kernlen
    xs = np.linspace(-nsig - interval / 2.0, nsig + interval / 2.0, kernlen + 1)
    cdf = np.array([_norm_cdf(v) for v in xs])
    return np.diff(cdf)


def _default_sigma(kernlen):
    return 0.3 * ((kernlen - 1) * 0.5 - 1) + 0.8


def _gaussian_kernel_2d(kernlen, nsig=None):
    if nsig is None:
        nsig = _default_sigma(kernlen)
    k1 = _gaussian_1d_base(kernlen, nsig)
    kraw = np.sqrt(np.outer(k1, k1))
    return (kraw / kraw.sum()).astype(np.float32)


def _gaussian_sep_1d(kernlen, nsig=None):
    # Exact separable factor: the module's 2-D kernel equals outer(u, u).
    if nsig is None:
        nsig = _default_sigma(kernlen)
    u = np.sqrt(_gaussian_1d_base(kernlen, nsig))
    return (u / u.sum()).astype(np.float32)


# ----------------------------- fused forward kernel -------------------------
def make_fused_kernel(layer_dims, H, W, HW, u1d, pad, zpad):
    taps = [float(v) for v in u1d]
    ksz = len(taps)

    def _sigmoid(v):
        return 1.0 / (1.0 + jnp.exp(-v))

    def kernel(*refs):
        x_ref, y_ref, wpos_ref, hpos_ref = refs[:4]
        out_ref = refs[-1]
        prefs = refs[4:-1]
        f32 = jnp.float32

        wpos = wpos_ref[...]                         # (1, HW) column index (float)
        hpos = hpos_ref[...]                         # (1, HW) row index (float)

        # -------- HAGuide (identical for all 3 layers -> computed once) -----
        pred = _sigmoid(y_ref[0].astype(f32))        # (1, HW), lane-dense
        zblk = jnp.zeros((1, zpad), f32)

        def blur_1d(v, step, pos, size):
            # One separable `ksz`-tap gaussian pass along one spatial axis of
            # the flattened (1, H*W) map.  F.conv2d's zero padding is handled
            # by masking positions whose source index falls off that axis.
            vp = jnp.concatenate([zblk, v, zblk], axis=1)   # 128-aligned concat
            acc = jnp.zeros((1, HW), f32)
            for t in range(ksz):
                d = t - pad
                sh = vp[:, zpad + d * step: zpad + d * step + HW]  # static slice
                ok = jnp.logical_and(pos + d > -0.5, pos + d < size - 0.5)
                acc = acc + taps[t] * jnp.where(ok, sh, 0.0)
            return acc

        sa = blur_1d(blur_1d(pred, 1, wpos, W), W, hpos, H)
        mn = jnp.min(sa, axis=1, keepdims=True)               # min_max_norm
        mx = jnp.max(sa, axis=1, keepdims=True)
        hol = jnp.maximum((sa - mn) / (mx - mn + 1e-8), pred)
        # guide_map = [hol, 1-hol]; argmax ties (hol == 0.5) resolve to region 0
        m1 = jnp.where(hol < 0.5, 1.0, 0.0).astype(f32)       # region-1 selector

        # -------- 3 x (dynamic 1x1 SConv -> region select -> GN -> ReLU) ----
        feat = x_ref[0].astype(f32)                           # (cin, HW), VMEM resident
        inv_hw = 1.0 / float(HW)
        for li, (cin, cout) in enumerate(layer_dims):
            w1_ref, b1_ref, w2_ref, b2_ref, g_ref, bt_ref, p_ref = prefs[7 * li:7 * li + 7]

            # conv_kernel: AdaptiveAvgPool2d(1) -> Conv1x1 -> Sigmoid -> grouped Conv1x1
            pooled = jnp.sum(feat, axis=1, keepdims=True) * inv_hw     # (cin, 1)
            w1 = w1_ref[...]                                           # (R*HS, cin)
            s_pre = b1_ref[...]
            for i in range(cin):                   # tiny contraction: VPU FMA (not MXU)
                s_pre = s_pre + w1[:, i:i + 1] * pooled[i:i + 1, :]
            s1 = _sigmoid(s_pre)                                       # (R*HS, 1)

            outs = []
            for r in range(R):
                kmat = b2_ref[r]                                       # (cout, cin)
                for h in range(HS):                # grouped 1x1 conv as HS FMAs
                    kmat = kmat + s1[r * HS + h:r * HS + h + 1, :] * w2_ref[r, h]
                # per-sample 1x1 cross-correlation (Correlation / xcorr, kwargs={})
                outs.append(jnp.dot(kmat, feat, preferred_element_type=f32))  # (cout, HW)

            # asign_index: arithmetic 0/1 region select (no float equality)
            ysel = outs[0] + m1 * (outs[1] - outs[0])

            # GroupNorm(cout // 4, cout) + ReLU, single-pass stats, group-mean
            # combine via the (cout, cout) selection matrix P (too small for MXU).
            ssum = jnp.sum(ysel, axis=1, keepdims=True)                # (cout, 1)
            ssq = jnp.sum(ysel * ysel, axis=1, keepdims=True)          # (cout, 1)
            pmat = p_ref[...]
            cmean = jnp.zeros_like(ssum)
            cex2 = jnp.zeros_like(ssum)
            for c in range(cout):
                pc = pmat[:, c:c + 1]
                cmean = cmean + pc * ssum[c:c + 1, :]
                cex2 = cex2 + pc * ssq[c:c + 1, :]
            cmean = cmean * inv_hw
            cex2 = cex2 * inv_hw
            crstd = jax.lax.rsqrt(jnp.maximum(cex2 - cmean * cmean, 0.0) + GN_EPS)
            feat = jnp.maximum((ysel - cmean) * crstd * g_ref[...] + bt_ref[...], 0.0)

        out_ref[0] = feat.astype(out_ref.dtype)     # lane-dense (cout, HW) store

    return kernel


# ----------------------------- module forward (wrapper) ---------------------
def sconv_nr3_gn_forward(x, y, params):
    """x: (B, Cin, H, W) feature map, y: (B, 1, Hy, Wy) prediction logits."""
    B, cin0, H, W = x.shape
    HW = H * W
    if y.shape[2:] != (H, W):
        # F.interpolate(mode='bilinear', align_corners=False) equivalent (glue)
        y = jax.image.resize(y, (y.shape[0], y.shape[1], H, W), method="linear")
    x_flat = x.reshape(B, cin0, HW).astype(jnp.float32)
    y_flat = y.reshape(B, 1, HW).astype(jnp.float32)

    pad = KSIZE // 2
    zpad = max(128, ((pad * W + 127) // 128) * 128)     # lane padding for shifts
    u1d = _gaussian_sep_1d(KSIZE)

    idx = np.arange(HW)
    wpos = jnp.asarray((idx % W).astype(np.float32)[None, :])   # (1, HW)
    hpos = jnp.asarray((idx // W).astype(np.float32)[None, :])  # (1, HW)

    layer_dims = []
    flat_params = []
    in_specs = [
        pl.BlockSpec((1, cin0, HW), lambda b: (b, 0, 0)),    # x   (per-sample tile)
        pl.BlockSpec((1, 1, HW), lambda b: (b, 0, 0)),       # y   (per-sample tile)
        pl.BlockSpec((1, HW), lambda b: (0, 0)),             # wpos (resident)
        pl.BlockSpec((1, HW), lambda b: (0, 0)),             # hpos (resident)
    ]
    for p in params["layers"]:
        rhs, ci = p["W1"].shape
        co = p["gamma"].shape[0]
        assert rhs == R * HS and co % 4 == 0     # nn.GroupNorm(out_ch // 4, out_ch)
        groups, cpg = co // 4, 4
        layer_dims.append((ci, co))
        # host-side parameter layout plumbing (canonical PyTorch layouts -> kernel layouts)
        w2 = p["W2"].reshape(R, co, ci, HS).transpose(0, 3, 1, 2)   # (R, HS, co, ci)
        b2 = p["b2"].reshape(R, co, ci)
        pmat = jnp.asarray(np.kron(np.eye(groups, dtype=np.float32),
                                   np.full((cpg, cpg), 1.0 / cpg, np.float32)))
        flat_params += [p["W1"], p["b1"].reshape(R * HS, 1), w2, b2,
                        p["gamma"].reshape(co, 1), p["beta"].reshape(co, 1), pmat]
        in_specs += [
            pl.BlockSpec((R * HS, ci), lambda b: (0, 0)),
            pl.BlockSpec((R * HS, 1), lambda b: (0, 0)),
            pl.BlockSpec((R, HS, co, ci), lambda b: (0, 0, 0, 0)),
            pl.BlockSpec((R, co, ci), lambda b: (0, 0, 0)),
            pl.BlockSpec((co, 1), lambda b: (0, 0)),
            pl.BlockSpec((co, 1), lambda b: (0, 0)),
            pl.BlockSpec((co, co), lambda b: (0, 0)),
        ]
    co_last = layer_dims[-1][1]

    out = pl.pallas_call(
        make_fused_kernel(tuple(layer_dims), H, W, HW, u1d, pad, zpad),
        out_shape=jax.ShapeDtypeStruct((B, co_last, HW), jnp.float32),
        grid=(B,),
        in_specs=in_specs,
        out_specs=pl.BlockSpec((1, co_last, HW), lambda b: (b, 0, 0)),
        compiler_params=pltpu.CompilerParams(dimension_semantics=("parallel",)),
    )(x_flat, y_flat, wpos, hpos, *flat_params)
    return out.reshape(B, co_last, H, W)


# ----------------------------- pure-JAX reference (for validation) ----------
def reference_forward(x, y, params):
    B, _, H, W = x.shape
    if y.shape[2:] != (H, W):
        y = jax.image.resize(y, (y.shape[0], y.shape[1], H, W), method="linear")
    pad = KSIZE // 2
    gk2 = jnp.asarray(_gaussian_kernel_2d(KSIZE))
    pred = jax.nn.sigmoid(y)
    sa = jax.lax.conv_general_dilated(
        pred, gk2[None, None, :, :], (1, 1), [(pad, pad), (pad, pad)],
        dimension_numbers=("NCHW", "OIHW", "NCHW"))
    mn = sa.min(axis=(2, 3), keepdims=True)
    mx = sa.max(axis=(2, 3), keepdims=True)
    hol = jnp.maximum((sa - mn) / (mx - mn + 1e-8), pred)
    region1 = hol < 0.5
    feat = x
    for p in params["layers"]:
        ci = p["W1"].shape[1]
        co = p["gamma"].shape[0]
        pooled = feat.mean(axis=(2, 3))
        s = jax.nn.sigmoid(pooled @ p["W1"].T + p["b1"])
        outs = []
        for r in range(R):
            w2r = p["W2"][r * co * ci:(r + 1) * co * ci]
            b2r = p["b2"][r * co * ci:(r + 1) * co * ci]
            kf = s[:, r * HS:(r + 1) * HS] @ w2r.T + b2r
            kmat = kf.reshape(B, co, ci)
            outs.append(jnp.einsum("boi,bihw->bohw", kmat, feat))
        o = jnp.where(region1, outs[1], outs[0])
        g = co // 4
        og = o.reshape(B, g, co // g, H, W)
        mean = og.mean(axis=(2, 3, 4), keepdims=True)
        var = ((og - mean) ** 2).mean(axis=(2, 3, 4), keepdims=True)
        on = ((og - mean) / jnp.sqrt(var + GN_EPS)).reshape(B, co, H, W)
        feat = jax.nn.relu(on * p["gamma"][None, :, None, None]
                           + p["beta"][None, :, None, None])
    return feat


# ----------------------------- deterministic parameter init ------------------
def init_params(key, cin, cmid, cout):
    dims = [(cin, cmid), (cmid, cout), (cout, cout)]   # sconv1, sconv2, sconv3
    layers = []
    for (ci, co) in dims:
        key, k1, k2, k3, k4, k5, k6 = jax.random.split(key, 7)
        layers.append(dict(
            W1=0.2 * jax.random.normal(k1, (HS * R, ci), jnp.float32),      # Conv2d(ci, HS*R, 1)
            b1=0.1 * jax.random.normal(k2, (HS * R,), jnp.float32),
            W2=0.2 * jax.random.normal(k3, (R * co * ci, HS), jnp.float32),  # grouped Conv2d
            b2=0.1 * jax.random.normal(k4, (R * co * ci,), jnp.float32),
            gamma=1.0 + 0.1 * jax.random.normal(k5, (co,), jnp.float32),     # GroupNorm affine
            beta=0.1 * jax.random.normal(k6, (co,), jnp.float32),
        ))
    return {"layers": layers}


if __name__ == "__main__":
    key = jax.random.PRNGKey(0)
    kx, ky, kp = jax.random.split(key, 3)
    B, C, H, W = 2, 8, 16, 16
    x = jax.random.normal(kx, (B, C, H, W), jnp.float32)     # feature map
    y = jax.random.normal(ky, (B, 1, H, W), jnp.float32)     # prediction logits
    params = init_params(kp, C, C, C)

    out = jax.jit(sconv_nr3_gn_forward)(x, y, params)
    out = jax.block_until_ready(out)
    assert out.shape == (B, C, H, W)
    assert bool(jnp.all(jnp.isfinite(out)))

    # Validate against a pure-JAX/XLA reference of the PyTorch forward.  The
    # fraction-based check tolerates isolated pixels whose region argmax flips
    # under float round-off while still catching any structural error.
    with jax.default_matmul_precision("highest"):
        ref = jax.jit(reference_forward)(x, y, params)
    ref = jax.block_until_ready(ref)
    tol = 2e-2 + 2e-2 * jnp.abs(ref)
    frac_ok = float(jnp.mean((jnp.abs(out - ref) <= tol).astype(jnp.float32)))
    assert frac_ok > 0.97, f"kernel/reference mismatch (frac_ok={frac_ok:.4f})"

    print("KERNEL_OK")
</pallas_src>

<mosaic_0001>
module attributes {stable_mosaic.version = 11 : i64} {
  func.func @kernel(%arg0: i32, %arg1: memref<1x8x256xf32, #tpu.memory_space<vmem>>, %arg2: memref<1x1x256xf32, #tpu.memory_space<vmem>>, %arg3: memref<1x256xf32, #tpu.memory_space<vmem>>, %arg4: memref<1x256xf32, #tpu.memory_space<vmem>>, %arg5: memref<16x8xf32, #tpu.memory_space<vmem>>, %arg6: memref<16x1xf32, #tpu.memory_space<vmem>>, %arg7: memref<2x8x8x8xf32, #tpu.memory_space<vmem>>, %arg8: memref<2x8x8xf32, #tpu.memory_space<vmem>>, %arg9: memref<8x1xf32, #tpu.memory_space<vmem>>, %arg10: memref<8x1xf32, #tpu.memory_space<vmem>>, %arg11: memref<8x8xf32, #tpu.memory_space<vmem>>, %arg12: memref<16x8xf32, #tpu.memory_space<vmem>>, %arg13: memref<16x1xf32, #tpu.memory_space<vmem>>, %arg14: memref<2x8x8x8xf32, #tpu.memory_space<vmem>>, %arg15: memref<2x8x8xf32, #tpu.memory_space<vmem>>, %arg16: memref<8x1xf32, #tpu.memory_space<vmem>>, %arg17: memref<8x1xf32, #tpu.memory_space<vmem>>, %arg18: memref<8x8xf32, #tpu.memory_space<vmem>>, %arg19: memref<16x8xf32, #tpu.memory_space<vmem>>, %arg20: memref<16x1xf32, #tpu.memory_space<vmem>>, %arg21: memref<2x8x8x8xf32, #tpu.memory_space<vmem>>, %arg22: memref<2x8x8xf32, #tpu.memory_space<vmem>>, %arg23: memref<8x1xf32, #tpu.memory_space<vmem>>, %arg24: memref<8x1xf32, #tpu.memory_space<vmem>>, %arg25: memref<8x8xf32, #tpu.memory_space<vmem>>, %arg26: memref<1x8x256xf32, #tpu.memory_space<vmem>>) attributes {dimension_semantics = [#tpu.dimension_semantics<parallel>], iteration_bounds = array<i64: 2>, scalar_prefetch = 0 : i64, scratch_operands = 0 : i64, tpu.core_type = #tpu.core_type<tc>, window_params = [{transform_indices = @transform_0, window_bounds = array<i64: 1, 8, 256>}, {transform_indices = @transform_1, window_bounds = array<i64: 1, 1, 256>}, {pipeline_mode = #tpu.pipeline_mode<synchronous>, transform_indices = @transform_2, window_bounds = array<i64: 1, 256>}, {pipeline_mode = #tpu.pipeline_mode<synchronous>, transform_indices = @transform_3, window_bounds = array<i64: 1, 256>}, {pipeline_mode = #tpu.pipeline_mode<synchronous>, transform_indices = @transform_4, window_bounds = array<i64: 16, 8>}, {pipeline_mode = #tpu.pipeline_mode<synchronous>, transform_indices = @transform_5, window_bounds = array<i64: 16, 1>}, {pipeline_mode = #tpu.pipeline_mode<synchronous>, transform_indices = @transform_6, window_bounds = array<i64: 2, 8, 8, 8>}, {pipeline_mode = #tpu.pipeline_mode<synchronous>, transform_indices = @transform_7, window_bounds = array<i64: 2, 8, 8>}, {pipeline_mode = #tpu.pipeline_mode<synchronous>, transform_indices = @transform_8, window_bounds = array<i64: 8, 1>}, {pipeline_mode = #tpu.pipeline_mode<synchronous>, transform_indices = @transform_9, window_bounds = array<i64: 8, 1>}, {pipeline_mode = #tpu.pipeline_mode<synchronous>, transform_indices = @transform_10, window_bounds = array<i64: 8, 8>}, {pipeline_mode = #tpu.pipeline_mode<synchronous>, transform_indices = @transform_11, window_bounds = array<i64: 16, 8>}, {pipeline_mode = #tpu.pipeline_mode<synchronous>, transform_indices = @transform_12, window_bounds = array<i64: 16, 1>}, {pipeline_mode = #tpu.pipeline_mode<synchronous>, transform_indices = @transform_13, window_bounds = array<i64: 2, 8, 8, 8>}, {pipeline_mode = #tpu.pipeline_mode<synchronous>, transform_indices = @transform_14, window_bounds = array<i64: 2, 8, 8>}, {pipeline_mode = #tpu.pipeline_mode<synchronous>, transform_indices = @transform_15, window_bounds = array<i64: 8, 1>}, {pipeline_mode = #tpu.pipeline_mode<synchronous>, transform_indices = @transform_16, window_bounds = array<i64: 8, 1>}, {pipeline_mode = #tpu.pipeline_mode<synchronous>, transform_indices = @transform_17, window_bounds = array<i64: 8, 8>}, {pipeline_mode = #tpu.pipeline_mode<synchronous>, transform_indices = @transform_18, window_bounds = array<i64: 16, 8>}, {pipeline_mode = #tpu.pipeline_mode<synchronous>, transform_indices = @transform_19, window_bounds = array<i64: 16, 1>}, {pipeline_mode = #tpu.pipeline_mode<synchronous>, transform_indices = @transform_20, window_bounds = array<i64: 2, 8, 8, 8>}, {pipeline_mode = #tpu.pipeline_mode<synchronous>, transform_indices = @transform_21, window_bounds = array<i64: 2, 8, 8>}, {pipeline_mode = #tpu.pipeline_mode<synchronous>, transform_indices = @transform_22, window_bounds = array<i64: 8, 1>}, {pipeline_mode = #tpu.pipeline_mode<synchronous>, transform_indices = @transform_23, window_bounds = array<i64: 8, 1>}, {pipeline_mode = #tpu.pipeline_mode<synchronous>, transform_indices = @transform_24, window_bounds = array<i64: 8, 8>}, {transform_indices = @transform_25, window_bounds = array<i64: 1, 8, 256>}]} {
    %c0 = arith.constant 0 : index
    %c0_0 = arith.constant 0 : index
    %0 = vector.load %arg3[%c0, %c0_0] : memref<1x256xf32, #tpu.memory_space<vmem>>, vector<1x256xf32>
    %c0_1 = arith.constant 0 : index
    %c0_2 = arith.constant 0 : index
    %1 = vector.load %arg4[%c0_1, %c0_2] : memref<1x256xf32, #tpu.memory_space<vmem>>, vector<1x256xf32>
    %c0_3 = arith.constant 0 : index
    %c0_4 = arith.constant 0 : index
    %c0_5 = arith.constant 0 : index
    %2 = vector.load %arg2[%c0_3, %c0_4, %c0_5] : memref<1x1x256xf32, #tpu.memory_space<vmem>>, vector<1x1x256xf32>
    %3 = vector.shape_cast %2 : vector<1x1x256xf32> to vector<1x256xf32>
    %cst = arith.constant 0.000000e+00 : f32
    %4 = vector.broadcast %cst : f32 to vector<1x256xf32>
    %5 = arith.subf %4, %3 : vector<1x256xf32>
    %6 = math.exp %5 : vector<1x256xf32>
    %cst_6 = arith.constant 1.000000e+00 : f32
    %7 = vector.broadcast %cst_6 : f32 to vector<1x256xf32>
    %8 = arith.addf %7, %6 : vector<1x256xf32>
    %cst_7 = arith.constant 1.000000e+00 : f32
    %9 = vector.broadcast %cst_7 : f32 to vector<1x256xf32>
    %10 = arith.divf %9, %8 : vector<1x256xf32>
    %cst_8 = arith.constant 0.000000e+00 : f32
    %11 = vector.broadcast %cst_8 : f32 to vector<1x128xf32>
    %12 = tpu.concatenate %11, %10, %11 in 1 : vector<1x128xf32>, vector<1x256xf32>, vector<1x128xf32> -> vector<1x512xf32>
    %cst_9 = arith.constant 0.000000e+00 : f32
    %13 = vector.broadcast %cst_9 : f32 to vector<1x256xf32>
    %14 = vector.extract_strided_slice %12 {offsets = [0, 121], sizes = [1, 256], strides = [1, 1]} : vector<1x512xf32> to vector<1x256xf32>
    %cst_10 = arith.constant -7.000000e+00 : f32
    %15 = vector.broadcast %cst_10 : f32 to vector<1x256xf32>
    %16 = arith.addf %0, %15 : vector<1x256xf32>
    %cst_11 = arith.constant -5.000000e-01 : f32
    %17 = vector.broadcast %cst_11 : f32 to vector<1x256xf32>
    %18 = arith.cmpf ogt, %16, %17 : vector<1x256xf32>
    %cst_12 = arith.constant -7.000000e+00 : f32
    %19 = vector.broadcast %cst_12 : f32 to vector<1x256xf32>
    %20 = arith.addf %0, %19 : vector<1x256xf32>
    %cst_13 = arith.constant 1.550000e+01 : f32
    %21 = vector.broadcast %cst_13 : f32 to vector<1x256xf32>
    %22 = arith.cmpf olt, %20, %21 : vector<1x256xf32>
    %23 = arith.andi %18, %22 : vector<1x256xi1>
    %cst_14 = arith.constant 0.000000e+00 : f32
    %24 = vector.broadcast %cst_14 : f32 to vector<1x256xf32>
    %25 = arith.select %23, %14, %24 : vector<1x256xi1>, vector<1x256xf32>
    %cst_15 = arith.constant 0.0202224385 : f32
    %26 = vector.broadcast %cst_15 : f32 to vector<1x256xf32>
    %27 = arith.mulf %26, %25 : vector<1x256xf32>
    %28 = arith.addf %13, %27 : vector<1x256xf32>
    %29 = vector.extract_strided_slice %12 {offsets = [0, 122], sizes = [1, 256], strides = [1, 1]} : vector<1x512xf32> to vector<1x256xf32>
    %cst_16 = arith.constant -6.000000e+00 : f32
    %30 = vector.broadcast %cst_16 : f32 to vector<1x256xf32>
    %31 = arith.addf %0, %30 : vector<1x256xf32>
    %cst_17 = arith.constant -5.000000e-01 : f32
    %32 = vector.broadcast %cst_17 : f32 to vector<1x256xf32>
    %33 = arith.cmpf ogt, %31, %32 : vector<1x256xf32>
    %cst_18 = arith.constant -6.000000e+00 : f32
    %34 = vector.broadcast %cst_18 : f32 to vector<1x256xf32>
    %35 = arith.addf %0, %34 : vector<1x256xf32>
    %cst_19 = arith.constant 1.550000e+01 : f32
    %36 = vector.broadcast %cst_19 : f32 to vector<1x256xf32>
    %37 = arith.cmpf olt, %35, %36 : vector<1x256xf32>
    %38 = arith.andi %33, %37 : vector<1x256xi1>
    %cst_20 = arith.constant 0.000000e+00 : f32
    %39 = vector.broadcast %cst_20 : f32 to vector<1x256xf32>
    %40 = arith.select %38, %29, %39 : vector<1x256xi1>, vector<1x256xf32>
    %cst_21 = arith.constant 0.0317126215 : f32
    %41 = vector.broadcast %cst_21 : f32 to vector<1x256xf32>
    %42 = arith.mulf %41, %40 : vector<1x256xf32>
    %43 = arith.addf %28, %42 : vector<1x256xf32>
    %44 = vector.extract_strided_slice %12 {offsets = [0, 123], sizes = [1, 256], strides = [1, 1]} : vector<1x512xf32> to vector<1x256xf32>
    %cst_22 = arith.constant -5.000000e+00 : f32
    %45 = vector.broadcast %cst_22 : f32 to vector<1x256xf32>
    %46 = arith.addf %0, %45 : vector<1x256xf32>
    %cst_23 = arith.constant -5.000000e-01 : f32
    %47 = vector.broadcast %cst_23 : f32 to vector<1x256xf32>
    %48 = arith.cmpf ogt, %46, %47 : vector<1x256xf32>
    %cst_24 = arith.constant -5.000000e+00 : f32
    %49 = vector.broadcast %cst_24 : f32 to vector<1x256xf32>
    %50 = arith.addf %0, %49 : vector<1x256xf32>
    %cst_25 = arith.constant 1.550000e+01 : f32
    %51 = vector.broadcast %cst_25 : f32 to vector<1x256xf32>
    %52 = arith.cmpf olt, %50, %51 : vector<1x256xf32>
    %53 = arith.andi %48, %52 : vector<1x256xi1>
    %cst_26 = arith.constant 0.000000e+00 : f32
    %54 = vector.broadcast %cst_26 : f32 to vector<1x256xf32>
    %55 = arith.select %53, %44, %54 : vector<1x256xi1>, vector<1x256xf32>
    %cst_27 = arith.constant 0.0464047194 : f32
    %56 = vector.broadcast %cst_27 : f32 to vector<1x256xf32>
    %57 = arith.mulf %56, %55 : vector<1x256xf32>
    %58 = arith.addf %43, %57 : vector<1x256xf32>
    %59 = vector.extract_strided_slice %12 {offsets = [0, 124], sizes = [1, 256], strides = [1, 1]} : vector<1x512xf32> to vector<1x256xf32>
    %cst_28 = arith.constant -4.000000e+00 : f32
    %60 = vector.broadcast %cst_28 : f32 to vector<1x256xf32>
    %61 = arith.addf %0, %60 : vector<1x256xf32>
    %cst_29 = arith.constant -5.000000e-01 : f32
    %62 = vector.broadcast %cst_29 : f32 to vector<1x256xf32>
    %63 = arith.cmpf ogt, %61, %62 : vector<1x256xf32>
    %cst_30 = arith.constant -4.000000e+00 : f32
    %64 = vector.broadcast %cst_30 : f32 to vector<1x256xf32>
    %65 = arith.addf %0, %64 : vector<1x256xf32>
    %cst_31 = arith.constant 1.550000e+01 : f32
    %66 = vector.broadcast %cst_31 : f32 to vector<1x256xf32>
    %67 = arith.cmpf olt, %65, %66 : vector<1x256xf32>
    %68 = arith.andi %63, %67 : vector<1x256xi1>
    %cst_32 = arith.constant 0.000000e+00 : f32
    %69 = vector.broadcast %cst_32 : f32 to vector<1x256xf32>
    %70 = arith.select %68, %59, %69 : vector<1x256xi1>, vector<1x256xf32>
    %cst_33 = arith.constant 0.0633617416 : f32
    %71 = vector.broadcast %cst_33 : f32 to vector<1x256xf32>
    %72 = arith.mulf %71, %70 : vector<1x256xf32>
    %73 = arith.addf %58, %72 : vector<1x256xf32>
    %74 = vector.extract_strided_slice %12 {offsets = [0, 125], sizes = [1, 256], strides = [1, 1]} : vector<1x512xf32> to vector<1x256xf32>
    %cst_34 = arith.constant -3.000000e+00 : f32
    %75 = vector.broadcast %cst_34 : f32 to vector<1x256xf32>
    %76 = arith.addf %0, %75 : vector<1x256xf32>
    %cst_35 = arith.constant -5.000000e-01 : f32
    %77 = vector.broadcast %cst_35 : f32 to vector<1x256xf32>
    %78 = arith.cmpf ogt, %76, %77 : vector<1x256xf32>
    %cst_36 = arith.constant -3.000000e+00 : f32
    %79 = vector.broadcast %cst_36 : f32 to vector<1x256xf32>
    %80 = arith.addf %0, %79 : vector<1x256xf32>
    %cst_37 = arith.constant 1.550000e+01 : f32
    %81 = vector.broadcast %cst_37 : f32 to vector<1x256xf32>
    %82 = arith.cmpf olt, %80, %81 : vector<1x256xf32>
    %83 = arith.andi %78, %82 : vector<1x256xi1>
    %cst_38 = arith.constant 0.000000e+00 : f32
    %84 = vector.broadcast %cst_38 : f32 to vector<1x256xf32>
    %85 = arith.select %83, %74, %84 : vector<1x256xi1>, vector<1x256xf32>
    %cst_39 = arith.constant 0.0807290896 : f32
    %86 = vector.broadcast %cst_39 : f32 to vector<1x256xf32>
    %87 = arith.mulf %86, %85 : vector<1x256xf32>
    %88 = arith.addf %73, %87 : vector<1x256xf32>
    %89 = vector.extract_strided_slice %12 {offsets = [0, 126], sizes = [1, 256], strides = [1, 1]} : vector<1x512xf32> to vector<1x256xf32>
    %cst_40 = arith.constant -2.000000e+00 : f32
    %90 = vector.broadcast %cst_40 : f32 to vector<1x256xf32>
    %91 = arith.addf %0, %90 : vector<1x256xf32>
    %cst_41 = arith.constant -5.000000e-01 : f32
    %92 = vector.broadcast %cst_41 : f32 to vector<1x256xf32>
    %93 = arith.cmpf ogt, %91, %92 : vector<1x256xf32>
    %cst_42 = arith.constant -2.000000e+00 : f32
    %94 = vector.broadcast %cst_42 : f32 to vector<1x256xf32>
    %95 = arith.addf %0, %94 : vector<1x256xf32>
    %cst_43 = arith.constant 1.550000e+01 : f32
    %96 = vector.broadcast %cst_43 : f32 to vector<1x256xf32>
    %97 = arith.cmpf olt, %95, %96 : vector<1x256xf32>
    %98 = arith.andi %93, %97 : vector<1x256xi1>
    %cst_44 = arith.constant 0.000000e+00 : f32
    %99 = vector.broadcast %cst_44 : f32 to vector<1x256xf32>
    %100 = arith.select %98, %89, %99 : vector<1x256xi1>, vector<1x256xf32>
    %cst_45 = arith.constant 0.0959783568 : f32
    %101 = vector.broadcast %cst_45 : f32 to vector<1x256xf32>
    %102 = arith.mulf %101, %100 : vector<1x256xf32>
    %103 = arith.addf %88, %102 : vector<1x256xf32>
    %104 = vector.extract_strided_slice %12 {offsets = [0, 127], sizes = [1, 256], strides = [1, 1]} : vector<1x512xf32> to vector<1x256xf32>
    %cst_46 = arith.constant -1.000000e+00 : f32
    %105 = vector.broadcast %cst_46 : f32 to vector<1x256xf32>
    %106 = arith.addf %0, %105 : vector<1x256xf32>
    %cst_47 = arith.constant -5.000000e-01 : f32
    %107 = vector.broadcast %cst_47 : f32 to vector<1x256xf32>
    %108 = arith.cmpf ogt, %106, %107 : vector<1x256xf32>
    %cst_48 = arith.constant -1.000000e+00 : f32
    %109 = vector.broadcast %cst_48 : f32 to vector<1x256xf32>
    %110 = arith.addf %0, %109 : vector<1x256xf32>
    %cst_49 = arith.constant 1.550000e+01 : f32
    %111 = vector.broadcast %cst_49 : f32 to vector<1x256xf32>
    %112 = arith.cmpf olt, %110, %111 : vector<1x256xf32>
    %113 = arith.andi %108, %112 : vector<1x256xi1>
    %cst_50 = arith.constant 0.000000e+00 : f32
    %114 = vector.broadcast %cst_50 : f32 to vector<1x256xf32>
    %115 = arith.select %113, %104, %114 : vector<1x256xi1>, vector<1x256xf32>
    %cst_51 = arith.constant 0.106477678 : f32
    %116 = vector.broadcast %cst_51 : f32 to vector<1x256xf32>
    %117 = arith.mulf %116, %115 : vector<1x256xf32>
    %118 = arith.addf %103, %117 : vector<1x256xf32>
    %119 = vector.extract_strided_slice %12 {offsets = [0, 128], sizes = [1, 256], strides = [1, 1]} : vector<1x512xf32> to vector<1x256xf32>
    %cst_52 = arith.constant 0.000000e+00 : f32
    %120 = vector.broadcast %cst_52 : f32 to vector<1x256xf32>
    %121 = arith.addf %0, %120 : vector<1x256xf32>
    %cst_53 = arith.constant -5.000000e-01 : f32
    %122 = vector.broadcast %cst_53 : f32 to vector<1x256xf32>
    %123 = arith.cmpf ogt, %121, %122 : vector<1x256xf32>
    %cst_54 = arith.constant 0.000000e+00 : f32
    %124 = vector.broadcast %cst_54 : f32 to vector<1x256xf32>
    %125 = arith.addf %0, %124 : vector<1x256xf32>
    %cst_55 = arith.constant 1.550000e+01 : f32
    %126 = vector.broadcast %cst_55 : f32 to vector<1x256xf32>
    %127 = arith.cmpf olt, %125, %126 : vector<1x256xf32>
    %128 = arith.andi %123, %127 : vector<1x256xi1>
    %cst_56 = arith.constant 0.000000e+00 : f32
    %129 = vector.broadcast %cst_56 : f32 to vector<1x256xf32>
    %130 = arith.select %128, %119, %129 : vector<1x256xi1>, vector<1x256xf32>
    %cst_57 = arith.constant 0.110226721 : f32
    %131 = vector.broadcast %cst_57 : f32 to vector<1x256xf32>
    %132 = arith.mulf %131, %130 : vector<1x256xf32>
    %133 = arith.addf %118, %132 : vector<1x256xf32>
    %134 = vector.extract_strided_slice %12 {offsets = [0, 129], sizes = [1, 256], strides = [1, 1]} : vector<1x512xf32> to vector<1x256xf32>
    %cst_58 = arith.constant 1.000000e+00 : f32
    %135 = vector.broadcast %cst_58 : f32 to vector<1x256xf32>
    %136 = arith.addf %0, %135 : vector<1x256xf32>
    %cst_59 = arith.constant -5.000000e-01 : f32
    %137 = vector.broadcast %cst_59 : f32 to vector<1x256xf32>
    %138 = arith.cmpf ogt, %136, %137 : vector<1x256xf32>
    %cst_60 = arith.constant 1.000000e+00 : f32
    %139 = vector.broadcast %cst_60 : f32 to vector<1x256xf32>
    %140 = arith.addf %0, %139 : vector<1x256xf32>
    %cst_61 = arith.constant 1.550000e+01 : f32
    %141 = vector.broadcast %cst_61 : f32 to vector<1x256xf32>
    %142 = arith.cmpf olt, %140, %141 : vector<1x256xf32>
    %143 = arith.andi %138, %142 : vector<1x256xi1>
    %cst_62 = arith.constant 0.000000e+00 : f32
    %144 = vector.broadcast %cst_62 : f32 to vector<1x256xf32>
    %145 = arith.select %143, %134, %144 : vector<1x256xi1>, vector<1x256xf32>
    %cst_63 = arith.constant 0.106477678 : f32
    %146 = vector.broadcast %cst_63 : f32 to vector<1x256xf32>
    %147 = arith.mulf %146, %145 : vector<1x256xf32>
    %148 = arith.addf %133, %147 : vector<1x256xf32>
    %149 = vector.extract_strided_slice %12 {offsets = [0, 130], sizes = [1, 256], strides = [1, 1]} : vector<1x512xf32> to vector<1x256xf32>
    %cst_64 = arith.constant 2.000000e+00 : f32
    %150 = vector.broadcast %cst_64 : f32 to vector<1x256xf32>
    %151 = arith.addf %0, %150 : vector<1x256xf32>
    %cst_65 = arith.constant -5.000000e-01 : f32
    %152 = vector.broadcast %cst_65 : f32 to vector<1x256xf32>
    %153 = arith.cmpf ogt, %151, %152 : vector<1x256xf32>
    %cst_66 = arith.constant 2.000000e+00 : f32
    %154 = vector.broadcast %cst_66 : f32 to vector<1x256xf32>
    %155 = arith.addf %0, %154 : vector<1x256xf32>
    %cst_67 = arith.constant 1.550000e+01 : f32
    %156 = vector.broadcast %cst_67 : f32 to vector<1x256xf32>
    %157 = arith.cmpf olt, %155, %156 : vector<1x256xf32>
    %158 = arith.andi %153, %157 : vector<1x256xi1>
    %cst_68 = arith.constant 0.000000e+00 : f32
    %159 = vector.broadcast %cst_68 : f32 to vector<1x256xf32>
    %160 = arith.select %158, %149, %159 : vector<1x256xi1>, vector<1x256xf32>
    %cst_69 = arith.constant 0.0959783568 : f32
    %161 = vector.broadcast %cst_69 : f32 to vector<1x256xf32>
    %162 = arith.mulf %161, %160 : vector<1x256xf32>
    %163 = arith.addf %148, %162 : vector<1x256xf32>
    %164 = vector.extract_strided_slice %12 {offsets = [0, 131], sizes = [1, 256], strides = [1, 1]} : vector<1x512xf32> to vector<1x256xf32>
    %cst_70 = arith.constant 3.000000e+00 : f32
    %165 = vector.broadcast %cst_70 : f32 to vector<1x256xf32>
    %166 = arith.addf %0, %165 : vector<1x256xf32>
    %cst_71 = arith.constant -5.000000e-01 : f32
    %167 = vector.broadcast %cst_71 : f32 to vector<1x256xf32>
    %168 = arith.cmpf ogt, %166, %167 : vector<1x256xf32>
    %cst_72 = arith.constant 3.000000e+00 : f32
    %169 = vector.broadcast %cst_72 : f32 to vector<1x256xf32>
    %170 = arith.addf %0, %169 : vector<1x256xf32>
    %cst_73 = arith.constant 1.550000e+01 : f32
    %171 = vector.broadcast %cst_73 : f32 to vector<1x256xf32>
    %172 = arith.cmpf olt, %170, %171 : vector<1x256xf32>
    %173 = arith.andi %168, %172 : vector<1x256xi1>
    %cst_74 = arith.constant 0.000000e+00 : f32
    %174 = vector.broadcast %cst_74 : f32 to vector<1x256xf32>
    %175 = arith.select %173, %164, %174 : vector<1x256xi1>, vector<1x256xf32>
    %cst_75 = arith.constant 0.0807290896 : f32
    %176 = vector.broadcast %cst_75 : f32 to vector<1x256xf32>
    %177 = arith.mulf %176, %175 : vector<1x256xf32>
    %178 = arith.addf %163, %177 : vector<1x256xf32>
    %179 = vector.extract_strided_slice %12 {offsets = [0, 132], sizes = [1, 256], strides = [1, 1]} : vector<1x512xf32> to vector<1x256xf32>
    %cst_76 = arith.constant 4.000000e+00 : f32
    %180 = vector.broadcast %cst_76 : f32 to vector<1x256xf32>
    %181 = arith.addf %0, %180 : vector<1x256xf32>
    %cst_77 = arith.constant -5.000000e-01 : f32
    %182 = vector.broadcast %cst_77 : f32 to vector<1x256xf32>
    %183 = arith.cmpf ogt, %181, %182 : vector<1x256xf32>
    %cst_78 = arith.constant 4.000000e+00 : f32
    %184 = vector.broadcast %cst_78 : f32 to vector<1x256xf32>
    %185 = arith.addf %0, %184 : vector<1x256xf32>
    %cst_79 = arith.constant 1.550000e+01 : f32
    %186 = vector.broadcast %cst_79 : f32 to vector<1x256xf32>
    %187 = arith.cmpf olt, %185, %186 : vector<1x256xf32>
    %188 = arith.andi %183, %187 : vector<1x256xi1>
    %cst_80 = arith.constant 0.000000e+00 : f32
    %189 = vector.broadcast %cst_80 : f32 to vector<1x256xf32>
    %190 = arith.select %188, %179, %189 : vector<1x256xi1>, vector<1x256xf32>
    %cst_81 = arith.constant 0.0633617416 : f32
    %191 = vector.broadcast %cst_81 : f32 to vector<1x256xf32>
    %192 = arith.mulf %191, %190 : vector<1x256xf32>
    %193 = arith.addf %178, %192 : vector<1x256xf32>
    %194 = vector.extract_strided_slice %12 {offsets = [0, 133], sizes = [1, 256], strides = [1, 1]} : vector<1x512xf32> to vector<1x256xf32>
    %cst_82 = arith.constant 5.000000e+00 : f32
    %195 = vector.broadcast %cst_82 : f32 to vector<1x256xf32>
    %196 = arith.addf %0, %195 : vector<1x256xf32>
    %cst_83 = arith.constant -5.000000e-01 : f32
    %197 = vector.broadcast %cst_83 : f32 to vector<1x256xf32>
    %198 = arith.cmpf ogt, %196, %197 : vector<1x256xf32>
    %cst_84 = arith.constant 5.000000e+00 : f32
    %199 = vector.broadcast %cst_84 : f32 to vector<1x256xf32>
    %200 = arith.addf %0, %199 : vector<1x256xf32>
    %cst_85 = arith.constant 1.550000e+01 : f32
    %201 = vector.broadcast %cst_85 : f32 to vector<1x256xf32>
    %202 = arith.cmpf olt, %200, %201 : vector<1x256xf32>
    %203 = arith.andi %198, %202 : vector<1x256xi1>
    %cst_86 = arith.constant 0.000000e+00 : f32
    %204 = vector.broadcast %cst_86 : f32 to vector<1x256xf32>
    %205 = arith.select %203, %194, %204 : vector<1x256xi1>, vector<1x256xf32>
    %cst_87 = arith.constant 0.0464047194 : f32
    %206 = vector.broadcast %cst_87 : f32 to vector<1x256xf32>
    %207 = arith.mulf %206, %205 : vector<1x256xf32>
    %208 = arith.addf %193, %207 : vector<1x256xf32>
    %209 = vector.extract_strided_slice %12 {offsets = [0, 134], sizes = [1, 256], strides = [1, 1]} : vector<1x512xf32> to vector<1x256xf32>
    %cst_88 = arith.constant 6.000000e+00 : f32
    %210 = vector.broadcast %cst_88 : f32 to vector<1x256xf32>
    %211 = arith.addf %0, %210 : vector<1x256xf32>
    %cst_89 = arith.constant -5.000000e-01 : f32
    %212 = vector.broadcast %cst_89 : f32 to vector<1x256xf32>
    %213 = arith.cmpf ogt, %211, %212 : vector<1x256xf32>
    %cst_90 = arith.constant 6.000000e+00 : f32
    %214 = vector.broadcast %cst_90 : f32 to vector<1x256xf32>
    %215 = arith.addf %0, %214 : vector<1x256xf32>
    %cst_91 = arith.constant 1.550000e+01 : f32
    %216 = vector.broadcast %cst_91 : f32 to vector<1x256xf32>
    %217 = arith.cmpf olt, %215, %216 : vector<1x256xf32>
    %218 = arith.andi %213, %217 : vector<1x256xi1>
    %cst_92 = arith.constant 0.000000e+00 : f32
    %219 = vector.broadcast %cst_92 : f32 to vector<1x256xf32>
    %220 = arith.select %218, %209, %219 : vector<1x256xi1>, vector<1x256xf32>
    %cst_93 = arith.constant 0.0317126215 : f32
    %221 = vector.broadcast %cst_93 : f32 to vector<1x256xf32>
    %222 = arith.mulf %221, %220 : vector<1x256xf32>
    %223 = arith.addf %208, %222 : vector<1x256xf32>
    %224 = vector.extract_strided_slice %12 {offsets = [0, 135], sizes = [1, 256], strides = [1, 1]} : vector<1x512xf32> to vector<1x256xf32>
    %cst_94 = arith.constant 7.000000e+00 : f32
    %225 = vector.broadcast %cst_94 : f32 to vector<1x256xf32>
    %226 = arith.addf %0, %225 : vector<1x256xf32>
    %cst_95 = arith.constant -5.000000e-01 : f32
    %227 = vector.broadcast %cst_95 : f32 to vector<1x256xf32>
    %228 = arith.cmpf ogt, %226, %227 : vector<1x256xf32>
    %cst_96 = arith.constant 7.000000e+00 : f32
    %229 = vector.broadcast %cst_96 : f32 to vector<1x256xf32>
    %230 = arith.addf %0, %229 : vector<1x256xf32>
    %cst_97 = arith.constant 1.550000e+01 : f32
    %231 = vector.broadcast %cst_97 : f32 to vector<1x256xf32>
    %232 = arith.cmpf olt, %230, %231 : vector<1x256xf32>
    %233 = arith.andi %228, %232 : vector<1x256xi1>
    %cst_98 = arith.constant 0.000000e+00 : f32
    %234 = vector.broadcast %cst_98 : f32 to vector<1x256xf32>
    %235 = arith.select %233, %224, %234 : vector<1x256xi1>, vector<1x256xf32>
    %cst_99 = arith.constant 0.0202224385 : f32
    %236 = vector.broadcast %cst_99 : f32 to vector<1x256xf32>
    %237 = arith.mulf %236, %235 : vector<1x256xf32>
    %238 = arith.addf %223, %237 : vector<1x256xf32>
    %239 = tpu.concatenate %11, %238, %11 in 1 : vector<1x128xf32>, vector<1x256xf32>, vector<1x128xf32> -> vector<1x512xf32>
    %cst_100 = arith.constant 0.000000e+00 : f32
    %240 = vector.broadcast %cst_100 : f32 to vector<1x256xf32>
    %241 = vector.extract_strided_slice %239 {offsets = [0, 16], sizes = [1, 256], strides = [1, 1]} : vector<1x512xf32> to vector<1x256xf32>
    %cst_101 = arith.constant -7.000000e+00 : f32
    %242 = vector.broadcast %cst_101 : f32 to vector<1x256xf32>
    %243 = arith.addf %1, %242 : vector<1x256xf32>
    %cst_102 = arith.constant -5.000000e-01 : f32
    %244 = vector.broadcast %cst_102 : f32 to vector<1x256xf32>
    %245 = arith.cmpf ogt, %243, %244 : vector<1x256xf32>
    %cst_103 = arith.constant -7.000000e+00 : f32
    %246 = vector.broadcast %cst_103 : f32 to vector<1x256xf32>
    %247 = arith.addf %1, %246 : vector<1x256xf32>
    %cst_104 = arith.constant 1.550000e+01 : f32
    %248 = vector.broadcast %cst_104 : f32 to vector<1x256xf32>
    %249 = arith.cmpf olt, %247, %248 : vector<1x256xf32>
    %250 = arith.andi %245, %249 : vector<1x256xi1>
    %cst_105 = arith.constant 0.000000e+00 : f32
    %251 = vector.broadcast %cst_105 : f32 to vector<1x256xf32>
    %252 = arith.select %250, %241, %251 : vector<1x256xi1>, vector<1x256xf32>
    %cst_106 = arith.constant 0.0202224385 : f32
    %253 = vector.broadcast %cst_106 : f32 to vector<1x256xf32>
    %254 = arith.mulf %253, %252 : vector<1x256xf32>
    %255 = arith.addf %240, %254 : vector<1x256xf32>
    %256 = vector.extract_strided_slice %239 {offsets = [0, 32], sizes = [1, 256], strides = [1, 1]} : vector<1x512xf32> to vector<1x256xf32>
    %cst_107 = arith.constant -6.000000e+00 : f32
    %257 = vector.broadcast %cst_107 : f32 to vector<1x256xf32>
    %258 = arith.addf %1, %257 : vector<1x256xf32>
    %cst_108 = arith.constant -5.000000e-01 : f32
    %259 = vector.broadcast %cst_108 : f32 to vector<1x256xf32>
    %260 = arith.cmpf ogt, %258, %259 : vector<1x256xf32>
    %cst_109 = arith.constant -6.000000e+00 : f32
    %261 = vector.broadcast %cst_109 : f32 to vector<1x256xf32>
    %262 = arith.addf %1, %261 : vector<1x256xf32>
    %cst_110 = arith.constant 1.550000e+01 : f32
    %263 = vector.broadcast %cst_110 : f32 to vector<1x256xf32>
    %264 = arith.cmpf olt, %262, %263 : vector<1x256xf32>
    %265 = arith.andi %260, %264 : vector<1x256xi1>
    %cst_111 = arith.constant 0.000000e+00 : f32
    %266 = vector.broadcast %cst_111 : f32 to vector<1x256xf32>
    %267 = arith.select %265, %256, %266 : vector<1x256xi1>, vector<1x256xf32>
    %cst_112 = arith.constant 0.0317126215 : f32
    %268 = vector.broadcast %cst_112 : f32 to vector<1x256xf32>
    %269 = arith.mulf %268, %267 : vector<1x256xf32>
    %270 = arith.addf %255, %269 : vector<1x256xf32>
    %271 = vector.extract_strided_slice %239 {offsets = [0, 48], sizes = [1, 256], strides = [1, 1]} : vector<1x512xf32> to vector<1x256xf32>
    %cst_113 = arith.constant -5.000000e+00 : f32
    %272 = vector.broadcast %cst_113 : f32 to vector<1x256xf32>
    %273 = arith.addf %1, %272 : vector<1x256xf32>
    %cst_114 = arith.constant -5.000000e-01 : f32
    %274 = vector.broadcast %cst_114 : f32 to vector<1x256xf32>
    %275 = arith.cmpf ogt, %273, %274 : vector<1x256xf32>
    %cst_115 = arith.constant -5.000000e+00 : f32
    %276 = vector.broadcast %cst_115 : f32 to vector<1x256xf32>
    %277 = arith.addf %1, %276 : vector<1x256xf32>
    %cst_116 = arith.constant 1.550000e+01 : f32
    %278 = vector.broadcast %cst_116 : f32 to vector<1x256xf32>
    %279 = arith.cmpf olt, %277, %278 : vector<1x256xf32>
    %280 = arith.andi %275, %279 : vector<1x256xi1>
    %cst_117 = arith.constant 0.000000e+00 : f32
    %281 = vector.broadcast %cst_117 : f32 to vector<1x256xf32>
    %282 = arith.select %280, %271, %281 : vector<1x256xi1>, vector<1x256xf32>
    %cst_118 = arith.constant 0.0464047194 : f32
    %283 = vector.broadcast %cst_118 : f32 to vector<1x256xf32>
    %284 = arith.mulf %283, %282 : vector<1x256xf32>
    %285 = arith.addf %270, %284 : vector<1x256xf32>
    %286 = vector.extract_strided_slice %239 {offsets = [0, 64], sizes = [1, 256], strides = [1, 1]} : vector<1x512xf32> to vector<1x256xf32>
    %cst_119 = arith.constant -4.000000e+00 : f32
    %287 = vector.broadcast %cst_119 : f32 to vector<1x256xf32>
    %288 = arith.addf %1, %287 : vector<1x256xf32>
    %cst_120 = arith.constant -5.000000e-01 : f32
    %289 = vector.broadcast %cst_120 : f32 to vector<1x256xf32>
    %290 = arith.cmpf ogt, %288, %289 : vector<1x256xf32>
    %cst_121 = arith.constant -4.000000e+00 : f32
    %291 = vector.broadcast %cst_121 : f32 to vector<1x256xf32>
    %292 = arith.addf %1, %291 : vector<1x256xf32>
    %cst_122 = arith.constant 1.550000e+01 : f32
    %293 = vector.broadcast %cst_122 : f32 to vector<1x256xf32>
    %294 = arith.cmpf olt, %292, %293 : vector<1x256xf32>
    %295 = arith.andi %290, %294 : vector<1x256xi1>
    %cst_123 = arith.constant 0.000000e+00 : f32
    %296 = vector.broadcast %cst_123 : f32 to vector<1x256xf32>
    %297 = arith.select %295, %286, %296 : vector<1x256xi1>, vector<1x256xf32>
    %cst_124 = arith.constant 0.0633617416 : f32
    %298 = vector.broadcast %cst_124 : f32 to vector<1x256xf32>
    %299 = arith.mulf %298, %297 : vector<1x256xf32>
    %300 = arith.addf %285, %299 : vector<1x256xf32>
    %301 = vector.extract_strided_slice %239 {offsets = [0, 80], sizes = [1, 256], strides = [1, 1]} : vector<1x512xf32> to vector<1x256xf32>
    %cst_125 = arith.constant -3.000000e+00 : f32
    %302 = vector.broadcast %cst_125 : f32 to vector<1x256xf32>
    %303 = arith.addf %1, %302 : vector<1x256xf32>
    %cst_126 = arith.constant -5.000000e-01 : f32
    %304 = vector.broadcast %cst_126 : f32 to vector<1x256xf32>
    %305 = arith.cmpf ogt, %303, %304 : vector<1x256xf32>
    %cst_127 = arith.constant -3.000000e+00 : f32
    %306 = vector.broadcast %cst_127 : f32 to vector<1x256xf32>
    %307 = arith.addf %1, %306 : vector<1x256xf32>
    %cst_128 = arith.constant 1.550000e+01 : f32
    %308 = vector.broadcast %cst_128 : f32 to vector<1x256xf32>
    %309 = arith.cmpf olt, %307, %308 : vector<1x256xf32>
    %310 = arith.andi %305, %309 : vector<1x256xi1>
    %cst_129 = arith.constant 0.000000e+00 : f32
    %311 = vector.broadcast %cst_129 : f32 to vector<1x256xf32>
    %312 = arith.select %310, %301, %311 : vector<1x256xi1>, vector<1x256xf32>
    %cst_130 = arith.constant 0.0807290896 : f32
    %313 = vector.broadcast %cst_130 : f32 to vector<1x256xf32>
    %314 = arith.mulf %313, %312 : vector<1x256xf32>
    %315 = arith.addf %300, %314 : vector<1x256xf32>
    %316 = vector.extract_strided_slice %239 {offsets = [0, 96], sizes = [1, 256], strides = [1, 1]} : vector<1x512xf32> to vector<1x256xf32>
    %cst_131 = arith.constant -2.000000e+00 : f32
    %317 = vector.broadcast %cst_131 : f32 to vector<1x256xf32>
    %318 = arith.addf %1, %317 : vector<1x256xf32>
    %cst_132 = arith.constant -5.000000e-01 : f32
    %319 = vector.broadcast %cst_132 : f32 to vector<1x256xf32>
    %320 = arith.cmpf ogt, %318, %319 : vector<1x256xf32>
    %cst_133 = arith.constant -2.000000e+00 : f32
    %321 = vector.broadcast %cst_133 : f32 to vector<1x256xf32>
    %322 = arith.addf %1, %321 : vector<1x256xf32>
    %cst_134 = arith.constant 1.550000e+01 : f32
    %323 = vector.broadcast %cst_134 : f32 to vector<1x256xf32>
    %324 = arith.cmpf olt, %322, %323 : vector<1x256xf32>
    %325 = arith.andi %320, %324 : vector<1x256xi1>
    %cst_135 = arith.constant 0.000000e+00 : f32
    %326 = vector.broadcast %cst_135 : f32 to vector<1x256xf32>
    %327 = arith.select %325, %316, %326 : vector<1x256xi1>, vector<1x256xf32>
    %cst_136 = arith.constant 0.0959783568 : f32
    %328 = vector.broadcast %cst_136 : f32 to vector<1x256xf32>
    %329 = arith.mulf %328, %327 : vector<1x256xf32>
    %330 = arith.addf %315, %329 : vector<1x256xf32>
    %331 = vector.extract_strided_slice %239 {offsets = [0, 112], sizes = [1, 256], strides = [1, 1]} : vector<1x512xf32> to vector<1x256xf32>
    %cst_137 = arith.constant -1.000000e+00 : f32
    %332 = vector.broadcast %cst_137 : f32 to vector<1x256xf32>
    %333 = arith.addf %1, %332 : vector<1x256xf32>
    %cst_138 = arith.constant -5.000000e-01 : f32
    %334 = vector.broadcast %cst_138 : f32 to vector<1x256xf32>
    %335 = arith.cmpf ogt, %333, %334 : vector<1x256xf32>
    %cst_139 = arith.constant -1.000000e+00 : f32
    %336 = vector.broadcast %cst_139 : f32 to vector<1x256xf32>
    %337 = arith.addf %1, %336 : vector<1x256xf32>
    %cst_140 = arith.constant 1.550000e+01 : f32
    %338 = vector.broadcast %cst_140 : f32 to vector<1x256xf32>
    %339 = arith.cmpf olt, %337, %338 : vector<1x256xf32>
    %340 = arith.andi %335, %339 : vector<1x256xi1>
    %cst_141 = arith.constant 0.000000e+00 : f32
    %341 = vector.broadcast %cst_141 : f32 to vector<1x256xf32>
    %342 = arith.select %340, %331, %341 : vector<1x256xi1>, vector<1x256xf32>
    %cst_142 = arith.constant 0.106477678 : f32
    %343 = vector.broadcast %cst_142 : f32 to vector<1x256xf32>
    %344 = arith.mulf %343, %342 : vector<1x256xf32>
    %345 = arith.addf %330, %344 : vector<1x256xf32>
    %346 = vector.extract_strided_slice %239 {offsets = [0, 128], sizes = [1, 256], strides = [1, 1]} : vector<1x512xf32> to vector<1x256xf32>
    %cst_143 = arith.constant 0.000000e+00 : f32
    %347 = vector.broadcast %cst_143 : f32 to vector<1x256xf32>
    %348 = arith.addf %1, %347 : vector<1x256xf32>
    %cst_144 = arith.constant -5.000000e-01 : f32
    %349 = vector.broadcast %cst_144 : f32 to vector<1x256xf32>
    %350 = arith.cmpf ogt, %348, %349 : vector<1x256xf32>
    %cst_145 = arith.constant 0.000000e+00 : f32
    %351 = vector.broadcast %cst_145 : f32 to vector<1x256xf32>
    %352 = arith.addf %1, %351 : vector<1x256xf32>
    %cst_146 = arith.constant 1.550000e+01 : f32
    %353 = vector.broadcast %cst_146 : f32 to vector<1x256xf32>
    %354 = arith.cmpf olt, %352, %353 : vector<1x256xf32>
    %355 = arith.andi %350, %354 : vector<1x256xi1>
    %cst_147 = arith.constant 0.000000e+00 : f32
    %356 = vector.broadcast %cst_147 : f32 to vector<1x256xf32>
    %357 = arith.select %355, %346, %356 : vector<1x256xi1>, vector<1x256xf32>
    %cst_148 = arith.constant 0.110226721 : f32
    %358 = vector.broadcast %cst_148 : f32 to vector<1x256xf32>
    %359 = arith.mulf %358, %357 : vector<1x256xf32>
    %360 = arith.addf %345, %359 : vector<1x256xf32>
    %361 = vector.extract_strided_slice %239 {offsets = [0, 144], sizes = [1, 256], strides = [1, 1]} : vector<1x512xf32> to vector<1x256xf32>
    %cst_149 = arith.constant 1.000000e+00 : f32
    %362 = vector.broadcast %cst_149 : f32 to vector<1x256xf32>
    %363 = arith.addf %1, %362 : vector<1x256xf32>
    %cst_150 = arith.constant -5.000000e-01 : f32
    %364 = vector.broadcast %cst_150 : f32 to vector<1x256xf32>
    %365 = arith.cmpf ogt, %363, %364 : vector<1x256xf32>
    %cst_151 = arith.constant 1.000000e+00 : f32
    %366 = vector.broadcast %cst_151 : f32 to vector<1x256xf32>
    %367 = arith.addf %1, %366 : vector<1x256xf32>
    %cst_152 = arith.constant 1.550000e+01 : f32
    %368 = vector.broadcast %cst_152 : f32 to vector<1x256xf32>
    %369 = arith.cmpf olt, %367, %368 : vector<1x256xf32>
    %370 = arith.andi %365, %369 : vector<1x256xi1>
    %cst_153 = arith.constant 0.000000e+00 : f32
    %371 = vector.broadcast %cst_153 : f32 to vector<1x256xf32>
    %372 = arith.select %370, %361, %371 : vector<1x256xi1>, vector<1x256xf32>
    %cst_154 = arith.constant 0.106477678 : f32
    %373 = vector.broadcast %cst_154 : f32 to vector<1x256xf32>
    %374 = arith.mulf %373, %372 : vector<1x256xf32>
    %375 = arith.addf %360, %374 : vector<1x256xf32>
    %376 = vector.extract_strided_slice %239 {offsets = [0, 160], sizes = [1, 256], strides = [1, 1]} : vector<1x512xf32> to vector<1x256xf32>
    %cst_155 = arith.constant 2.000000e+00 : f32
    %377 = vector.broadcast %cst_155 : f32 to vector<1x256xf32>
    %378 = arith.addf %1, %377 : vector<1x256xf32>
    %cst_156 = arith.constant -5.000000e-01 : f32
    %379 = vector.broadcast %cst_156 : f32 to vector<1x256xf32>
    %380 = arith.cmpf ogt, %378, %379 : vector<1x256xf32>
    %cst_157 = arith.constant 2.000000e+00 : f32
    %381 = vector.broadcast %cst_157 : f32 to vector<1x256xf32>
    %382 = arith.addf %1, %381 : vector<1x256xf32>
    %cst_158 = arith.constant 1.550000e+01 : f32
    %383 = vector.broadcast %cst_158 : f32 to vector<1x256xf32>
    %384 = arith.cmpf olt, %382, %383 : vector<1x256xf32>
    %385 = arith.andi %380, %384 : vector<1x256xi1>
    %cst_159 = arith.constant 0.000000e+00 : f32
    %386 = vector.broadcast %cst_159 : f32 to vector<1x256xf32>
    %387 = arith.select %385, %376, %386 : vector<1x256xi1>, vector<1x256xf32>
    %cst_160 = arith.constant 0.0959783568 : f32
    %388 = vector.broadcast %cst_160 : f32 to vector<1x256xf32>
    %389 = arith.mulf %388, %387 : vector<1x256xf32>
    %390 = arith.addf %375, %389 : vector<1x256xf32>
    %391 = vector.extract_strided_slice %239 {offsets = [0, 176], sizes = [1, 256], strides = [1, 1]} : vector<1x512xf32> to vector<1x256xf32>
    %cst_161 = arith.constant 3.000000e+00 : f32
    %392 = vector.broadcast %cst_161 : f32 to vector<1x256xf32>
    %393 = arith.addf %1, %392 : vector<1x256xf32>
    %cst_162 = arith.constant -5.000000e-01 : f32
    %394 = vector.broadcast %cst_162 : f32 to vector<1x256xf32>
    %395 = arith.cmpf ogt, %393, %394 : vector<1x256xf32>
    %cst_163 = arith.constant 3.000000e+00 : f32
    %396 = vector.broadcast %cst_163 : f32 to vector<1x256xf32>
    %397 = arith.addf %1, %396 : vector<1x256xf32>
    %cst_164 = arith.constant 1.550000e+01 : f32
    %398 = vector.broadcast %cst_164 : f32 to vector<1x256xf32>
    %399 = arith.cmpf olt, %397, %398 : vector<1x256xf32>
    %400 = arith.andi %395, %399 : vector<1x256xi1>
    %cst_165 = arith.constant 0.000000e+00 : f32
    %401 = vector.broadcast %cst_165 : f32 to vector<1x256xf32>
    %402 = arith.select %400, %391, %401 : vector<1x256xi1>, vector<1x256xf32>
    %cst_166 = arith.constant 0.0807290896 : f32
    %403 = vector.broadcast %cst_166 : f32 to vector<1x256xf32>
    %404 = arith.mulf %403, %402 : vector<1x256xf32>
    %405 = arith.addf %390, %404 : vector<1x256xf32>
    %406 = vector.extract_strided_slice %239 {offsets = [0, 192], sizes = [1, 256], strides = [1, 1]} : vector<1x512xf32> to vector<1x256xf32>
    %cst_167 = arith.constant 4.000000e+00 : f32
    %407 = vector.broadcast %cst_167 : f32 to vector<1x256xf32>
    %408 = arith.addf %1, %407 : vector<1x256xf32>
    %cst_168 = arith.constant -5.000000e-01 : f32
    %409 = vector.broadcast %cst_168 : f32 to vector<1x256xf32>
    %410 = arith.cmpf ogt, %408, %409 : vector<1x256xf32>
    %cst_169 = arith.constant 4.000000e+00 : f32
    %411 = vector.broadcast %cst_169 : f32 to vector<1x256xf32>
    %412 = arith.addf %1, %411 : vector<1x256xf32>
    %cst_170 = arith.constant 1.550000e+01 : f32
    %413 = vector.broadcast %cst_170 : f32 to vector<1x256xf32>
    %414 = arith.cmpf olt, %412, %413 : vector<1x256xf32>
    %415 = arith.andi %410, %414 : vector<1x256xi1>
    %cst_171 = arith.constant 0.000000e+00 : f32
    %416 = vector.broadcast %cst_171 : f32 to vector<1x256xf32>
    %417 = arith.select %415, %406, %416 : vector<1x256xi1>, vector<1x256xf32>
    %cst_172 = arith.constant 0.0633617416 : f32
    %418 = vector.broadcast %cst_172 : f32 to vector<1x256xf32>
    %419 = arith.mulf %418, %417 : vector<1x256xf32>
    %420 = arith.addf %405, %419 : vector<1x256xf32>
    %421 = vector.extract_strided_slice %239 {offsets = [0, 208], sizes = [1, 256], strides = [1, 1]} : vector<1x512xf32> to vector<1x256xf32>
    %cst_173 = arith.constant 5.000000e+00 : f32
    %422 = vector.broadcast %cst_173 : f32 to vector<1x256xf32>
    %423 = arith.addf %1, %422 : vector<1x256xf32>
    %cst_174 = arith.constant -5.000000e-01 : f32
    %424 = vector.broadcast %cst_174 : f32 to vector<1x256xf32>
    %425 = arith.cmpf ogt, %423, %424 : vector<1x256xf32>
    %cst_175 = arith.constant 5.000000e+00 : f32
    %426 = vector.broadcast %cst_175 : f32 to vector<1x256xf32>
    %427 = arith.addf %1, %426 : vector<1x256xf32>
    %cst_176 = arith.constant 1.550000e+01 : f32
    %428 = vector.broadcast %cst_176 : f32 to vector<1x256xf32>
    %429 = arith.cmpf olt, %427, %428 : vector<1x256xf32>
    %430 = arith.andi %425, %429 : vector<1x256xi1>
    %cst_177 = arith.constant 0.000000e+00 : f32
    %431 = vector.broadcast %cst_177 : f32 to vector<1x256xf32>
    %432 = arith.select %430, %421, %431 : vector<1x256xi1>, vector<1x256xf32>
    %cst_178 = arith.constant 0.0464047194 : f32
    %433 = vector.broadcast %cst_178 : f32 to vector<1x256xf32>
    %434 = arith.mulf %433, %432 : vector<1x256xf32>
    %435 = arith.addf %420, %434 : vector<1x256xf32>
    %436 = vector.extract_strided_slice %239 {offsets = [0, 224], sizes = [1, 256], strides = [1, 1]} : vector<1x512xf32> to vector<1x256xf32>
    %cst_179 = arith.constant 6.000000e+00 : f32
    %437 = vector.broadcast %cst_179 : f32 to vector<1x256xf32>
    %438 = arith.addf %1, %437 : vector<1x256xf32>
    %cst_180 = arith.constant -5.000000e-01 : f32
    %439 = vector.broadcast %cst_180 : f32 to vector<1x256xf32>
    %440 = arith.cmpf ogt, %438, %439 : vector<1x256xf32>
    %cst_181 = arith.constant 6.000000e+00 : f32
    %441 = vector.broadcast %cst_181 : f32 to vector<1x256xf32>
    %442 = arith.addf %1, %441 : vector<1x256xf32>
    %cst_182 = arith.constant 1.550000e+01 : f32
    %443 = vector.broadcast %cst_182 : f32 to vector<1x256xf32>
    %444 = arith.cmpf olt, %442, %443 : vector<1x256xf32>
    %445 = arith.andi %440, %444 : vector<1x256xi1>
    %cst_183 = arith.constant 0.000000e+00 : f32
    %446 = vector.broadcast %cst_183 : f32 to vector<1x256xf32>
    %447 = arith.select %445, %436, %446 : vector<1x256xi1>, vector<1x256xf32>
    %cst_184 = arith.constant 0.0317126215 : f32
    %448 = vector.broadcast %cst_184 : f32 to vector<1x256xf32>
    %449 = arith.mulf %448, %447 : vector<1x256xf32>
    %450 = arith.addf %435, %449 : vector<1x256xf32>
    %451 = vector.extract_strided_slice %239 {offsets = [0, 240], sizes = [1, 256], strides = [1, 1]} : vector<1x512xf32> to vector<1x256xf32>
    %cst_185 = arith.constant 7.000000e+00 : f32
    %452 = vector.broadcast %cst_185 : f32 to vector<1x256xf32>
    %453 = arith.addf %1, %452 : vector<1x256xf32>
    %cst_186 = arith.constant -5.000000e-01 : f32
    %454 = vector.broadcast %cst_186 : f32 to vector<1x256xf32>
    %455 = arith.cmpf ogt, %453, %454 : vector<1x256xf32>
    %cst_187 = arith.constant 7.000000e+00 : f32
    %456 = vector.broadcast %cst_187 : f32 to vector<1x256xf32>
    %457 = arith.addf %1, %456 : vector<1x256xf32>
    %cst_188 = arith.constant 1.550000e+01 : f32
    %458 = vector.broadcast %cst_188 : f32 to vector<1x256xf32>
    %459 = arith.cmpf olt, %457, %458 : vector<1x256xf32>
    %460 = arith.andi %455, %459 : vector<1x256xi1>
    %cst_189 = arith.constant 0.000000e+00 : f32
    %461 = vector.broadcast %cst_189 : f32 to vector<1x256xf32>
    %462 = arith.select %460, %451, %461 : vector<1x256xi1>, vector<1x256xf32>
    %cst_190 = arith.constant 0.0202224385 : f32
    %463 = vector.broadcast %cst_190 : f32 to vector<1x256xf32>
    %464 = arith.mulf %463, %462 : vector<1x256xf32>
    %465 = arith.addf %450, %464 : vector<1x256xf32>
    %cst_191 = arith.constant dense<0x7F800000> : vector<1xf32>
    %466 = vector.multi_reduction <minimumf>, %465, %cst_191 [1] : vector<1x256xf32> to vector<1xf32>
    %467 = vector.shape_cast %466 : vector<1xf32> to vector<1x1xf32>
    %cst_192 = arith.constant dense<0xFF800000> : vector<1xf32>
    %468 = vector.multi_reduction <maximumf>, %465, %cst_192 [1] : vector<1x256xf32> to vector<1xf32>
    %469 = vector.shape_cast %468 : vector<1xf32> to vector<1x1xf32>
    %470 = vector.broadcast %467 : vector<1x1xf32> to vector<1x256xf32>
    %471 = arith.subf %465, %470 : vector<1x256xf32>
    %472 = arith.subf %469, %467 : vector<1x1xf32>
    %cst_193 = arith.constant 9.99999993E-9 : f32
    %473 = vector.broadcast %cst_193 : f32 to vector<1x1xf32>
    %474 = arith.addf %472, %473 : vector<1x1xf32>
    %475 = vector.broadcast %474 : vector<1x1xf32> to vector<1x256xf32>
    %476 = arith.divf %471, %475 : vector<1x256xf32>
    %477 = arith.maximumf %476, %10 : vector<1x256xf32>
    %cst_194 = arith.constant 5.000000e-01 : f32
    %478 = vector.broadcast %cst_194 : f32 to vector<1x256xf32>
    %479 = arith.cmpf olt, %477, %478 : vector<1x256xf32>
    %cst_195 = arith.constant 1.000000e+00 : f32
    %cst_196 = arith.constant 0.000000e+00 : f32
    %480 = vector.broadcast %cst_195 : f32 to vector<1x256xf32>
    %481 = vector.broadcast %cst_196 : f32 to vector<1x256xf32>
    %482 = arith.select %479, %480, %481 : vector<1x256xi1>, vector<1x256xf32>
    %c0_197 = arith.constant 0 : index
    %c0_198 = arith.constant 0 : index
    %c0_199 = arith.constant 0 : index
    %483 = vector.load %arg1[%c0_197, %c0_198, %c0_199] : memref<1x8x256xf32, #tpu.memory_space<vmem>>, vector<1x8x256xf32>
    %484 = vector.shape_cast %483 : vector<1x8x256xf32> to vector<8x256xf32>
    %cst_200 = arith.constant dense<0.000000e+00> : vector<8xf32>
    %485 = vector.multi_reduction <add>, %484, %cst_200 [1] : vector<8x256xf32> to vector<8xf32>
    %486 = vector.shape_cast %485 : vector<8xf32> to vector<8x1xf32>
    %cst_201 = arith.constant 3.906250e-03 : f32
    %487 = vector.broadcast %cst_201 : f32 to vector<8x1xf32>
    %488 = arith.mulf %486, %487 : vector<8x1xf32>
    %c0_202 = arith.constant 0 : index
    %c0_203 = arith.constant 0 : index
    %489 = vector.load %arg5[%c0_202, %c0_203] : memref<16x8xf32, #tpu.memory_space<vmem>>, vector<16x8xf32>
    %c0_204 = arith.constant 0 : index
    %c0_205 = arith.constant 0 : index
    %490 = vector.load %arg6[%c0_204, %c0_205] : memref<16x1xf32, #tpu.memory_space<vmem>>, vector<16x1xf32>
    %491 = vector.extract_strided_slice %489 {offsets = [0, 0], sizes = [16, 1], strides = [1, 1]} : vector<16x8xf32> to vector<16x1xf32>
    %492 = vector.extract_strided_slice %488 {offsets = [0, 0], sizes = [1, 1], strides = [1, 1]} : vector<8x1xf32> to vector<1x1xf32>
    %493 = vector.broadcast %492 : vector<1x1xf32> to vector<16x1xf32>
    %494 = arith.mulf %491, %493 : vector<16x1xf32>
    %495 = arith.addf %490, %494 : vector<16x1xf32>
    %496 = vector.extract_strided_slice %489 {offsets = [0, 1], sizes = [16, 1], strides = [1, 1]} : vector<16x8xf32> to vector<16x1xf32>
    %497 = vector.extract_strided_slice %488 {offsets = [1, 0], sizes = [1, 1], strides = [1, 1]} : vector<8x1xf32> to vector<1x1xf32>
    %498 = vector.broadcast %497 : vector<1x1xf32> to vector<16x1xf32>
    %499 = arith.mulf %496, %498 : vector<16x1xf32>
    %500 = arith.addf %495, %499 : vector<16x1xf32>
    %501 = vector.extract_strided_slice %489 {offsets = [0, 2], sizes = [16, 1], strides = [1, 1]} : vector<16x8xf32> to vector<16x1xf32>
    %502 = vector.extract_strided_slice %488 {offsets = [2, 0], sizes = [1, 1], strides = [1, 1]} : vector<8x1xf32> to vector<1x1xf32>
    %503 = vector.broadcast %502 : vector<1x1xf32> to vector<16x1xf32>
    %504 = arith.mulf %501, %503 : vector<16x1xf32>
    %505 = arith.addf %500, %504 : vector<16x1xf32>
    %506 = vector.extract_strided_slice %489 {offsets = [0, 3], sizes = [16, 1], strides = [1, 1]} : vector<16x8xf32> to vector<16x1xf32>
    %507 = vector.extract_strided_slice %488 {offsets = [3, 0], sizes = [1, 1], strides = [1, 1]} : vector<8x1xf32> to vector<1x1xf32>
    %508 = vector.broadcast %507 : vector<1x1xf32> to vector<16x1xf32>
    %509 = arith.mulf %506, %508 : vector<16x1xf32>
    %510 = arith.addf %505, %509 : vector<16x1xf32>
    %511 = vector.extract_strided_slice %489 {offsets = [0, 4], sizes = [16, 1], strides = [1, 1]} : vector<16x8xf32> to vector<16x1xf32>
    %512 = vector.extract_strided_slice %488 {offsets = [4, 0], sizes = [1, 1], strides = [1, 1]} : vector<8x1xf32> to vector<1x1xf32>
    %513 = vector.broadcast %512 : vector<1x1xf32> to vector<16x1xf32>
    %514 = arith.mulf %511, %513 : vector<16x1xf32>
    %515 = arith.addf %510, %514 : vector<16x1xf32>
    %516 = vector.extract_strided_slice %489 {offsets = [0, 5], sizes = [16, 1], strides = [1, 1]} : vector<16x8xf32> to vector<16x1xf32>
    %517 = vector.extract_strided_slice %488 {offsets = [5, 0], sizes = [1, 1], strides = [1, 1]} : vector<8x1xf32> to vector<1x1xf32>
    %518 = vector.broadcast %517 : vector<1x1xf32> to vector<16x1xf32>
    %519 = arith.mulf %516, %518 : vector<16x1xf32>
    %520 = arith.addf %515, %519 : vector<16x1xf32>
    %521 = vector.extract_strided_slice %489 {offsets = [0, 6], sizes = [16, 1], strides = [1, 1]} : vector<16x8xf32> to vector<16x1xf32>
    %522 = vector.extract_strided_slice %488 {offsets = [6, 0], sizes = [1, 1], strides = [1, 1]} : vector<8x1xf32> to vector<1x1xf32>
    %523 = vector.broadcast %522 : vector<1x1xf32> to vector<16x1xf32>
    %524 = arith.mulf %521, %523 : vector<16x1xf32>
    %525 = arith.addf %520, %524 : vector<16x1xf32>
    %526 = vector.extract_strided_slice %489 {offsets = [0, 7], sizes = [16, 1], strides = [1, 1]} : vector<16x8xf32> to vector<16x1xf32>
    %527 = vector.extract_strided_slice %488 {offsets = [7, 0], sizes = [1, 1], strides = [1, 1]} : vector<8x1xf32> to vector<1x1xf32>
    %528 = vector.broadcast %527 : vector<1x1xf32> to vector<16x1xf32>
    %529 = arith.mulf %526, %528 : vector<16x1xf32>
    %530 = arith.addf %525, %529 : vector<16x1xf32>
    %cst_206 = arith.constant 0.000000e+00 : f32
    %531 = vector.broadcast %cst_206 : f32 to vector<16x1xf32>
    %532 = arith.subf %531, %530 : vector<16x1xf32>
    %533 = math.exp %532 : vector<16x1xf32>
    %cst_207 = arith.constant 1.000000e+00 : f32
    %534 = vector.broadcast %cst_207 : f32 to vector<16x1xf32>
    %535 = arith.addf %534, %533 : vector<16x1xf32>
    %cst_208 = arith.constant 1.000000e+00 : f32
    %536 = vector.broadcast %cst_208 : f32 to vector<16x1xf32>
    %537 = arith.divf %536, %535 : vector<16x1xf32>
    %c0_209 = arith.constant 0 : index
    %c0_210 = arith.constant 0 : index
    %c0_211 = arith.constant 0 : index
    %538 = vector.load %arg8[%c0_209, %c0_210, %c0_211] : memref<2x8x8xf32, #tpu.memory_space<vmem>>, vector<1x8x8xf32>
    %539 = vector.shape_cast %538 : vector<1x8x8xf32> to vector<8x8xf32>
    %540 = vector.extract_strided_slice %537 {offsets = [0, 0], sizes = [1, 1], strides = [1, 1]} : vector<16x1xf32> to vector<1x1xf32>
    %c0_212 = arith.constant 0 : index
    %c0_213 = arith.constant 0 : index
    %c0_214 = arith.constant 0 : index
    %c0_215 = arith.constant 0 : index
    %541 = vector.load %arg7[%c0_212, %c0_213, %c0_214, %c0_215] : memref<2x8x8x8xf32, #tpu.memory_space<vmem>>, vector<1x1x8x8xf32>
    %542 = vector.shape_cast %541 : vector<1x1x8x8xf32> to vector<8x8xf32>
    %543 = vector.broadcast %540 : vector<1x1xf32> to vector<8x8xf32>
    %544 = arith.mulf %543, %542 : vector<8x8xf32>
    %545 = arith.addf %539, %544 : vector<8x8xf32>
    %546 = vector.extract_strided_slice %537 {offsets = [1, 0], sizes = [1, 1], strides = [1, 1]} : vector<16x1xf32> to vector<1x1xf32>
    %c0_216 = arith.constant 0 : index
    %c1 = arith.constant 1 : index
    %c0_217 = arith.constant 0 : index
    %c0_218 = arith.constant 0 : index
    %547 = vector.load %arg7[%c0_216, %c1, %c0_217, %c0_218] : memref<2x8x8x8xf32, #tpu.memory_space<vmem>>, vector<1x1x8x8xf32>
    %548 = vector.shape_cast %547 : vector<1x1x8x8xf32> to vector<8x8xf32>
    %549 = vector.broadcast %546 : vector<1x1xf32> to vector<8x8xf32>
    %550 = arith.mulf %549, %548 : vector<8x8xf32>
    %551 = arith.addf %545, %550 : vector<8x8xf32>
    %552 = vector.extract_strided_slice %537 {offsets = [2, 0], sizes = [1, 1], strides = [1, 1]} : vector<16x1xf32> to vector<1x1xf32>
    %c0_219 = arith.constant 0 : index
    %c2 = arith.constant 2 : index
    %c0_220 = arith.constant 0 : index
    %c0_221 = arith.constant 0 : index
    %553 = vector.load %arg7[%c0_219, %c2, %c0_220, %c0_221] : memref<2x8x8x8xf32, #tpu.memory_space<vmem>>, vector<1x1x8x8xf32>
    %554 = vector.shape_cast %553 : vector<1x1x8x8xf32> to vector<8x8xf32>
    %555 = vector.broadcast %552 : vector<1x1xf32> to vector<8x8xf32>
    %556 = arith.mulf %555, %554 : vector<8x8xf32>
    %557 = arith.addf %551, %556 : vector<8x8xf32>
    %558 = vector.extract_strided_slice %537 {offsets = [3, 0], sizes = [1, 1], strides = [1, 1]} : vector<16x1xf32> to vector<1x1xf32>
    %c0_222 = arith.constant 0 : index
    %c3 = arith.constant 3 : index
    %c0_223 = arith.constant 0 : index
    %c0_224 = arith.constant 0 : index
    %559 = vector.load %arg7[%c0_222, %c3, %c0_223, %c0_224] : memref<2x8x8x8xf32, #tpu.memory_space<vmem>>, vector<1x1x8x8xf32>
    %560 = vector.shape_cast %559 : vector<1x1x8x8xf32> to vector<8x8xf32>
    %561 = vector.broadcast %558 : vector<1x1xf32> to vector<8x8xf32>
    %562 = arith.mulf %561, %560 : vector<8x8xf32>
    %563 = arith.addf %557, %562 : vector<8x8xf32>
    %564 = vector.extract_strided_slice %537 {offsets = [4, 0], sizes = [1, 1], strides = [1, 1]} : vector<16x1xf32> to vector<1x1xf32>
    %c0_225 = arith.constant 0 : index
    %c4 = arith.constant 4 : index
    %c0_226 = arith.constant 0 : index
    %c0_227 = arith.constant 0 : index
    %565 = vector.load %arg7[%c0_225, %c4, %c0_226, %c0_227] : memref<2x8x8x8xf32, #tpu.memory_space<vmem>>, vector<1x1x8x8xf32>
    %566 = vector.shape_cast %565 : vector<1x1x8x8xf32> to vector<8x8xf32>
    %567 = vector.broadcast %564 : vector<1x1xf32> to vector<8x8xf32>
    %568 = arith.mulf %567, %566 : vector<8x8xf32>
    %569 = arith.addf %563, %568 : vector<8x8xf32>
    %570 = vector.extract_strided_slice %537 {offsets = [5, 0], sizes = [1, 1], strides = [1, 1]} : vector<16x1xf32> to vector<1x1xf32>
    %c0_228 = arith.constant 0 : index
    %c5 = arith.constant 5 : index
    %c0_229 = arith.constant 0 : index
    %c0_230 = arith.constant 0 : index
    %571 = vector.load %arg7[%c0_228, %c5, %c0_229, %c0_230] : memref<2x8x8x8xf32, #tpu.memory_space<vmem>>, vector<1x1x8x8xf32>
    %572 = vector.shape_cast %571 : vector<1x1x8x8xf32> to vector<8x8xf32>
    %573 = vector.broadcast %570 : vector<1x1xf32> to vector<8x8xf32>
    %574 = arith.mulf %573, %572 : vector<8x8xf32>
    %575 = arith.addf %569, %574 : vector<8x8xf32>
    %576 = vector.extract_strided_slice %537 {offsets = [6, 0], sizes = [1, 1], strides = [1, 1]} : vector<16x1xf32> to vector<1x1xf32>
    %c0_231 = arith.constant 0 : index
    %c6 = arith.constant 6 : index
    %c0_232 = arith.constant 0 : index
    %c0_233 = arith.constant 0 : index
    %577 = vector.load %arg7[%c0_231, %c6, %c0_232, %c0_233] : memref<2x8x8x8xf32, #tpu.memory_space<vmem>>, vector<1x1x8x8xf32>
    %578 = vector.shape_cast %577 : vector<1x1x8x8xf32> to vector<8x8xf32>
    %579 = vector.broadcast %576 : vector<1x1xf32> to vector<8x8xf32>
    %580 = arith.mulf %579, %578 : vector<8x8xf32>
    %581 = arith.addf %575, %580 : vector<8x8xf32>
    %582 = vector.extract_strided_slice %537 {offsets = [7, 0], sizes = [1, 1], strides = [1, 1]} : vector<16x1xf32> to vector<1x1xf32>
    %c0_234 = arith.constant 0 : index
    %c7 = arith.constant 7 : index
    %c0_235 = arith.constant 0 : index
    %c0_236 = arith.constant 0 : index
    %583 = vector.load %arg7[%c0_234, %c7, %c0_235, %c0_236] : memref<2x8x8x8xf32, #tpu.memory_space<vmem>>, vector<1x1x8x8xf32>
    %584 = vector.shape_cast %583 : vector<1x1x8x8xf32> to vector<8x8xf32>
    %585 = vector.broadcast %582 : vector<1x1xf32> to vector<8x8xf32>
    %586 = arith.mulf %585, %584 : vector<8x8xf32>
    %587 = arith.addf %581, %586 : vector<8x8xf32>
    %cst_237 = arith.constant dense<0.000000e+00> : vector<8x256xf32>
    %588 = tpu.matmul %587, %484, %cst_237 {dimension_numbers = #tpu.dot_dimension_numbers<[1], [0], [0], [1], [0, 0, 1, 1], [], []>} : vector<8x8xf32>, vector<8x256xf32>, vector<8x256xf32> -> vector<8x256xf32>
    %c1_238 = arith.constant 1 : index
    %c0_239 = arith.constant 0 : index
    %c0_240 = arith.constant 0 : index
    %589 = vector.load %arg8[%c1_238, %c0_239, %c0_240] : memref<2x8x8xf32, #tpu.memory_space<vmem>>, vector<1x8x8xf32>
    %590 = vector.shape_cast %589 : vector<1x8x8xf32> to vector<8x8xf32>
    %591 = vector.extract_strided_slice %537 {offsets = [8, 0], sizes = [1, 1], strides = [1, 1]} : vector<16x1xf32> to vector<1x1xf32>
    %c1_241 = arith.constant 1 : index
    %c0_242 = arith.constant 0 : index
    %c0_243 = arith.constant 0 : index
    %c0_244 = arith.constant 0 : index
    %592 = vector.load %arg7[%c1_241, %c0_242, %c0_243, %c0_244] : memref<2x8x8x8xf32, #tpu.memory_space<vmem>>, vector<1x1x8x8xf32>
    %593 = vector.shape_cast %592 : vector<1x1x8x8xf32> to vector<8x8xf32>
    %594 = vector.broadcast %591 : vector<1x1xf32> to vector<8x8xf32>
    %595 = arith.mulf %594, %593 : vector<8x8xf32>
    %596 = arith.addf %590, %595 : vector<8x8xf32>
    %597 = vector.extract_strided_slice %537 {offsets = [9, 0], sizes = [1, 1], strides = [1, 1]} : vector<16x1xf32> to vector<1x1xf32>
    %c1_245 = arith.constant 1 : index
    %c1_246 = arith.constant 1 : index
    %c0_247 = arith.constant 0 : index
    %c0_248 = arith.constant 0 : index
    %598 = vector.load %arg7[%c1_245, %c1_246, %c0_247, %c0_248] : memref<2x8x8x8xf32, #tpu.memory_space<vmem>>, vector<1x1x8x8xf32>
    %599 = vector.shape_cast %598 : vector<1x1x8x8xf32> to vector<8x8xf32>
    %600 = vector.broadcast %597 : vector<1x1xf32> to vector<8x8xf32>
    %601 = arith.mulf %600, %599 : vector<8x8xf32>
    %602 = arith.addf %596, %601 : vector<8x8xf32>
    %603 = vector.extract_strided_slice %537 {offsets = [10, 0], sizes = [1, 1], strides = [1, 1]} : vector<16x1xf32> to vector<1x1xf32>
    %c1_249 = arith.constant 1 : index
    %c2_250 = arith.constant 2 : index
    %c0_251 = arith.constant 0 : index
    %c0_252 = arith.constant 0 : index
    %604 = vector.load %arg7[%c1_249, %c2_250, %c0_251, %c0_252] : memref<2x8x8x8xf32, #tpu.memory_space<vmem>>, vector<1x1x8x8xf32>
    %605 = vector.shape_cast %604 : vector<1x1x8x8xf32> to vector<8x8xf32>
    %606 = vector.broadcast %603 : vector<1x1xf32> to vector<8x8xf32>
    %607 = arith.mulf %606, %605 : vector<8x8xf32>
    %608 = arith.addf %602, %607 : vector<8x8xf32>
    %609 = vector.extract_strided_slice %537 {offsets = [11, 0], sizes = [1, 1], strides = [1, 1]} : vector<16x1xf32> to vector<1x1xf32>
    %c1_253 = arith.constant 1 : index
    %c3_254 = arith.constant 3 : index
    %c0_255 = arith.constant 0 : index
    %c0_256 = arith.constant 0 : index
    %610 = vector.load %arg7[%c1_253, %c3_254, %c0_255, %c0_256] : memref<2x8x8x8xf32, #tpu.memory_space<vmem>>, vector<1x1x8x8xf32>
    %611 = vector.shape_cast %610 : vector<1x1x8x8xf32> to vector<8x8xf32>
    %612 = vector.broadcast %609 : vector<1x1xf32> to vector<8x8xf32>
    %613 = arith.mulf %612, %611 : vector<8x8xf32>
    %614 = arith.addf %608, %613 : vector<8x8xf32>
    %615 = vector.extract_strided_slice %537 {offsets = [12, 0], sizes = [1, 1], strides = [1, 1]} : vector<16x1xf32> to vector<1x1xf32>
    %c1_257 = arith.constant 1 : index
    %c4_258 = arith.constant 4 : index
    %c0_259 = arith.constant 0 : index
    %c0_260 = arith.constant 0 : index
    %616 = vector.load %arg7[%c1_257, %c4_258, %c0_259, %c0_260] : memref<2x8x8x8xf32, #tpu.memory_space<vmem>>, vector<1x1x8x8xf32>
    %617 = vector.shape_cast %616 : vector<1x1x8x8xf32> to vector<8x8xf32>
    %618 = vector.broadcast %615 : vector<1x1xf32> to vector<8x8xf32>
    %619 = arith.mulf %618, %617 : vector<8x8xf32>
    %620 = arith.addf %614, %619 : vector<8x8xf32>
    %621 = vector.extract_strided_slice %537 {offsets = [13, 0], sizes = [1, 1], strides = [1, 1]} : vector<16x1xf32> to vector<1x1xf32>
    %c1_261 = arith.constant 1 : index
    %c5_262 = arith.constant 5 : index
    %c0_263 = arith.constant 0 : index
    %c0_264 = arith.constant 0 : index
    %622 = vector.load %arg7[%c1_261, %c5_262, %c0_263, %c0_264] : memref<2x8x8x8xf32, #tpu.memory_space<vmem>>, vector<1x1x8x8xf32>
    %623 = vector.shape_cast %622 : vector<1x1x8x8xf32> to vector<8x8xf32>
    %624 = vector.broadcast %621 : vector<1x1xf32> to vector<8x8xf32>
    %625 = arith.mulf %624, %623 : vector<8x8xf32>
    %626 = arith.addf %620, %625 : vector<8x8xf32>
    %627 = vector.extract_strided_slice %537 {offsets = [14, 0], sizes = [1, 1], strides = [1, 1]} : vector<16x1xf32> to vector<1x1xf32>
    %c1_265 = arith.constant 1 : index
    %c6_266 = arith.constant 6 : index
    %c0_267 = arith.constant 0 : index
    %c0_268 = arith.constant 0 : index
    %628 = vector.load %arg7[%c1_265, %c6_266, %c0_267, %c0_268] : memref<2x8x8x8xf32, #tpu.memory_space<vmem>>, vector<1x1x8x8xf32>
    %629 = vector.shape_cast %628 : vector<1x1x8x8xf32> to vector<8x8xf32>
    %630 = vector.broadcast %627 : vector<1x1xf32> to vector<8x8xf32>
    %631 = arith.mulf %630, %629 : vector<8x8xf32>
    %632 = arith.addf %626, %631 : vector<8x8xf32>
    %633 = vector.extract_strided_slice %537 {offsets = [15, 0], sizes = [1, 1], strides = [1, 1]} : vector<16x1xf32> to vector<1x1xf32>
    %c1_269 = arith.constant 1 : index
    %c7_270 = arith.constant 7 : index
    %c0_271 = arith.constant 0 : index
    %c0_272 = arith.constant 0 : index
    %634 = vector.load %arg7[%c1_269, %c7_270, %c0_271, %c0_272] : memref<2x8x8x8xf32, #tpu.memory_space<vmem>>, vector<1x1x8x8xf32>
    %635 = vector.shape_cast %634 : vector<1x1x8x8xf32> to vector<8x8xf32>
    %636 = vector.broadcast %633 : vector<1x1xf32> to vector<8x8xf32>
    %637 = arith.mulf %636, %635 : vector<8x8xf32>
    %638 = arith.addf %632, %637 : vector<8x8xf32>
    %cst_273 = arith.constant dense<0.000000e+00> : vector<8x256xf32>
    %639 = tpu.matmul %638, %484, %cst_273 {dimension_numbers = #tpu.dot_dimension_numbers<[1], [0], [0], [1], [0, 0, 1, 1], [], []>} : vector<8x8xf32>, vector<8x256xf32>, vector<8x256xf32> -> vector<8x256xf32>
    %640 = arith.subf %639, %588 : vector<8x256xf32>
    %641 = vector.broadcast %482 : vector<1x256xf32> to vector<8x256xf32>
    %642 = arith.mulf %641, %640 : vector<8x256xf32>
    %643 = arith.addf %588, %642 : vector<8x256xf32>
    %cst_274 = arith.constant dense<0.000000e+00> : vector<8xf32>
    %644 = vector.multi_reduction <add>, %643, %cst_274 [1] : vector<8x256xf32> to vector<8xf32>
    %645 = vector.shape_cast %644 : vector<8xf32> to vector<8x1xf32>
    %646 = arith.mulf %643, %643 : vector<8x256xf32>
    %cst_275 = arith.constant dense<0.000000e+00> : vector<8xf32>
    %647 = vector.multi_reduction <add>, %646, %cst_275 [1] : vector<8x256xf32> to vector<8xf32>
    %648 = vector.shape_cast %647 : vector<8xf32> to vector<8x1xf32>
    %c0_276 = arith.constant 0 : index
    %c0_277 = arith.constant 0 : index
    %649 = vector.load %arg11[%c0_276, %c0_277] : memref<8x8xf32, #tpu.memory_space<vmem>>, vector<8x8xf32>
    %cst_278 = arith.constant 0.000000e+00 : f32
    %650 = vector.broadcast %cst_278 : f32 to vector<8x1xf32>
    %cst_279 = arith.constant 0.000000e+00 : f32
    %651 = vector.broadcast %cst_279 : f32 to vector<8x1xf32>
    %652 = vector.extract_strided_slice %649 {offsets = [0, 0], sizes = [8, 1], strides = [1, 1]} : vector<8x8xf32> to vector<8x1xf32>
    %653 = vector.extract_strided_slice %645 {offsets = [0, 0], sizes = [1, 1], strides = [1, 1]} : vector<8x1xf32> to vector<1x1xf32>
    %654 = vector.broadcast %653 : vector<1x1xf32> to vector<8x1xf32>
    %655 = arith.mulf %652, %654 : vector<8x1xf32>
    %656 = arith.addf %650, %655 : vector<8x1xf32>
    %657 = vector.extract_strided_slice %648 {offsets = [0, 0], sizes = [1, 1], strides = [1, 1]} : vector<8x1xf32> to vector<1x1xf32>
    %658 = vector.broadcast %657 : vector<1x1xf32> to vector<8x1xf32>
    %659 = arith.mulf %652, %658 : vector<8x1xf32>
    %660 = arith.addf %651, %659 : vector<8x1xf32>
    %661 = vector.extract_strided_slice %649 {offsets = [0, 1], sizes = [8, 1], strides = [1, 1]} : vector<8x8xf32> to vector<8x1xf32>
    %662 = vector.extract_strided_slice %645 {offsets = [1, 0], sizes = [1, 1], strides = [1, 1]} : vector<8x1xf32> to vector<1x1xf32>
    %663 = vector.broadcast %662 : vector<1x1xf32> to vector<8x1xf32>
    %664 = arith.mulf %661, %663 : vector<8x1xf32>
    %665 = arith.addf %656, %664 : vector<8x1xf32>
    %666 = vector.extract_strided_slice %648 {offsets = [1, 0], sizes = [1, 1], strides = [1, 1]} : vector<8x1xf32> to vector<1x1xf32>
    %667 = vector.broadcast %666 : vector<1x1xf32> to vector<8x1xf32>
    %668 = arith.mulf %661, %667 : vector<8x1xf32>
    %669 = arith.addf %660, %668 : vector<8x1xf32>
    %670 = vector.extract_strided_slice %649 {offsets = [0, 2], sizes = [8, 1], strides = [1, 1]} : vector<8x8xf32> to vector<8x1xf32>
    %671 = vector.extract_strided_slice %645 {offsets = [2, 0], sizes = [1, 1], strides = [1, 1]} : vector<8x1xf32> to vector<1x1xf32>
    %672 = vector.broadcast %671 : vector<1x1xf32> to vector<8x1xf32>
    %673 = arith.mulf %670, %672 : vector<8x1xf32>
    %674 = arith.addf %665, %673 : vector<8x1xf32>
    %675 = vector.extract_strided_slice %648 {offsets = [2, 0], sizes = [1, 1], strides = [1, 1]} : vector<8x1xf32> to vector<1x1xf32>
    %676 = vector.broadcast %675 : vector<1x1xf32> to vector<8x1xf32>
    %677 = arith.mulf %670, %676 : vector<8x1xf32>
    %678 = arith.addf %669, %677 : vector<8x1xf32>
    %679 = vector.extract_strided_slice %649 {offsets = [0, 3], sizes = [8, 1], strides = [1, 1]} : vector<8x8xf32> to vector<8x1xf32>
    %680 = vector.extract_strided_slice %645 {offsets = [3, 0], sizes = [1, 1], strides = [1, 1]} : vector<8x1xf32> to vector<1x1xf32>
    %681 = vector.broadcast %680 : vector<1x1xf32> to vector<8x1xf32>
    %682 = arith.mulf %679, %681 : vector<8x1xf32>
    %683 = arith.addf %674, %682 : vector<8x1xf32>
    %684 = vector.extract_strided_slice %648 {offsets = [3, 0], sizes = [1, 1], strides = [1, 1]} : vector<8x1xf32> to vector<1x1xf32>
    %685 = vector.broadcast %684 : vector<1x1xf32> to vector<8x1xf32>
    %686 = arith.mulf %679, %685 : vector<8x1xf32>
    %687 = arith.addf %678, %686 : vector<8x1xf32>
    %688 = vector.extract_strided_slice %649 {offsets = [0, 4], sizes = [8, 1], strides = [1, 1]} : vector<8x8xf32> to vector<8x1xf32>
    %689 = vector.extract_strided_slice %645 {offsets = [4, 0], sizes = [1, 1], strides = [1, 1]} : vector<8x1xf32> to vector<1x1xf32>
    %690 = vector.broadcast %689 : vector<1x1xf32> to vector<8x1xf32>
    %691 = arith.mulf %688, %690 : vector<8x1xf32>
    %692 = arith.addf %683, %691 : vector<8x1xf32>
    %693 = vector.extract_strided_slice %648 {offsets = [4, 0], sizes = [1, 1], strides = [1, 1]} : vector<8x1xf32> to vector<1x1xf32>
    %694 = vector.broadcast %693 : vector<1x1xf32> to vector<8x1xf32>
    %695 = arith.mulf %688, %694 : vector<8x1xf32>
    %696 = arith.addf %687, %695 : vector<8x1xf32>
    %697 = vector.extract_strided_slice %649 {offsets = [0, 5], sizes = [8, 1], strides = [1, 1]} : vector<8x8xf32> to vector<8x1xf32>
    %698 = vector.extract_strided_slice %645 {offsets = [5, 0], sizes = [1, 1], strides = [1, 1]} : vector<8x1xf32> to vector<1x1xf32>
    %699 = vector.broadcast %698 : vector<1x1xf32> to vector<8x1xf32>
    %700 = arith.mulf %697, %699 : vector<8x1xf32>
    %701 = arith.addf %692, %700 : vector<8x1xf32>
    %702 = vector.extract_strided_slice %648 {offsets = [5, 0], sizes = [1, 1], strides = [1, 1]} : vector<8x1xf32> to vector<1x1xf32>
    %703 = vector.broadcast %702 : vector<1x1xf32> to vector<8x1xf32>
    %704 = arith.mulf %697, %703 : vector<8x1xf32>
    %705 = arith.addf %696, %704 : vector<8x1xf32>
    %706 = vector.extract_strided_slice %649 {offsets = [0, 6], sizes = [8, 1], strides = [1, 1]} : vector<8x8xf32> to vector<8x1xf32>
    %707 = vector.extract_strided_slice %645 {offsets = [6, 0], sizes = [1, 1], strides = [1, 1]} : vector<8x1xf32> to vector<1x1xf32>
    %708 = vector.broadcast %707 : vector<1x1xf32> to vector<8x1xf32>
    %709 = arith.mulf %706, %708 : vector<8x1xf32>
    %710 = arith.addf %701, %709 : vector<8x1xf32>
    %711 = vector.extract_strided_slice %648 {offsets = [6, 0], sizes = [1, 1], strides = [1, 1]} : vector<8x1xf32> to vector<1x1xf32>
    %712 = vector.broadcast %711 : vector<1x1xf32> to vector<8x1xf32>
    %713 = arith.mulf %706, %712 : vector<8x1xf32>
    %714 = arith.addf %705, %713 : vector<8x1xf32>
    %715 = vector.extract_strided_slice %649 {offsets = [0, 7], sizes = [8, 1], strides = [1, 1]} : vector<8x8xf32> to vector<8x1xf32>
    %716 = vector.extract_strided_slice %645 {offsets = [7, 0], sizes = [1, 1], strides = [1, 1]} : vector<8x1xf32> to vector<1x1xf32>
    %717 = vector.broadcast %716 : vector<1x1xf32> to vector<8x1xf32>
    %718 = arith.mulf %715, %717 : vector<8x1xf32>
    %719 = arith.addf %710, %718 : vector<8x1xf32>
    %720 = vector.extract_strided_slice %648 {offsets = [7, 0], sizes = [1, 1], strides = [1, 1]} : vector<8x1xf32> to vector<1x1xf32>
    %721 = vector.broadcast %720 : vector<1x1xf32> to vector<8x1xf32>
    %722 = arith.mulf %715, %721 : vector<8x1xf32>
    %723 = arith.addf %714, %722 : vector<8x1xf32>
    %cst_280 = arith.constant 3.906250e-03 : f32
    %724 = vector.broadcast %cst_280 : f32 to vector<8x1xf32>
    %725 = arith.mulf %719, %724 : vector<8x1xf32>
    %cst_281 = arith.constant 3.906250e-03 : f32
    %726 = vector.broadcast %cst_281 : f32 to vector<8x1xf32>
    %727 = arith.mulf %723, %726 : vector<8x1xf32>
    %728 = arith.mulf %725, %725 : vector<8x1xf32>
    %729 = arith.subf %727, %728 : vector<8x1xf32>
    %cst_282 = arith.constant 0.000000e+00 : f32
    %730 = vector.broadcast %cst_282 : f32 to vector<8x1xf32>
    %731 = arith.maximumf %729, %730 : vector<8x1xf32>
    %cst_283 = arith.constant 9.99999974E-6 : f32
    %732 = vector.broadcast %cst_283 : f32 to vector<8x1xf32>
    %733 = arith.addf %731, %732 : vector<8x1xf32>
    %734 = math.rsqrt %733 : vector<8x1xf32>
    %735 = vector.broadcast %725 : vector<8x1xf32> to vector<8x256xf32>
    %736 = arith.subf %643, %735 : vector<8x256xf32>
    %737 = vector.broadcast %734 : vector<8x1xf32> to vector<8x256xf32>
    %738 = arith.mulf %736, %737 : vector<8x256xf32>
    %c0_284 = arith.constant 0 : index
    %c0_285 = arith.constant 0 : index
    %739 = vector.load %arg9[%c0_284, %c0_285] : memref<8x1xf32, #tpu.memory_space<vmem>>, vector<8x1xf32>
    %740 = vector.broadcast %739 : vector<8x1xf32> to vector<8x256xf32>
    %741 = arith.mulf %738, %740 : vector<8x256xf32>
    %c0_286 = arith.constant 0 : index
    %c0_287 = arith.constant 0 : index
    %742 = vector.load %arg10[%c0_286, %c0_287] : memref<8x1xf32, #tpu.memory_space<vmem>>, vector<8x1xf32>
    %743 = vector.broadcast %742 : vector<8x1xf32> to vector<8x256xf32>
    %744 = arith.addf %741, %743 : vector<8x256xf32>
    %cst_288 = arith.constant 0.000000e+00 : f32
    %745 = vector.broadcast %cst_288 : f32 to vector<8x256xf32>
    %746 = arith.maximumf %744, %745 : vector<8x256xf32>
    %cst_289 = arith.constant dense<0.000000e+00> : vector<8xf32>
    %747 = vector.multi_reduction <add>, %746, %cst_289 [1] : vector<8x256xf32> to vector<8xf32>
    %748 = vector.shape_cast %747 : vector<8xf32> to vector<8x1xf32>
    %cst_290 = arith.constant 3.906250e-03 : f32
    %749 = vector.broadcast %cst_290 : f32 to vector<8x1xf32>
    %750 = arith.mulf %748, %749 : vector<8x1xf32>
    %c0_291 = arith.constant 0 : index
    %c0_292 = arith.constant 0 : index
    %751 = vector.load %arg12[%c0_291, %c0_292] : memref<16x8xf32, #tpu.memory_space<vmem>>, vector<16x8xf32>
    %c0_293 = arith.constant 0 : index
    %c0_294 = arith.constant 0 : index
    %752 = vector.load %arg13[%c0_293, %c0_294] : memref<16x1xf32, #tpu.memory_space<vmem>>, vector<16x1xf32>
    %753 = vector.extract_strided_slice %751 {offsets = [0, 0], sizes = [16, 1], strides = [1, 1]} : vector<16x8xf32> to vector<16x1xf32>
    %754 = vector.extract_strided_slice %750 {offsets = [0, 0], sizes = [1, 1], strides = [1, 1]} : vector<8x1xf32> to vector<1x1xf32>
    %755 = vector.broadcast %754 : vector<1x1xf32> to vector<16x1xf32>
    %756 = arith.mulf %753, %755 : vector<16x1xf32>
    %757 = arith.addf %752, %756 : vector<16x1xf32>
    %758 = vector.extract_strided_slice %751 {offsets = [0, 1], sizes = [16, 1], strides = [1, 1]} : vector<16x8xf32> to vector<16x1xf32>
    %759 = vector.extract_strided_slice %750 {offsets = [1, 0], sizes = [1, 1], strides = [1, 1]} : vector<8x1xf32> to vector<1x1xf32>
    %760 = vector.broadcast %759 : vector<1x1xf32> to vector<16x1xf32>
    %761 = arith.mulf %758, %760 : vector<16x1xf32>
    %762 = arith.addf %757, %761 : vector<16x1xf32>
    %763 = vector.extract_strided_slice %751 {offsets = [0, 2], sizes = [16, 1], strides = [1, 1]} : vector<16x8xf32> to vector<16x1xf32>
    %764 = vector.extract_strided_slice %750 {offsets = [2, 0], sizes = [1, 1], strides = [1, 1]} : vector<8x1xf32> to vector<1x1xf32>
    %765 = vector.broadcast %764 : vector<1x1xf32> to vector<16x1xf32>
    %766 = arith.mulf %763, %765 : vector<16x1xf32>
    %767 = arith.addf %762, %766 : vector<16x1xf32>
    %768 = vector.extract_strided_slice %751 {offsets = [0, 3], sizes = [16, 1], strides = [1, 1]} : vector<16x8xf32> to vector<16x1xf32>
    %769 = vector.extract_strided_slice %750 {offsets = [3, 0], sizes = [1, 1], strides = [1, 1]} : vector<8x1xf32> to vector<1x1xf32>
    %770 = vector.broadcast %769 : vector<1x1xf32> to vector<16x1xf32>
    %771 = arith.mulf %768, %770 : vector<16x1xf32>
    %772 = arith.addf %767, %771 : vector<16x1xf32>
    %773 = vector.extract_strided_slice %751 {offsets = [0, 4], sizes = [16, 1], strides = [1, 1]} : vector<16x8xf32> to vector<16x1xf32>
    %774 = vector.extract_strided_slice %750 {offsets = [4, 0], sizes = [1, 1], strides = [1, 1]} : vector<8x1xf32> to vector<1x1xf32>
    %775 = vector.broadcast %774 : vector<1x1xf32> to vector<16x1xf32>
    %776 = arith.mulf %773, %775 : vector<16x1xf32>
    %777 = arith.addf %772, %776 : vector<16x1xf32>
    %778 = vector.extract_strided_slice %751 {offsets = [0, 5], sizes = [16, 1], strides = [1, 1]} : vector<16x8xf32> to vector<16x1xf32>
    %779 = vector.extract_strided_slice %750 {offsets = [5, 0], sizes = [1, 1], strides = [1, 1]} : vector<8x1xf32> to vector<1x1xf32>
    %780 = vector.broadcast %779 : vector<1x1xf32> to vector<16x1xf32>
    %781 = arith.mulf %778, %780 : vector<16x1xf32>
    %782 = arith.addf %777, %781 : vector<16x1xf32>
    %783 = vector.extract_strided_slice %751 {offsets = [0, 6], sizes = [16, 1], strides = [1, 1]} : vector<16x8xf32> to vector<16x1xf32>
    %784 = vector.extract_strided_slice %750 {offsets = [6, 0], sizes = [1, 1], strides = [1, 1]} : vector<8x1xf32> to vector<1x1xf32>
    %785 = vector.broadcast %784 : vector<1x1xf32> to vector<16x1xf32>
    %786 = arith.mulf %783, %785 : vector<16x1xf32>
    %787 = arith.addf %782, %786 : vector<16x1xf32>
    %788 = vector.extract_strided_slice %751 {offsets = [0, 7], sizes = [16, 1], strides = [1, 1]} : vector<16x8xf32> to vector<16x1xf32>
    %789 = vector.extract_strided_slice %750 {offsets = [7, 0], sizes = [1, 1], strides = [1, 1]} : vector<8x1xf32> to vector<1x1xf32>
    %790 = vector.broadcast %789 : vector<1x1xf32> to vector<16x1xf32>
    %791 = arith.mulf %788, %790 : vector<16x1xf32>
    %792 = arith.addf %787, %791 : vector<16x1xf32>
    %cst_295 = arith.constant 0.000000e+00 : f32
    %793 = vector.broadcast %cst_295 : f32 to vector<16x1xf32>
    %794 = arith.subf %793, %792 : vector<16x1xf32>
    %795 = math.exp %794 : vector<16x1xf32>
    %cst_296 = arith.constant 1.000000e+00 : f32
    %796 = vector.broadcast %cst_296 : f32 to vector<16x1xf32>
    %797 = arith.addf %796, %795 : vector<16x1xf32>
    %cst_297 = arith.constant 1.000000e+00 : f32
    %798 = vector.broadcast %cst_297 : f32 to vector<16x1xf32>
    %799 = arith.divf %798, %797 : vector<16x1xf32>
    %c0_298 = arith.constant 0 : index
    %c0_299 = arith.constant 0 : index
    %c0_300 = arith.constant 0 : index
    %800 = vector.load %arg15[%c0_298, %c0_299, %c0_300] : memref<2x8x8xf32, #tpu.memory_space<vmem>>, vector<1x8x8xf32>
    %801 = vector.shape_cast %800 : vector<1x8x8xf32> to vector<8x8xf32>
    %802 = vector.extract_strided_slice %799 {offsets = [0, 0], sizes = [1, 1], strides = [1, 1]} : vector<16x1xf32> to vector<1x1xf32>
    %c0_301 = arith.constant 0 : index
    %c0_302 = arith.constant 0 : index
    %c0_303 = arith.constant 0 : index
    %c0_304 = arith.constant 0 : index
    %803 = vector.load %arg14[%c0_301, %c0_302, %c0_303, %c0_304] : memref<2x8x8x8xf32, #tpu.memory_space<vmem>>, vector<1x1x8x8xf32>
    %804 = vector.shape_cast %803 : vector<1x1x8x8xf32> to vector<8x8xf32>
    %805 = vector.broadcast %802 : vector<1x1xf32> to vector<8x8xf32>
    %806 = arith.mulf %805, %804 : vector<8x8xf32>
    %807 = arith.addf %801, %806 : vector<8x8xf32>
    %808 = vector.extract_strided_slice %799 {offsets = [1, 0], sizes = [1, 1], strides = [1, 1]} : vector<16x1xf32> to vector<1x1xf32>
    %c0_305 = arith.constant 0 : index
    %c1_306 = arith.constant 1 : index
    %c0_307 = arith.constant 0 : index
    %c0_308 = arith.constant 0 : index
    %809 = vector.load %arg14[%c0_305, %c1_306, %c0_307, %c0_308] : memref<2x8x8x8xf32, #tpu.memory_space<vmem>>, vector<1x1x8x8xf32>
    %810 = vector.shape_cast %809 : vector<1x1x8x8xf32> to vector<8x8xf32>
    %811 = vector.broadcast %808 : vector<1x1xf32> to vector<8x8xf32>
    %812 = arith.mulf %811, %810 : vector<8x8xf32>
    %813 = arith.addf %807, %812 : vector<8x8xf32>
    %814 = vector.extract_strided_slice %799 {offsets = [2, 0], sizes = [1, 1], strides = [1, 1]} : vector<16x1xf32> to vector<1x1xf32>
    %c0_309 = arith.constant 0 : index
    %c2_310 = arith.constant 2 : index
    %c0_311 = arith.constant 0 : index
    %c0_312 = arith.constant 0 : index
    %815 = vector.load %arg14[%c0_309, %c2_310, %c0_311, %c0_312] : memref<2x8x8x8xf32, #tpu.memory_space<vmem>>, vector<1x1x8x8xf32>
    %816 = vector.shape_cast %815 : vector<1x1x8x8xf32> to vector<8x8xf32>
    %817 = vector.broadcast %814 : vector<1x1xf32> to vector<8x8xf32>
    %818 = arith.mulf %817, %816 : vector<8x8xf32>
    %819 = arith.addf %813, %818 : vector<8x8xf32>
    %820 = vector.extract_strided_slice %799 {offsets = [3, 0], sizes = [1, 1], strides = [1, 1]} : vector<16x1xf32> to vector<1x1xf32>
    %c0_313 = arith.constant 0 : index
    %c3_314 = arith.constant 3 : index
    %c0_315 = arith.constant 0 : index
    %c0_316 = arith.constant 0 : index
    %821 = vector.load %arg14[%c0_313, %c3_314, %c0_315, %c0_316] : memref<2x8x8x8xf32, #tpu.memory_space<vmem>>, vector<1x1x8x8xf32>
    %822 = vector.shape_cast %821 : vector<1x1x8x8xf32> to vector<8x8xf32>
    %823 = vector.broadcast %820 : vector<1x1xf32> to vector<8x8xf32>
    %824 = arith.mulf %823, %822 : vector<8x8xf32>
    %825 = arith.addf %819, %824 : vector<8x8xf32>
    %826 = vector.extract_strided_slice %799 {offsets = [4, 0], sizes = [1, 1], strides = [1, 1]} : vector<16x1xf32> to vector<1x1xf32>
    %c0_317 = arith.constant 0 : index
    %c4_318 = arith.constant 4 : index
    %c0_319 = arith.constant 0 : index
    %c0_320 = arith.constant 0 : index
    %827 = vector.load %arg14[%c0_317, %c4_318, %c0_319, %c0_320] : memref<2x8x8x8xf32, #tpu.memory_space<vmem>>, vector<1x1x8x8xf32>
    %828 = vector.shape_cast %827 : vector<1x1x8x8xf32> to vector<8x8xf32>
    %829 = vector.broadcast %826 : vector<1x1xf32> to vector<8x8xf32>
    %830 = arith.mulf %829, %828 : vector<8x8xf32>
    %831 = arith.addf %825, %830 : vector<8x8xf32>
    %832 = vector.extract_strided_slice %799 {offsets = [5, 0], sizes = [1, 1], strides = [1, 1]} : vector<16x1xf32> to vector<1x1xf32>
    %c0_321 = arith.constant 0 : index
    %c5_322 = arith.constant 5 : index
    %c0_323 = arith.constant 0 : index
    %c0_324 = arith.constant 0 : index
    %833 = vector.load %arg14[%c0_321, %c5_322, %c0_323, %c0_324] : memref<2x8x8x8xf32, #tpu.memory_space<vmem>>, vector<1x1x8x8xf32>
    %834 = vector.shape_cast %833 : vector<1x1x8x8xf32> to vector<8x8xf32>
    %835 = vector.broadcast %832 : vector<1x1xf32> to vector<8x8xf32>
    %836 = arith.mulf %835, %834 : vector<8x8xf32>
    %837 = arith.addf %831, %836 : vector<8x8xf32>
    %838 = vector.extract_strided_slice %799 {offsets = [6, 0], sizes = [1, 1], strides = [1, 1]} : vector<16x1xf32> to vector<1x1xf32>
    %c0_325 = arith.constant 0 : index
    %c6_326 = arith.constant 6 : index
    %c0_327 = arith.constant 0 : index
    %c0_328 = arith.constant 0 : index
    %839 = vector.load %arg14[%c0_325, %c6_326, %c0_327, %c0_328] : memref<2x8x8x8xf32, #tpu.memory_space<vmem>>, vector<1x1x8x8xf32>
    %840 = vector.shape_cast %839 : vector<1x1x8x8xf32> to vector<8x8xf32>
    %841 = vector.broadcast %838 : vector<1x1xf32> to vector<8x8xf32>
    %842 = arith.mulf %841, %840 : vector<8x8xf32>
    %843 = arith.addf %837, %842 : vector<8x8xf32>
    %844 = vector.extract_strided_slice %799 {offsets = [7, 0], sizes = [1, 1], strides = [1, 1]} : vector<16x1xf32> to vector<1x1xf32>
    %c0_329 = arith.constant 0 : index
    %c7_330 = arith.constant 7 : index
    %c0_331 = arith.constant 0 : index
    %c0_332 = arith.constant 0 : index
    %845 = vector.load %arg14[%c0_329, %c7_330, %c0_331, %c0_332] : memref<2x8x8x8xf32, #tpu.memory_space<vmem>>, vector<1x1x8x8xf32>
    %846 = vector.shape_cast %845 : vector<1x1x8x8xf32> to vector<8x8xf32>
    %847 = vector.broadcast %844 : vector<1x1xf32> to vector<8x8xf32>
    %848 = arith.mulf %847, %846 : vector<8x8xf32>
    %849 = arith.addf %843, %848 : vector<8x8xf32>
    %cst_333 = arith.constant dense<0.000000e+00> : vector<8x256xf32>
    %850 = tpu.matmul %849, %746, %cst_333 {dimension_numbers = #tpu.dot_dimension_numbers<[1], [0], [0], [1], [0, 0, 1, 1], [], []>} : vector<8x8xf32>, vector<8x256xf32>, vector<8x256xf32> -> vector<8x256xf32>
    %c1_334 = arith.constant 1 : index
    %c0_335 = arith.constant 0 : index
    %c0_336 = arith.constant 0 : index
    %851 = vector.load %arg15[%c1_334, %c0_335, %c0_336] : memref<2x8x8xf32, #tpu.memory_space<vmem>>, vector<1x8x8xf32>
    %852 = vector.shape_cast %851 : vector<1x8x8xf32> to vector<8x8xf32>
    %853 = vector.extract_strided_slice %799 {offsets = [8, 0], sizes = [1, 1], strides = [1, 1]} : vector<16x1xf32> to vector<1x1xf32>
    %c1_337 = arith.constant 1 : index
    %c0_338 = arith.constant 0 : index
    %c0_339 = arith.constant 0 : index
    %c0_340 = arith.constant 0 : index
    %854 = vector.load %arg14[%c1_337, %c0_338, %c0_339, %c0_340] : memref<2x8x8x8xf32, #tpu.memory_space<vmem>>, vector<1x1x8x8xf32>
    %855 = vector.shape_cast %854 : vector<1x1x8x8xf32> to vector<8x8xf32>
    %856 = vector.broadcast %853 : vector<1x1xf32> to vector<8x8xf32>
    %857 = arith.mulf %856, %855 : vector<8x8xf32>
    %858 = arith.addf %852, %857 : vector<8x8xf32>
    %859 = vector.extract_strided_slice %799 {offsets = [9, 0], sizes = [1, 1], strides = [1, 1]} : vector<16x1xf32> to vector<1x1xf32>
    %c1_341 = arith.constant 1 : index
    %c1_342 = arith.constant 1 : index
    %c0_343 = arith.constant 0 : index
    %c0_344 = arith.constant 0 : index
    %860 = vector.load %arg14[%c1_341, %c1_342, %c0_343, %c0_344] : memref<2x8x8x8xf32, #tpu.memory_space<vmem>>, vector<1x1x8x8xf32>
    %861 = vector.shape_cast %860 : vector<1x1x8x8xf32> to vector<8x8xf32>
    %862 = vector.broadcast %859 : vector<1x1xf32> to vector<8x8xf32>
    %863 = arith.mulf %862, %861 : vector<8x8xf32>
    %864 = arith.addf %858, %863 : vector<8x8xf32>
    %865 = vector.extract_strided_slice %799 {offsets = [10, 0], sizes = [1, 1], strides = [1, 1]} : vector<16x1xf32> to vector<1x1xf32>
    %c1_345 = arith.constant 1 : index
    %c2_346 = arith.constant 2 : index
    %c0_347 = arith.constant 0 : index
    %c0_348 = arith.constant 0 : index
    %866 = vector.load %arg14[%c1_345, %c2_346, %c0_347, %c0_348] : memref<2x8x8x8xf32, #tpu.memory_space<vmem>>, vector<1x1x8x8xf32>
    %867 = vector.shape_cast %866 : vector<1x1x8x8xf32> to vector<8x8xf32>
    %868 = vector.broadcast %865 : vector<1x1xf32> to vector<8x8xf32>
    %869 = arith.mulf %868, %867 : vector<8x8xf32>
    %870 = arith.addf %864, %869 : vector<8x8xf32>
    %871 = vector.extract_strided_slice %799 {offsets = [11, 0], sizes = [1, 1], strides = [1, 1]} : vector<16x1xf32> to vector<1x1xf32>
    %c1_349 = arith.constant 1 : index
    %c3_350 = arith.constant 3 : index
    %c0_351 = arith.constant 0 : index
    %c0_352 = arith.constant 0 : index
    %872 = vector.load %arg14[%c1_349, %c3_350, %c0_351, %c0_352] : memref<2x8x8x8xf32, #tpu.memory_space<vmem>>, vector<1x1x8x8xf32>
    %873 = vector.shape_cast %872 : vector<1x1x8x8xf32> to vector<8x8xf32>
    %874 = vector.broadcast %871 : vector<1x1xf32> to vector<8x8xf32>
    %875 = arith.mulf %874, %873 : vector<8x8xf32>
    %876 = arith.addf %870, %875 : vector<8x8xf32>
    %877 = vector.extract_strided_slice %799 {offsets = [12, 0], sizes = [1, 1], strides = [1, 1]} : vector<16x1xf32> to vector<1x1xf32>
    %c1_353 = arith.constant 1 : index
    %c4_354 = arith.constant 4 : index
    %c0_355 = arith.constant 0 : index
    %c0_356 = arith.constant 0 : index
    %878 = vector.load %arg14[%c1_353, %c4_354, %c0_355, %c0_356] : memref<2x8x8x8xf32, #tpu.memory_space<vmem>>, vector<1x1x8x8xf32>
    %879 = vector.shape_cast %878 : vector<1x1x8x8xf32> to vector<8x8xf32>
    %880 = vector.broadcast %877 : vector<1x1xf32> to vector<8x8xf32>
    %881 = arith.mulf %880, %879 : vector<8x8xf32>
    %882 = arith.addf %876, %881 : vector<8x8xf32>
    %883 = vector.extract_strided_slice %799 {offsets = [13, 0], sizes = [1, 1], strides = [1, 1]} : vector<16x1xf32> to vector<1x1xf32>
    %c1_357 = arith.constant 1 : index
    %c5_358 = arith.constant 5 : index
    %c0_359 = arith.constant 0 : index
    %c0_360 = arith.constant 0 : index
    %884 = vector.load %arg14[%c1_357, %c5_358, %c0_359, %c0_360] : memref<2x8x8x8xf32, #tpu.memory_space<vmem>>, vector<1x1x8x8xf32>
    %885 = vector.shape_cast %884 : vector<1x1x8x8xf32> to vector<8x8xf32>
    %886 = vector.broadcast %883 : vector<1x1xf32> to vector<8x8xf32>
    %887 = arith.mulf %886, %885 : vector<8x8xf32>
    %888 = arith.addf %882, %887 : vector<8x8xf32>
    %889 = vector.extract_strided_slice %799 {offsets = [14, 0], sizes = [1, 1], strides = [1, 1]} : vector<16x1xf32> to vector<1x1xf32>
    %c1_361 = arith.constant 1 : index
    %c6_362 = arith.constant 6 : index
    %c0_363 = arith.constant 0 : index
    %c0_364 = arith.constant 0 : index
    %890 = vector.load %arg14[%c1_361, %c6_362, %c0_363, %c0_364] : memref<2x8x8x8xf32, #tpu.memory_space<vmem>>, vector<1x1x8x8xf32>
    %891 = vector.shape_cast %890 : vector<1x1x8x8xf32> to vector<8x8xf32>
    %892 = vector.broadcast %889 : vector<1x1xf32> to vector<8x8xf32>
    %893 = arith.mulf %892, %891 : vector<8x8xf32>
    %894 = arith.addf %888, %893 : vector<8x8xf32>
    %895 = vector.extract_strided_slice %799 {offsets = [15, 0], sizes = [1, 1], strides = [1, 1]} : vector<16x1xf32> to vector<1x1xf32>
    %c1_365 = arith.constant 1 : index
    %c7_366 = arith.constant 7 : index
    %c0_367 = arith.constant 0 : index
    %c0_368 = arith.constant 0 : index
    %896 = vector.load %arg14[%c1_365, %c7_366, %c0_367, %c0_368] : memref<2x8x8x8xf32, #tpu.memory_space<vmem>>, vector<1x1x8x8xf32>
    %897 = vector.shape_cast %896 : vector<1x1x8x8xf32> to vector<8x8xf32>
    %898 = vector.broadcast %895 : vector<1x1xf32> to vector<8x8xf32>
    %899 = arith.mulf %898, %897 : vector<8x8xf32>
    %900 = arith.addf %894, %899 : vector<8x8xf32>
    %cst_369 = arith.constant dense<0.000000e+00> : vector<8x256xf32>
    %901 = tpu.matmul %900, %746, %cst_369 {dimension_numbers = #tpu.dot_dimension_numbers<[1], [0], [0], [1], [0, 0, 1, 1], [], []>} : vector<8x8xf32>, vector<8x256xf32>, vector<8x256xf32> -> vector<8x256xf32>
    %902 = arith.subf %901, %850 : vector<8x256xf32>
    %903 = vector.broadcast %482 : vector<1x256xf32> to vector<8x256xf32>
    %904 = arith.mulf %903, %902 : vector<8x256xf32>
    %905 = arith.addf %850, %904 : vector<8x256xf32>
    %cst_370 = arith.constant dense<0.000000e+00> : vector<8xf32>
    %906 = vector.multi_reduction <add>, %905, %cst_370 [1] : vector<8x256xf32> to vector<8xf32>
    %907 = vector.shape_cast %906 : vector<8xf32> to vector<8x1xf32>
    %908 = arith.mulf %905, %905 : vector<8x256xf32>
    %cst_371 = arith.constant dense<0.000000e+00> : vector<8xf32>
    %909 = vector.multi_reduction <add>, %908, %cst_371 [1] : vector<8x256xf32> to vector<8xf32>
    %910 = vector.shape_cast %909 : vector<8xf32> to vector<8x1xf32>
    %c0_372 = arith.constant 0 : index
    %c0_373 = arith.constant 0 : index
    %911 = vector.load %arg18[%c0_372, %c0_373] : memref<8x8xf32, #tpu.memory_space<vmem>>, vector<8x8xf32>
    %cst_374 = arith.constant 0.000000e+00 : f32
    %912 = vector.broadcast %cst_374 : f32 to vector<8x1xf32>
    %cst_375 = arith.constant 0.000000e+00 : f32
    %913 = vector.broadcast %cst_375 : f32 to vector<8x1xf32>
    %914 = vector.extract_strided_slice %911 {offsets = [0, 0], sizes = [8, 1], strides = [1, 1]} : vector<8x8xf32> to vector<8x1xf32>
    %915 = vector.extract_strided_slice %907 {offsets = [0, 0], sizes = [1, 1], strides = [1, 1]} : vector<8x1xf32> to vector<1x1xf32>
    %916 = vector.broadcast %915 : vector<1x1xf32> to vector<8x1xf32>
    %917 = arith.mulf %914, %916 : vector<8x1xf32>
    %918 = arith.addf %912, %917 : vector<8x1xf32>
    %919 = vector.extract_strided_slice %910 {offsets = [0, 0], sizes = [1, 1], strides = [1, 1]} : vector<8x1xf32> to vector<1x1xf32>
    %920 = vector.broadcast %919 : vector<1x1xf32> to vector<8x1xf32>
    %921 = arith.mulf %914, %920 : vector<8x1xf32>
    %922 = arith.addf %913, %921 : vector<8x1xf32>
    %923 = vector.extract_strided_slice %911 {offsets = [0, 1], sizes = [8, 1], strides = [1, 1]} : vector<8x8xf32> to vector<8x1xf32>
    %924 = vector.extract_strided_slice %907 {offsets = [1, 0], sizes = [1, 1], strides = [1, 1]} : vector<8x1xf32> to vector<1x1xf32>
    %925 = vector.broadcast %924 : vector<1x1xf32> to vector<8x1xf32>
    %926 = arith.mulf %923, %925 : vector<8x1xf32>
    %927 = arith.addf %918, %926 : vector<8x1xf32>
    %928 = vector.extract_strided_slice %910 {offsets = [1, 0], sizes = [1, 1], strides = [1, 1]} : vector<8x1xf32> to vector<1x1xf32>
    %929 = vector.broadcast %928 : vector<1x1xf32> to vector<8x1xf32>
    %930 = arith.mulf %923, %929 : vector<8x1xf32>
    %931 = arith.addf %922, %930 : vector<8x1xf32>
    %932 = vector.extract_strided_slice %911 {offsets = [0, 2], sizes = [8, 1], strides = [1, 1]} : vector<8x8xf32> to vector<8x1xf32>
    %933 = vector.extract_strided_slice %907 {offsets = [2, 0], sizes = [1, 1], strides = [1, 1]} : vector<8x1xf32> to vector<1x1xf32>
    %934 = vector.broadcast %933 : vector<1x1xf32> to vector<8x1xf32>
    %935 = arith.mulf %932, %934 : vector<8x1xf32>
    %936 = arith.addf %927, %935 : vector<8x1xf32>
    %937 = vector.extract_strided_slice %910 {offsets = [2, 0], sizes = [1, 1], strides = [1, 1]} : vector<8x1xf32> to vector<1x1xf32>
    %938 = vector.broadcast %937 : vector<1x1xf32> to vector<8x1xf32>
    %939 = arith.mulf %932, %938 : vector<8x1xf32>
    %940 = arith.addf %931, %939 : vector<8x1xf32>
    %941 = vector.extract_strided_slice %911 {offsets = [0, 3], sizes = [8, 1], strides = [1, 1]} : vector<8x8xf32> to vector<8x1xf32>
    %942 = vector.extract_strided_slice %907 {offsets = [3, 0], sizes = [1, 1], strides = [1, 1]} : vector<8x1xf32> to vector<1x1xf32>
    %943 = vector.broadcast %942 : vector<1x1xf32> to vector<8x1xf32>
    %944 = arith.mulf %941, %943 : vector<8x1xf32>
    %945 = arith.addf %936, %944 : vector<8x1xf32>
    %946 = vector.extract_strided_slice %910 {offsets = [3, 0], sizes = [1, 1], strides = [1, 1]} : vector<8x1xf32> to vector<1x1xf32>
    %947 = vector.broadcast %946 : vector<1x1xf32> to vector<8x1xf32>
    %948 = arith.mulf %941, %947 : vector<8x1xf32>
    %949 = arith.addf %940, %948 : vector<8x1xf32>
    %950 = vector.extract_strided_slice %911 {offsets = [0, 4], sizes = [8, 1], strides = [1, 1]} : vector<8x8xf32> to vector<8x1xf32>
    %951 = vector.extract_strided_slice %907 {offsets = [4, 0], sizes = [1, 1], strides = [1, 1]} : vector<8x1xf32> to vector<1x1xf32>
    %952 = vector.broadcast %951 : vector<1x1xf32> to vector<8x1xf32>
    %953 = arith.mulf %950, %952 : vector<8x1xf32>
    %954 = arith.addf %945, %953 : vector<8x1xf32>
    %955 = vector.extract_strided_slice %910 {offsets = [4, 0], sizes = [1, 1], strides = [1, 1]} : vector<8x1xf32> to vector<1x1xf32>
    %956 = vector.broadcast %955 : vector<1x1xf32> to vector<8x1xf32>
    %957 = arith.mulf %950, %956 : vector<8x1xf32>
    %958 = arith.addf %949, %957 : vector<8x1xf32>
    %959 = vector.extract_strided_slice %911 {offsets = [0, 5], sizes = [8, 1], strides = [1, 1]} : vector<8x8xf32> to vector<8x1xf32>
    %960 = vector.extract_strided_slice %907 {offsets = [5, 0], sizes = [1, 1], strides = [1, 1]} : vector<8x1xf32> to vector<1x1xf32>
    %961 = vector.broadcast %960 : vector<1x1xf32> to vector<8x1xf32>
    %962 = arith.mulf %959, %961 : vector<8x1xf32>
    %963 = arith.addf %954, %962 : vector<8x1xf32>
    %964 = vector.extract_strided_slice %910 {offsets = [5, 0], sizes = [1, 1], strides = [1, 1]} : vector<8x1xf32> to vector<1x1xf32>
    %965 = vector.broadcast %964 : vector<1x1xf32> to vector<8x1xf32>
    %966 = arith.mulf %959, %965 : vector<8x1xf32>
    %967 = arith.addf %958, %966 : vector<8x1xf32>
    %968 = vector.extract_strided_slice %911 {offsets = [0, 6], sizes = [8, 1], strides = [1, 1]} : vector<8x8xf32> to vector<8x1xf32>
    %969 = vector.extract_strided_slice %907 {offsets = [6, 0], sizes = [1, 1], strides = [1, 1]} : vector<8x1xf32> to vector<1x1xf32>
    %970 = vector.broadcast %969 : vector<1x1xf32> to vector<8x1xf32>
    %971 = arith.mulf %968, %970 : vector<8x1xf32>
    %972 = arith.addf %963, %971 : vector<8x1xf32>
    %973 = vector.extract_strided_slice %910 {offsets = [6, 0], sizes = [1, 1], strides = [1, 1]} : vector<8x1xf32> to vector<1x1xf32>
    %974 = vector.broadcast %973 : vector<1x1xf32> to vector<8x1xf32>
    %975 = arith.mulf %968, %974 : vector<8x1xf32>
    %976 = arith.addf %967, %975 : vector<8x1xf32>
    %977 = vector.extract_strided_slice %911 {offsets = [0, 7], sizes = [8, 1], strides = [1, 1]} : vector<8x8xf32> to vector<8x1xf32>
    %978 = vector.extract_strided_slice %907 {offsets = [7, 0], sizes = [1, 1], strides = [1, 1]} : vector<8x1xf32> to vector<1x1xf32>
    %979 = vector.broadcast %978 : vector<1x1xf32> to vector<8x1xf32>
    %980 = arith.mulf %977, %979 : vector<8x1xf32>
    %981 = arith.addf %972, %980 : vector<8x1xf32>
    %982 = vector.extract_strided_slice %910 {offsets = [7, 0], sizes = [1, 1], strides = [1, 1]} : vector<8x1xf32> to vector<1x1xf32>
    %983 = vector.broadcast %982 : vector<1x1xf32> to vector<8x1xf32>
    %984 = arith.mulf %977, %983 : vector<8x1xf32>
    %985 = arith.addf %976, %984 : vector<8x1xf32>
    %cst_376 = arith.constant 3.906250e-03 : f32
    %986 = vector.broadcast %cst_376 : f32 to vector<8x1xf32>
    %987 = arith.mulf %981, %986 : vector<8x1xf32>
    %cst_377 = arith.constant 3.906250e-03 : f32
    %988 = vector.broadcast %cst_377 : f32 to vector<8x1xf32>
    %989 = arith.mulf %985, %988 : vector<8x1xf32>
    %990 = arith.mulf %987, %987 : vector<8x1xf32>
    %991 = arith.subf %989, %990 : vector<8x1xf32>
    %cst_378 = arith.constant 0.000000e+00 : f32
    %992 = vector.broadcast %cst_378 : f32 to vector<8x1xf32>
    %993 = arith.maximumf %991, %992 : vector<8x1xf32>
    %cst_379 = arith.constant 9.99999974E-6 : f32
    %994 = vector.broadcast %cst_379 : f32 to vector<8x1xf32>
    %995 = arith.addf %993, %994 : vector<8x1xf32>
    %996 = math.rsqrt %995 : vector<8x1xf32>
    %997 = vector.broadcast %987 : vector<8x1xf32> to vector<8x256xf32>
    %998 = arith.subf %905, %997 : vector<8x256xf32>
    %999 = vector.broadcast %996 : vector<8x1xf32> to vector<8x256xf32>
    %1000 = arith.mulf %998, %999 : vector<8x256xf32>
    %c0_380 = arith.constant 0 : index
    %c0_381 = arith.constant 0 : index
    %1001 = vector.load %arg16[%c0_380, %c0_381] : memref<8x1xf32, #tpu.memory_space<vmem>>, vector<8x1xf32>
    %1002 = vector.broadcast %1001 : vector<8x1xf32> to vector<8x256xf32>
    %1003 = arith.mulf %1000, %1002 : vector<8x256xf32>
    %c0_382 = arith.constant 0 : index
    %c0_383 = arith.constant 0 : index
    %1004 = vector.load %arg17[%c0_382, %c0_383] : memref<8x1xf32, #tpu.memory_space<vmem>>, vector<8x1xf32>
    %1005 = vector.broadcast %1004 : vector<8x1xf32> to vector<8x256xf32>
    %1006 = arith.addf %1003, %1005 : vector<8x256xf32>
    %cst_384 = arith.constant 0.000000e+00 : f32
    %1007 = vector.broadcast %cst_384 : f32 to vector<8x256xf32>
    %1008 = arith.maximumf %1006, %1007 : vector<8x256xf32>
    %cst_385 = arith.constant dense<0.000000e+00> : vector<8xf32>
    %1009 = vector.multi_reduction <add>, %1008, %cst_385 [1] : vector<8x256xf32> to vector<8xf32>
    %1010 = vector.shape_cast %1009 : vector<8xf32> to vector<8x1xf32>
    %cst_386 = arith.constant 3.906250e-03 : f32
    %1011 = vector.broadcast %cst_386 : f32 to vector<8x1xf32>
    %1012 = arith.mulf %1010, %1011 : vector<8x1xf32>
    %c0_387 = arith.constant 0 : index
    %c0_388 = arith.constant 0 : index
    %1013 = vector.load %arg19[%c0_387, %c0_388] : memref<16x8xf32, #tpu.memory_space<vmem>>, vector<16x8xf32>
    %c0_389 = arith.constant 0 : index
    %c0_390 = arith.constant 0 : index
    %1014 = vector.load %arg20[%c0_389, %c0_390] : memref<16x1xf32, #tpu.memory_space<vmem>>, vector<16x1xf32>
    %1015 = vector.extract_strided_slice %1013 {offsets = [0, 0], sizes = [16, 1], strides = [1, 1]} : vector<16x8xf32> to vector<16x1xf32>
    %1016 = vector.extract_strided_slice %1012 {offsets = [0, 0], sizes = [1, 1], strides = [1, 1]} : vector<8x1xf32> to vector<1x1xf32>
    %1017 = vector.broadcast %1016 : vector<1x1xf32> to vector<16x1xf32>
    %1018 = arith.mulf %1015, %1017 : vector<16x1xf32>
    %1019 = arith.addf %1014, %1018 : vector<16x1xf32>
    %1020 = vector.extract_strided_slice %1013 {offsets = [0, 1], sizes = [16, 1], strides = [1, 1]} : vector<16x8xf32> to vector<16x1xf32>
    %1021 = vector.extract_strided_slice %1012 {offsets = [1, 0], sizes = [1, 1], strides = [1, 1]} : vector<8x1xf32> to vector<1x1xf32>
    %1022 = vector.broadcast %1021 : vector<1x1xf32> to vector<16x1xf32>
    %1023 = arith.mulf %1020, %1022 : vector<16x1xf32>
    %1024 = arith.addf %1019, %1023 : vector<16x1xf32>
    %1025 = vector.extract_strided_slice %1013 {offsets = [0, 2], sizes = [16, 1], strides = [1, 1]} : vector<16x8xf32> to vector<16x1xf32>
    %1026 = vector.extract_strided_slice %1012 {offsets = [2, 0], sizes = [1, 1], strides = [1, 1]} : vector<8x1xf32> to vector<1x1xf32>
    %1027 = vector.broadcast %1026 : vector<1x1xf32> to vector<16x1xf32>
    %1028 = arith.mulf %1025, %1027 : vector<16x1xf32>
    %1029 = arith.addf %1024, %1028 : vector<16x1xf32>
    %1030 = vector.extract_strided_slice %1013 {offsets = [0, 3], sizes = [16, 1], strides = [1, 1]} : vector<16x8xf32> to vector<16x1xf32>
    %1031 = vector.extract_strided_slice %1012 {offsets = [3, 0], sizes = [1, 1], strides = [1, 1]} : vector<8x1xf32> to vector<1x1xf32>
    %1032 = vector.broadcast %1031 : vector<1x1xf32> to vector<16x1xf32>
    %1033 = arith.mulf %1030, %1032 : vector<16x1xf32>
    %1034 = arith.addf %1029, %1033 : vector<16x1xf32>
    %1035 = vector.extract_strided_slice %1013 {offsets = [0, 4], sizes = [16, 1], strides = [1, 1]} : vector<16x8xf32> to vector<16x1xf32>
    %1036 = vector.extract_strided_slice %1012 {offsets = [4, 0], sizes = [1, 1], strides = [1, 1]} : vector<8x1xf32> to vector<1x1xf32>
    %1037 = vector.broadcast %1036 : vector<1x1xf32> to vector<16x1xf32>
    %1038 = arith.mulf %1035, %1037 : vector<16x1xf32>
    %1039 = arith.addf %1034, %1038 : vector<16x1xf32>
    %1040 = vector.extract_strided_slice %1013 {offsets = [0, 5], sizes = [16, 1], strides = [1, 1]} : vector<16x8xf32> to vector<16x1xf32>
    %1041 = vector.extract_strided_slice %1012 {offsets = [5, 0], sizes = [1, 1], strides = [1, 1]} : vector<8x1xf32> to vector<1x1xf32>
    %1042 = vector.broadcast %1041 : vector<1x1xf32> to vector<16x1xf32>
    %1043 = arith.mulf %1040, %1042 : vector<16x1xf32>
    %1044 = arith.addf %1039, %1043 : vector<16x1xf32>
    %1045 = vector.extract_strided_slice %1013 {offsets = [0, 6], sizes = [16, 1], strides = [1, 1]} : vector<16x8xf32> to vector<16x1xf32>
    %1046 = vector.extract_strided_slice %1012 {offsets = [6, 0], sizes = [1, 1], strides = [1, 1]} : vector<8x1xf32> to vector<1x1xf32>
    %1047 = vector.broadcast %1046 : vector<1x1xf32> to vector<16x1xf32>
    %1048 = arith.mulf %1045, %1047 : vector<16x1xf32>
    %1049 = arith.addf %1044, %1048 : vector<16x1xf32>
    %1050 = vector.extract_strided_slice %1013 {offsets = [0, 7], sizes = [16, 1], strides = [1, 1]} : vector<16x8xf32> to vector<16x1xf32>
    %1051 = vector.extract_strided_slice %1012 {offsets = [7, 0], sizes = [1, 1], strides = [1, 1]} : vector<8x1xf32> to vector<1x1xf32>
    %1052 = vector.broadcast %1051 : vector<1x1xf32> to vector<16x1xf32>
    %1053 = arith.mulf %1050, %1052 : vector<16x1xf32>
    %1054 = arith.addf %1049, %1053 : vector<16x1xf32>
    %cst_391 = arith.constant 0.000000e+00 : f32
    %1055 = vector.broadcast %cst_391 : f32 to vector<16x1xf32>
    %1056 = arith.subf %1055, %1054 : vector<16x1xf32>
    %1057 = math.exp %1056 : vector<16x1xf32>
    %cst_392 = arith.constant 1.000000e+00 : f32
    %1058 = vector.broadcast %cst_392 : f32 to vector<16x1xf32>
    %1059 = arith.addf %1058, %1057 : vector<16x1xf32>
    %cst_393 = arith.constant 1.000000e+00 : f32
    %1060 = vector.broadcast %cst_393 : f32 to vector<16x1xf32>
    %1061 = arith.divf %1060, %1059 : vector<16x1xf32>
    %c0_394 = arith.constant 0 : index
    %c0_395 = arith.constant 0 : index
    %c0_396 = arith.constant 0 : index
    %1062 = vector.load %arg22[%c0_394, %c0_395, %c0_396] : memref<2x8x8xf32, #tpu.memory_space<vmem>>, vector<1x8x8xf32>
    %1063 = vector.shape_cast %1062 : vector<1x8x8xf32> to vector<8x8xf32>
    %1064 = vector.extract_strided_slice %1061 {offsets = [0, 0], sizes = [1, 1], strides = [1, 1]} : vector<16x1xf32> to vector<1x1xf32>
    %c0_397 = arith.constant 0 : index
    %c0_398 = arith.constant 0 : index
    %c0_399 = arith.constant 0 : index
    %c0_400 = arith.constant 0 : index
    %1065 = vector.load %arg21[%c0_397, %c0_398, %c0_399, %c0_400] : memref<2x8x8x8xf32, #tpu.memory_space<vmem>>, vector<1x1x8x8xf32>
    %1066 = vector.shape_cast %1065 : vector<1x1x8x8xf32> to vector<8x8xf32>
    %1067 = vector.broadcast %1064 : vector<1x1xf32> to vector<8x8xf32>
    %1068 = arith.mulf %1067, %1066 : vector<8x8xf32>
    %1069 = arith.addf %1063, %1068 : vector<8x8xf32>
    %1070 = vector.extract_strided_slice %1061 {offsets = [1, 0], sizes = [1, 1], strides = [1, 1]} : vector<16x1xf32> to vector<1x1xf32>
    %c0_401 = arith.constant 0 : index
    %c1_402 = arith.constant 1 : index
    %c0_403 = arith.constant 0 : index
    %c0_404 = arith.constant 0 : index
    %1071 = vector.load %arg21[%c0_401, %c1_402, %c0_403, %c0_404] : memref<2x8x8x8xf32, #tpu.memory_space<vmem>>, vector<1x1x8x8xf32>
    %1072 = vector.shape_cast %1071 : vector<1x1x8x8xf32> to vector<8x8xf32>
    %1073 = vector.broadcast %1070 : vector<1x1xf32> to vector<8x8xf32>
    %1074 = arith.mulf %1073, %1072 : vector<8x8xf32>
    %1075 = arith.addf %1069, %1074 : vector<8x8xf32>
    %1076 = vector.extract_strided_slice %1061 {offsets = [2, 0], sizes = [1, 1], strides = [1, 1]} : vector<16x1xf32> to vector<1x1xf32>
    %c0_405 = arith.constant 0 : index
    %c2_406 = arith.constant 2 : index
    %c0_407 = arith.constant 0 : index
    %c0_408 = arith.constant 0 : index
    %1077 = vector.load %arg21[%c0_405, %c2_406, %c0_407, %c0_408] : memref<2x8x8x8xf32, #tpu.memory_space<vmem>>, vector<1x1x8x8xf32>
    %1078 = vector.shape_cast %1077 : vector<1x1x8x8xf32> to vector<8x8xf32>
    %1079 = vector.broadcast %1076 : vector<1x1xf32> to vector<8x8xf32>
    %1080 = arith.mulf %1079, %1078 : vector<8x8xf32>
    %1081 = arith.addf %1075, %1080 : vector<8x8xf32>
    %1082 = vector.extract_strided_slice %1061 {offsets = [3, 0], sizes = [1, 1], strides = [1, 1]} : vector<16x1xf32> to vector<1x1xf32>
    %c0_409 = arith.constant 0 : index
    %c3_410 = arith.constant 3 : index
    %c0_411 = arith.constant 0 : index
    %c0_412 = arith.constant 0 : index
    %1083 = vector.load %arg21[%c0_409, %c3_410, %c0_411, %c0_412] : memref<2x8x8x8xf32, #tpu.memory_space<vmem>>, vector<1x1x8x8xf32>
    %1084 = vector.shape_cast %1083 : vector<1x1x8x8xf32> to vector<8x8xf32>
    %1085 = vector.broadcast %1082 : vector<1x1xf32> to vector<8x8xf32>
    %1086 = arith.mulf %1085, %1084 : vector<8x8xf32>
    %1087 = arith.addf %1081, %1086 : vector<8x8xf32>
    %1088 = vector.extract_strided_slice %1061 {offsets = [4, 0], sizes = [1, 1], strides = [1, 1]} : vector<16x1xf32> to vector<1x1xf32>
    %c0_413 = arith.constant 0 : index
    %c4_414 = arith.constant 4 : index
    %c0_415 = arith.constant 0 : index
    %c0_416 = arith.constant 0 : index
    %1089 = vector.load %arg21[%c0_413, %c4_414, %c0_415, %c0_416] : memref<2x8x8x8xf32, #tpu.memory_space<vmem>>, vector<1x1x8x8xf32>
    %1090 = vector.shape_cast %1089 : vector<1x1x8x8xf32> to vector<8x8xf32>
    %1091 = vector.broadcast %1088 : vector<1x1xf32> to vector<8x8xf32>
    %1092 = arith.mulf %1091, %1090 : vector<8x8xf32>
    %1093 = arith.addf %1087, %1092 : vector<8x8xf32>
    %1094 = vector.extract_strided_slice %1061 {offsets = [5, 0], sizes = [1, 1], strides = [1, 1]} : vector<16x1xf32> to vector<1x1xf32>
    %c0_417 = arith.constant 0 : index
    %c5_418 = arith.constant 5 : index
    %c0_419 = arith.constant 0 : index
    %c0_420 = arith.constant 0 : index
    %1095 = vector.load %arg21[%c0_417, %c5_418, %c0_419, %c0_420] : memref<2x8x8x8xf32, #tpu.memory_space<vmem>>, vector<1x1x8x8xf32>
    %1096 = vector.shape_cast %1095 : vector<1x1x8x8xf32> to vector<8x8xf32>
    %1097 = vector.broadcast %1094 : vector<1x1xf32> to vector<8x8xf32>
    %1098 = arith.mulf %1097, %1096 : vector<8x8xf32>
    %1099 = arith.addf %1093, %1098 : vector<8x8xf32>
    %1100 = vector.extract_strided_slice %1061 {offsets = [6, 0], sizes = [1, 1], strides = [1, 1]} : vector<16x1xf32> to vector<1x1xf32>
    %c0_421 = arith.constant 0 : index
    %c6_422 = arith.constant 6 : index
    %c0_423 = arith.constant 0 : index
    %c0_424 = arith.constant 0 : index
    %1101 = vector.load %arg21[%c0_421, %c6_422, %c0_423, %c0_424] : memref<2x8x8x8xf32, #tpu.memory_space<vmem>>, vector<1x1x8x8xf32>
    %1102 = vector.shape_cast %1101 : vector<1x1x8x8xf32> to vector<8x8xf32>
    %1103 = vector.broadcast %1100 : vector<1x1xf32> to vector<8x8xf32>
    %1104 = arith.mulf %1103, %1102 : vector<8x8xf32>
    %1105 = arith.addf %1099, %1104 : vector<8x8xf32>
    %1106 = vector.extract_strided_slice %1061 {offsets = [7, 0], sizes = [1, 1], strides = [1, 1]} : vector<16x1xf32> to vector<1x1xf32>
    %c0_425 = arith.constant 0 : index
    %c7_426 = arith.constant 7 : index
    %c0_427 = arith.constant 0 : index
    %c0_428 = arith.constant 0 : index
    %1107 = vector.load %arg21[%c0_425, %c7_426, %c0_427, %c0_428] : memref<2x8x8x8xf32, #tpu.memory_space<vmem>>, vector<1x1x8x8xf32>
    %1108 = vector.shape_cast %1107 : vector<1x1x8x8xf32> to vector<8x8xf32>
    %1109 = vector.broadcast %1106 : vector<1x1xf32> to vector<8x8xf32>
    %1110 = arith.mulf %1109, %1108 : vector<8x8xf32>
    %1111 = arith.addf %1105, %1110 : vector<8x8xf32>
    %cst_429 = arith.constant dense<0.000000e+00> : vector<8x256xf32>
    %1112 = tpu.matmul %1111, %1008, %cst_429 {dimension_numbers = #tpu.dot_dimension_numbers<[1], [0], [0], [1], [0, 0, 1, 1], [], []>} : vector<8x8xf32>, vector<8x256xf32>, vector<8x256xf32> -> vector<8x256xf32>
    %c1_430 = arith.constant 1 : index
    %c0_431 = arith.constant 0 : index
    %c0_432 = arith.constant 0 : index
    %1113 = vector.load %arg22[%c1_430, %c0_431, %c0_432] : memref<2x8x8xf32, #tpu.memory_space<vmem>>, vector<1x8x8xf32>
    %1114 = vector.shape_cast %1113 : vector<1x8x8xf32> to vector<8x8xf32>
    %1115 = vector.extract_strided_slice %1061 {offsets = [8, 0], sizes = [1, 1], strides = [1, 1]} : vector<16x1xf32> to vector<1x1xf32>
    %c1_433 = arith.constant 1 : index
    %c0_434 = arith.constant 0 : index
    %c0_435 = arith.constant 0 : index
    %c0_436 = arith.constant 0 : index
    %1116 = vector.load %arg21[%c1_433, %c0_434, %c0_435, %c0_436] : memref<2x8x8x8xf32, #tpu.memory_space<vmem>>, vector<1x1x8x8xf32>
    %1117 = vector.shape_cast %1116 : vector<1x1x8x8xf32> to vector<8x8xf32>
    %1118 = vector.broadcast %1115 : vector<1x1xf32> to vector<8x8xf32>
    %1119 = arith.mulf %1118, %1117 : vector<8x8xf32>
    %1120 = arith.addf %1114, %1119 : vector<8x8xf32>
    %1121 = vector.extract_strided_slice %1061 {offsets = [9, 0], sizes = [1, 1], strides = [1, 1]} : vector<16x1xf32> to vector<1x1xf32>
    %c1_437 = arith.constant 1 : index
    %c1_438 = arith.constant 1 : index
    %c0_439 = arith.constant 0 : index
    %c0_440 = arith.constant 0 : index
    %1122 = vector.load %arg21[%c1_437, %c1_438, %c0_439, %c0_440] : memref<2x8x8x8xf32, #tpu.memory_space<vmem>>, vector<1x1x8x8xf32>
    %1123 = vector.shape_cast %1122 : vector<1x1x8x8xf32> to vector<8x8xf32>
    %1124 = vector.broadcast %1121 : vector<1x1xf32> to vector<8x8xf32>
    %1125 = arith.mulf %1124, %1123 : vector<8x8xf32>
    %1126 = arith.addf %1120, %1125 : vector<8x8xf32>
    %1127 = vector.extract_strided_slice %1061 {offsets = [10, 0], sizes = [1, 1], strides = [1, 1]} : vector<16x1xf32> to vector<1x1xf32>
    %c1_441 = arith.constant 1 : index
    %c2_442 = arith.constant 2 : index
    %c0_443 = arith.constant 0 : index
    %c0_444 = arith.constant 0 : index
    %1128 = vector.load %arg21[%c1_441, %c2_442, %c0_443, %c0_444] : memref<2x8x8x8xf32, #tpu.memory_space<vmem>>, vector<1x1x8x8xf32>
    %1129 = vector.shape_cast %1128 : vector<1x1x8x8xf32> to vector<8x8xf32>
    %1130 = vector.broadcast %1127 : vector<1x1xf32> to vector<8x8xf32>
    %1131 = arith.mulf %1130, %1129 : vector<8x8xf32>
    %1132 = arith.addf %1126, %1131 : vector<8x8xf32>
    %1133 = vector.extract_strided_slice %1061 {offsets = [11, 0], sizes = [1, 1], strides = [1, 1]} : vector<16x1xf32> to vector<1x1xf32>
    %c1_445 = arith.constant 1 : index
    %c3_446 = arith.constant 3 : index
    %c0_447 = arith.constant 0 : index
    %c0_448 = arith.constant 0 : index
    %1134 = vector.load %arg21[%c1_445, %c3_446, %c0_447, %c0_448] : memref<2x8x8x8xf32, #tpu.memory_space<vmem>>, vector<1x1x8x8xf32>
    %1135 = vector.shape_cast %1134 : vector<1x1x8x8xf32> to vector<8x8xf32>
    %1136 = vector.broadcast %1133 : vector<1x1xf32> to vector<8x8xf32>
    %1137 = arith.mulf %1136, %1135 : vector<8x8xf32>
    %1138 = arith.addf %1132, %1137 : vector<8x8xf32>
    %1139 = vector.extract_strided_slice %1061 {offsets = [12, 0], sizes = [1, 1], strides = [1, 1]} : vector<16x1xf32> to vector<1x1xf32>
    %c1_449 = arith.constant 1 : index
    %c4_450 = arith.constant 4 : index
    %c0_451 = arith.constant 0 : index
    %c0_452 = arith.constant 0 : index
    %1140 = vector.load %arg21[%c1_449, %c4_450, %c0_451, %c0_452] : memref<2x8x8x8xf32, #tpu.memory_space<vmem>>, vector<1x1x8x8xf32>
    %1141 = vector.shape_cast %1140 : vector<1x1x8x8xf32> to vector<8x8xf32>
    %1142 = vector.broadcast %1139 : vector<1x1xf32> to vector<8x8xf32>
    %1143 = arith.mulf %1142, %1141 : vector<8x8xf32>
    %1144 = arith.addf %1138, %1143 : vector<8x8xf32>
    %1145 = vector.extract_strided_slice %1061 {offsets = [13, 0], sizes = [1, 1], strides = [1, 1]} : vector<16x1xf32> to vector<1x1xf32>
    %c1_453 = arith.constant 1 : index
    %c5_454 = arith.constant 5 : index
    %c0_455 = arith.constant 0 : index
    %c0_456 = arith.constant 0 : index
    %1146 = vector.load %arg21[%c1_453, %c5_454, %c0_455, %c0_456] : memref<2x8x8x8xf32, #tpu.memory_space<vmem>>, vector<1x1x8x8xf32>
    %1147 = vector.shape_cast %1146 : vector<1x1x8x8xf32> to vector<8x8xf32>
    %1148 = vector.broadcast %1145 : vector<1x1xf32> to vector<8x8xf32>
    %1149 = arith.mulf %1148, %1147 : vector<8x8xf32>
    %1150 = arith.addf %1144, %1149 : vector<8x8xf32>
    %1151 = vector.extract_strided_slice %1061 {offsets = [14, 0], sizes = [1, 1], strides = [1, 1]} : vector<16x1xf32> to vector<1x1xf32>
    %c1_457 = arith.constant 1 : index
    %c6_458 = arith.constant 6 : index
    %c0_459 = arith.constant 0 : index
    %c0_460 = arith.constant 0 : index
    %1152 = vector.load %arg21[%c1_457, %c6_458, %c0_459, %c0_460] : memref<2x8x8x8xf32, #tpu.memory_space<vmem>>, vector<1x1x8x8xf32>
    %1153 = vector.shape_cast %1152 : vector<1x1x8x8xf32> to vector<8x8xf32>
    %1154 = vector.broadcast %1151 : vector<1x1xf32> to vector<8x8xf32>
    %1155 = arith.mulf %1154, %1153 : vector<8x8xf32>
    %1156 = arith.addf %1150, %1155 : vector<8x8xf32>
    %1157 = vector.extract_strided_slice %1061 {offsets = [15, 0], sizes = [1, 1], strides = [1, 1]} : vector<16x1xf32> to vector<1x1xf32>
    %c1_461 = arith.constant 1 : index
    %c7_462 = arith.constant 7 : index
    %c0_463 = arith.constant 0 : index
    %c0_464 = arith.constant 0 : index
    %1158 = vector.load %arg21[%c1_461, %c7_462, %c0_463, %c0_464] : memref<2x8x8x8xf32, #tpu.memory_space<vmem>>, vector<1x1x8x8xf32>
    %1159 = vector.shape_cast %1158 : vector<1x1x8x8xf32> to vector<8x8xf32>
    %1160 = vector.broadcast %1157 : vector<1x1xf32> to vector<8x8xf32>
    %1161 = arith.mulf %1160, %1159 : vector<8x8xf32>
    %1162 = arith.addf %1156, %1161 : vector<8x8xf32>
    %cst_465 = arith.constant dense<0.000000e+00> : vector<8x256xf32>
    %1163 = tpu.matmul %1162, %1008, %cst_465 {dimension_numbers = #tpu.dot_dimension_numbers<[1], [0], [0], [1], [0, 0, 1, 1], [], []>} : vector<8x8xf32>, vector<8x256xf32>, vector<8x256xf32> -> vector<8x256xf32>
    %1164 = arith.subf %1163, %1112 : vector<8x256xf32>
    %1165 = vector.broadcast %482 : vector<1x256xf32> to vector<8x256xf32>
    %1166 = arith.mulf %1165, %1164 : vector<8x256xf32>
    %1167 = arith.addf %1112, %1166 : vector<8x256xf32>
    %cst_466 = arith.constant dense<0.000000e+00> : vector<8xf32>
    %1168 = vector.multi_reduction <add>, %1167, %cst_466 [1] : vector<8x256xf32> to vector<8xf32>
    %1169 = vector.shape_cast %1168 : vector<8xf32> to vector<8x1xf32>
    %1170 = arith.mulf %1167, %1167 : vector<8x256xf32>
    %cst_467 = arith.constant dense<0.000000e+00> : vector<8xf32>
    %1171 = vector.multi_reduction <add>, %1170, %cst_467 [1] : vector<8x256xf32> to vector<8xf32>
    %1172 = vector.shape_cast %1171 : vector<8xf32> to vector<8x1xf32>
    %c0_468 = arith.constant 0 : index
    %c0_469 = arith.constant 0 : index
    %1173 = vector.load %arg25[%c0_468, %c0_469] : memref<8x8xf32, #tpu.memory_space<vmem>>, vector<8x8xf32>
    %cst_470 = arith.constant 0.000000e+00 : f32
    %1174 = vector.broadcast %cst_470 : f32 to vector<8x1xf32>
    %cst_471 = arith.constant 0.000000e+00 : f32
    %1175 = vector.broadcast %cst_471 : f32 to vector<8x1xf32>
    %1176 = vector.extract_strided_slice %1173 {offsets = [0, 0], sizes = [8, 1], strides = [1, 1]} : vector<8x8xf32> to vector<8x1xf32>
    %1177 = vector.extract_strided_slice %1169 {offsets = [0, 0], sizes = [1, 1], strides = [1, 1]} : vector<8x1xf32> to vector<1x1xf32>
    %1178 = vector.broadcast %1177 : vector<1x1xf32> to vector<8x1xf32>
    %1179 = arith.mulf %1176, %1178 : vector<8x1xf32>
    %1180 = arith.addf %1174, %1179 : vector<8x1xf32>
    %1181 = vector.extract_strided_slice %1172 {offsets = [0, 0], sizes = [1, 1], strides = [1, 1]} : vector<8x1xf32> to vector<1x1xf32>
    %1182 = vector.broadcast %1181 : vector<1x1xf32> to vector<8x1xf32>
    %1183 = arith.mulf %1176, %1182 : vector<8x1xf32>
    %1184 = arith.addf %1175, %1183 : vector<8x1xf32>
    %1185 = vector.extract_strided_slice %1173 {offsets = [0, 1], sizes = [8, 1], strides = [1, 1]} : vector<8x8xf32> to vector<8x1xf32>
    %1186 = vector.extract_strided_slice %1169 {offsets = [1, 0], sizes = [1, 1], strides = [1, 1]} : vector<8x1xf32> to vector<1x1xf32>
    %1187 = vector.broadcast %1186 : vector<1x1xf32> to vector<8x1xf32>
    %1188 = arith.mulf %1185, %1187 : vector<8x1xf32>
    %1189 = arith.addf %1180, %1188 : vector<8x1xf32>
    %1190 = vector.extract_strided_slice %1172 {offsets = [1, 0], sizes = [1, 1], strides = [1, 1]} : vector<8x1xf32> to vector<1x1xf32>
    %1191 = vector.broadcast %1190 : vector<1x1xf32> to vector<8x1xf32>
    %1192 = arith.mulf %1185, %1191 : vector<8x1xf32>
    %1193 = arith.addf %1184, %1192 : vector<8x1xf32>
    %1194 = vector.extract_strided_slice %1173 {offsets = [0, 2], sizes = [8, 1], strides = [1, 1]} : vector<8x8xf32> to vector<8x1xf32>
    %1195 = vector.extract_strided_slice %1169 {offsets = [2, 0], sizes = [1, 1], strides = [1, 1]} : vector<8x1xf32> to vector<1x1xf32>
    %1196 = vector.broadcast %1195 : vector<1x1xf32> to vector<8x1xf32>
    %1197 = arith.mulf %1194, %1196 : vector<8x1xf32>
    %1198 = arith.addf %1189, %1197 : vector<8x1xf32>
    %1199 = vector.extract_strided_slice %1172 {offsets = [2, 0], sizes = [1, 1], strides = [1, 1]} : vector<8x1xf32> to vector<1x1xf32>
    %1200 = vector.broadcast %1199 : vector<1x1xf32> to vector<8x1xf32>
    %1201 = arith.mulf %1194, %1200 : vector<8x1xf32>
    %1202 = arith.addf %1193, %1201 : vector<8x1xf32>
    %1203 = vector.extract_strided_slice %1173 {offsets = [0, 3], sizes = [8, 1], strides = [1, 1]} : vector<8x8xf32> to vector<8x1xf32>
    %1204 = vector.extract_strided_slice %1169 {offsets = [3, 0], sizes = [1, 1], strides = [1, 1]} : vector<8x1xf32> to vector<1x1xf32>
    %1205 = vector.broadcast %1204 : vector<1x1xf32> to vector<8x1xf32>
    %1206 = arith.mulf %1203, %1205 : vector<8x1xf32>
    %1207 = arith.addf %1198, %1206 : vector<8x1xf32>
    %1208 = vector.extract_strided_slice %1172 {offsets = [3, 0], sizes = [1, 1], strides = [1, 1]} : vector<8x1xf32> to vector<1x1xf32>
    %1209 = vector.broadcast %1208 : vector<1x1xf32> to vector<8x1xf32>
    %1210 = arith.mulf %1203, %1209 : vector<8x1xf32>
    %1211 = arith.addf %1202, %1210 : vector<8x1xf32>
    %1212 = vector.extract_strided_slice %1173 {offsets = [0, 4], sizes = [8, 1], strides = [1, 1]} : vector<8x8xf32> to vector<8x1xf32>
    %1213 = vector.extract_strided_slice %1169 {offsets = [4, 0], sizes = [1, 1], strides = [1, 1]} : vector<8x1xf32> to vector<1x1xf32>
    %1214 = vector.broadcast %1213 : vector<1x1xf32> to vector<8x1xf32>
    %1215 = arith.mulf %1212, %1214 : vector<8x1xf32>
    %1216 = arith.addf %1207, %1215 : vector<8x1xf32>
    %1217 = vector.extract_strided_slice %1172 {offsets = [4, 0], sizes = [1, 1], strides = [1, 1]} : vector<8x1xf32> to vector<1x1xf32>
    %1218 = vector.broadcast %1217 : vector<1x1xf32> to vector<8x1xf32>
    %1219 = arith.mulf %1212, %1218 : vector<8x1xf32>
    %1220 = arith.addf %1211, %1219 : vector<8x1xf32>
    %1221 = vector.extract_strided_slice %1173 {offsets = [0, 5], sizes = [8, 1], strides = [1, 1]} : vector<8x8xf32> to vector<8x1xf32>
    %1222 = vector.extract_strided_slice %1169 {offsets = [5, 0], sizes = [1, 1], strides = [1, 1]} : vector<8x1xf32> to vector<1x1xf32>
    %1223 = vector.broadcast %1222 : vector<1x1xf32> to vector<8x1xf32>
    %1224 = arith.mulf %1221, %1223 : vector<8x1xf32>
    %1225 = arith.addf %1216, %1224 : vector<8x1xf32>
    %1226 = vector.extract_strided_slice %1172 {offsets = [5, 0], sizes = [1, 1], strides = [1, 1]} : vector<8x1xf32> to vector<1x1xf32>
    %1227 = vector.broadcast %1226 : vector<1x1xf32> to vector<8x1xf32>
    %1228 = arith.mulf %1221, %1227 : vector<8x1xf32>
    %1229 = arith.addf %1220, %1228 : vector<8x1xf32>
    %1230 = vector.extract_strided_slice %1173 {offsets = [0, 6], sizes = [8, 1], strides = [1, 1]} : vector<8x8xf32> to vector<8x1xf32>
    %1231 = vector.extract_strided_slice %1169 {offsets = [6, 0], sizes = [1, 1], strides = [1, 1]} : vector<8x1xf32> to vector<1x1xf32>
    %1232 = vector.broadcast %1231 : vector<1x1xf32> to vector<8x1xf32>
    %1233 = arith.mulf %1230, %1232 : vector<8x1xf32>
    %1234 = arith.addf %1225, %1233 : vector<8x1xf32>
    %1235 = vector.extract_strided_slice %1172 {offsets = [6, 0], sizes = [1, 1], strides = [1, 1]} : vector<8x1xf32> to vector<1x1xf32>
    %1236 = vector.broadcast %1235 : vector<1x1xf32> to vector<8x1xf32>
    %1237 = arith.mulf %1230, %1236 : vector<8x1xf32>
    %1238 = arith.addf %1229, %1237 : vector<8x1xf32>
    %1239 = vector.extract_strided_slice %1173 {offsets = [0, 7], sizes = [8, 1], strides = [1, 1]} : vector<8x8xf32> to vector<8x1xf32>
    %1240 = vector.extract_strided_slice %1169 {offsets = [7, 0], sizes = [1, 1], strides = [1, 1]} : vector<8x1xf32> to vector<1x1xf32>
    %1241 = vector.broadcast %1240 : vector<1x1xf32> to vector<8x1xf32>
    %1242 = arith.mulf %1239, %1241 : vector<8x1xf32>
    %1243 = arith.addf %1234, %1242 : vector<8x1xf32>
    %1244 = vector.extract_strided_slice %1172 {offsets = [7, 0], sizes = [1, 1], strides = [1, 1]} : vector<8x1xf32> to vector<1x1xf32>
    %1245 = vector.broadcast %1244 : vector<1x1xf32> to vector<8x1xf32>
    %1246 = arith.mulf %1239, %1245 : vector<8x1xf32>
    %1247 = arith.addf %1238, %1246 : vector<8x1xf32>
    %cst_472 = arith.constant 3.906250e-03 : f32
    %1248 = vector.broadcast %cst_472 : f32 to vector<8x1xf32>
    %1249 = arith.mulf %1243, %1248 : vector<8x1xf32>
    %cst_473 = arith.constant 3.906250e-03 : f32
    %1250 = vector.broadcast %cst_473 : f32 to vector<8x1xf32>
    %1251 = arith.mulf %1247, %1250 : vector<8x1xf32>
    %1252 = arith.mulf %1249, %1249 : vector<8x1xf32>
    %1253 = arith.subf %1251, %1252 : vector<8x1xf32>
    %cst_474 = arith.constant 0.000000e+00 : f32
    %1254 = vector.broadcast %cst_474 : f32 to vector<8x1xf32>
    %1255 = arith.maximumf %1253, %1254 : vector<8x1xf32>
    %cst_475 = arith.constant 9.99999974E-6 : f32
    %1256 = vector.broadcast %cst_475 : f32 to vector<8x1xf32>
    %1257 = arith.addf %1255, %1256 : vector<8x1xf32>
    %1258 = math.rsqrt %1257 : vector<8x1xf32>
    %1259 = vector.broadcast %1249 : vector<8x1xf32> to vector<8x256xf32>
    %1260 = arith.subf %1167, %1259 : vector<8x256xf32>
    %1261 = vector.broadcast %1258 : vector<8x1xf32> to vector<8x256xf32>
    %1262 = arith.mulf %1260, %1261 : vector<8x256xf32>
    %c0_476 = arith.constant 0 : index
    %c0_477 = arith.constant 0 : index
    %1263 = vector.load %arg23[%c0_476, %c0_477] : memref<8x1xf32, #tpu.memory_space<vmem>>, vector<8x1xf32>
    %1264 = vector.broadcast %1263 : vector<8x1xf32> to vector<8x256xf32>
    %1265 = arith.mulf %1262, %1264 : vector<8x256xf32>
    %c0_478 = arith.constant 0 : index
    %c0_479 = arith.constant 0 : index
    %1266 = vector.load %arg24[%c0_478, %c0_479] : memref<8x1xf32, #tpu.memory_space<vmem>>, vector<8x1xf32>
    %1267 = vector.broadcast %1266 : vector<8x1xf32> to vector<8x256xf32>
    %1268 = arith.addf %1265, %1267 : vector<8x256xf32>
    %cst_480 = arith.constant 0.000000e+00 : f32
    %1269 = vector.broadcast %cst_480 : f32 to vector<8x256xf32>
    %1270 = arith.maximumf %1268, %1269 : vector<8x256xf32>
    %c0_481 = arith.constant 0 : index
    %c0_482 = arith.constant 0 : index
    %c0_483 = arith.constant 0 : index
    %1271 = vector.load %arg26[%c0_481, %c0_482, %c0_483] : memref<1x8x256xf32, #tpu.memory_space<vmem>>, vector<1x8x256xf32>
    %1272 = vector.shape_cast %1271 : vector<1x8x256xf32> to vector<8x256xf32>
    %1273 = vector.shape_cast %1270 : vector<8x256xf32> to vector<1x8x256xf32>
    tpu.vector_store %arg26[%c0_481, %c0_482, %c0_483], %1273 {strides = array<i32>} : memref<1x8x256xf32, #tpu.memory_space<vmem>>, vector<1x8x256xf32>,
    return
  }
  func.func @transform_0(%arg0: i32) -> (i32, i32, i32) {
    %c0_i32 = arith.constant 0 : i32
    %c0_i32_0 = arith.constant 0 : i32
    %c0_i32_1 = arith.constant 0 : i32
    return %arg0, %c0_i32, %c0_i32_0 : i32, i32, i32
  }
  func.func @transform_1(%arg0: i32) -> (i32, i32, i32) {
    %c0_i32 = arith.constant 0 : i32
    %c0_i32_0 = arith.constant 0 : i32
    %c0_i32_1 = arith.constant 0 : i32
    return %arg0, %c0_i32, %c0_i32_0 : i32, i32, i32
  }
  func.func @transform_2(%arg0: i32) -> (i32, i32) {
    %c0_i32 = arith.constant 0 : i32
    %c0_i32_0 = arith.constant 0 : i32
    %c0_i32_1 = arith.constant 0 : i32
    return %c0_i32, %c0_i32_0 : i32, i32
  }
  func.func @transform_3(%arg0: i32) -> (i32, i32) {
    %c0_i32 = arith.constant 0 : i32
    %c0_i32_0 = arith.constant 0 : i32
    %c0_i32_1 = arith.constant 0 : i32
    return %c0_i32, %c0_i32_0 : i32, i32
  }
  func.func @transform_4(%arg0: i32) -> (i32, i32) {
    %c0_i32 = arith.constant 0 : i32
    %c0_i32_0 = arith.constant 0 : i32
    %c0_i32_1 = arith.constant 0 : i32
    return %c0_i32, %c0_i32_0 : i32, i32
  }
  func.func @transform_5(%arg0: i32) -> (i32, i32) {
    %c0_i32 = arith.constant 0 : i32
    %c0_i32_0 = arith.constant 0 : i32
    %c0_i32_1 = arith.constant 0 : i32
    return %c0_i32, %c0_i32_0 : i32, i32
  }
  func.func @transform_6(%arg0: i32) -> (i32, i32, i32, i32) {
    %c0_i32 = arith.constant 0 : i32
    %c0_i32_0 = arith.constant 0 : i32
    %c0_i32_1 = arith.constant 0 : i32
    %c0_i32_2 = arith.constant 0 : i32
    %c0_i32_3 = arith.constant 0 : i32
    return %c0_i32, %c0_i32_0, %c0_i32_1, %c0_i32_2 : i32, i32, i32, i32
  }
  func.func @transform_7(%arg0: i32) -> (i32, i32, i32) {
    %c0_i32 = arith.constant 0 : i32
    %c0_i32_0 = arith.constant 0 : i32
    %c0_i32_1 = arith.constant 0 : i32
    %c0_i32_2 = arith.constant 0 : i32
    return %c0_i32, %c0_i32_0, %c0_i32_1 : i32, i32, i32
  }
  func.func @transform_8(%arg0: i32) -> (i32, i32) {
    %c0_i32 = arith.constant 0 : i32
    %c0_i32_0 = arith.constant 0 : i32
    %c0_i32_1 = arith.constant 0 : i32
    return %c0_i32, %c0_i32_0 : i32, i32
  }
  func.func @transform_9(%arg0: i32) -> (i32, i32) {
    %c0_i32 = arith.constant 0 : i32
    %c0_i32_0 = arith.constant 0 : i32
    %c0_i32_1 = arith.constant 0 : i32
    return %c0_i32, %c0_i32_0 : i32, i32
  }
  func.func @transform_10(%arg0: i32) -> (i32, i32) {
    %c0_i32 = arith.constant 0 : i32
    %c0_i32_0 = arith.constant 0 : i32
    %c0_i32_1 = arith.constant 0 : i32
    return %c0_i32, %c0_i32_0 : i32, i32
  }
  func.func @transform_11(%arg0: i32) -> (i32, i32) {
    %c0_i32 = arith.constant 0 : i32
    %c0_i32_0 = arith.constant 0 : i32
    %c0_i32_1 = arith.constant 0 : i32
    return %c0_i32, %c0_i32_0 : i32, i32
  }
  func.func @transform_12(%arg0: i32) -> (i32, i32) {
    %c0_i32 = arith.constant 0 : i32
    %c0_i32_0 = arith.constant 0 : i32
    %c0_i32_1 = arith.constant 0 : i32
    return %c0_i32, %c0_i32_0 : i32, i32
  }
  func.func @transform_13(%arg0: i32) -> (i32, i32, i32, i32) {
    %c0_i32 = arith.constant 0 : i32
    %c0_i32_0 = arith.constant 0 : i32
    %c0_i32_1 = arith.constant 0 : i32
    %c0_i32_2 = arith.constant 0 : i32
    %c0_i32_3 = arith.constant 0 : i32
    return %c0_i32, %c0_i32_0, %c0_i32_1, %c0_i32_2 : i32, i32, i32, i32
  }
  func.func @transform_14(%arg0: i32) -> (i32, i32, i32) {
    %c0_i32 = arith.constant 0 : i32
    %c0_i32_0 = arith.constant 0 : i32
    %c0_i32_1 = arith.constant 0 : i32
    %c0_i32_2 = arith.constant 0 : i32
    return %c0_i32, %c0_i32_0, %c0_i32_1 : i32, i32, i32
  }
  func.func @transform_15(%arg0: i32) -> (i32, i32) {
    %c0_i32 = arith.constant 0 : i32
    %c0_i32_0 = arith.constant 0 : i32
    %c0_i32_1 = arith.constant 0 : i32
    return %c0_i32, %c0_i32_0 : i32, i32
  }
  func.func @transform_16(%arg0: i32) -> (i32, i32) {
    %c0_i32 = arith.constant 0 : i32
    %c0_i32_0 = arith.constant 0 : i32
    %c0_i32_1 = arith.constant 0 : i32
    return %c0_i32, %c0_i32_0 : i32, i32
  }
  func.func @transform_17(%arg0: i32) -> (i32, i32) {
    %c0_i32 = arith.constant 0 : i32
    %c0_i32_0 = arith.constant 0 : i32
    %c0_i32_1 = arith.constant 0 : i32
    return %c0_i32, %c0_i32_0 : i32, i32
  }
  func.func @transform_18(%arg0: i32) -> (i32, i32) {
    %c0_i32 = arith.constant 0 : i32
    %c0_i32_0 = arith.constant 0 : i32
    %c0_i32_1 = arith.constant 0 : i32
    return %c0_i32, %c0_i32_0 : i32, i32
  }
  func.func @transform_19(%arg0: i32) -> (i32, i32) {
    %c0_i32 = arith.constant 0 : i32
    %c0_i32_0 = arith.constant 0 : i32
    %c0_i32_1 = arith.constant 0 : i32
    return %c0_i32, %c0_i32_0 : i32, i32
  }
  func.func @transform_20(%arg0: i32) -> (i32, i32, i32, i32) {
    %c0_i32 = arith.constant 0 : i32
    %c0_i32_0 = arith.constant 0 : i32
    %c0_i32_1 = arith.constant 0 : i32
    %c0_i32_2 = arith.constant 0 : i32
    %c0_i32_3 = arith.constant 0 : i32
    return %c0_i32, %c0_i32_0, %c0_i32_1, %c0_i32_2 : i32, i32, i32, i32
  }
  func.func @transform_21(%arg0: i32) -> (i32, i32, i32) {
    %c0_i32 = arith.constant 0 : i32
    %c0_i32_0 = arith.constant 0 : i32
    %c0_i32_1 = arith.constant 0 : i32
    %c0_i32_2 = arith.constant 0 : i32
    return %c0_i32, %c0_i32_0, %c0_i32_1 : i32, i32, i32
  }
  func.func @transform_22(%arg0: i32) -> (i32, i32) {
    %c0_i32 = arith.constant 0 : i32
    %c0_i32_0 = arith.constant 0 : i32
    %c0_i32_1 = arith.constant 0 : i32
    return %c0_i32, %c0_i32_0 : i32, i32
  }
  func.func @transform_23(%arg0: i32) -> (i32, i32) {
    %c0_i32 = arith.constant 0 : i32
    %c0_i32_0 = arith.constant 0 : i32
    %c0_i32_1 = arith.constant 0 : i32
    return %c0_i32, %c0_i32_0 : i32, i32
  }
  func.func @transform_24(%arg0: i32) -> (i32, i32) {
    %c0_i32 = arith.constant 0 : i32
    %c0_i32_0 = arith.constant 0 : i32
    %c0_i32_1 = arith.constant 0 : i32
    return %c0_i32, %c0_i32_0 : i32, i32
  }
  func.func @transform_25(%arg0: i32) -> (i32, i32, i32) {
    %c0_i32 = arith.constant 0 : i32
    %c0_i32_0 = arith.constant 0 : i32
    %c0_i32_1 = arith.constant 0 : i32
    return %arg0, %c0_i32, %c0_i32_0 : i32, i32, i32
  }
}

</mosaic_0001>

<llo_original>
// kernel: sconv_nr3_gn_forward.1
$region0: #{sconv_nr3_gn_forward.1}
  #allocation0 [shape = 'u32[]', space=smem, size = 0x4, offset = 0x4, fixed_abs, tag = 'smem constant byte address 0x4 - core index']
  #allocation1 [shape = 'u32[72,128]{1,0:T(1,128)}', space=vmem, size = 0x9000, scoped, tag = 'internal scratch']
  %s0 = inlined_call_operand.vmem [shape: f32[2,8,256], index: 0, kind: input, shape index: {}]
  %s1 = inlined_call_operand.vmem [shape: f32[2,1,256], index: 1, kind: input, shape index: {}]
  %s2 = inlined_call_operand.vmem [shape: f32[1,256], index: 2, kind: input, shape index: {}]
  %s3 = inlined_call_operand.vmem [shape: f32[1,256], index: 3, kind: input, shape index: {}]
  %s4 = inlined_call_operand.vmem [shape: f32[16,8], index: 4, kind: input, shape index: {}]
  %s5 = inlined_call_operand.vmem [shape: f32[16,1], index: 5, kind: input, shape index: {}]
  %s6 = inlined_call_operand.vmem [shape: f32[2,8,8,8], index: 6, kind: input, shape index: {}]
  %s7 = inlined_call_operand.vmem [shape: f32[2,8,8], index: 7, kind: input, shape index: {}]
  %s8 = inlined_call_operand.vmem [shape: f32[8,1], index: 8, kind: input, shape index: {}]
  %s9 = inlined_call_operand.vmem [shape: f32[8,1], index: 9, kind: input, shape index: {}]
  %s10 = inlined_call_operand.vmem [shape: f32[8,8], index: 10, kind: input, shape index: {}, may-alias: {10,17,24}]
  %s11 = inlined_call_operand.vmem [shape: f32[16,8], index: 11, kind: input, shape index: {}]
  %s12 = inlined_call_operand.vmem [shape: f32[16,1], index: 12, kind: input, shape index: {}]
  %s13 = inlined_call_operand.vmem [shape: f32[2,8,8,8], index: 13, kind: input, shape index: {}]
  %s14 = inlined_call_operand.vmem [shape: f32[2,8,8], index: 14, kind: input, shape index: {}]
  %s15 = inlined_call_operand.vmem [shape: f32[8,1], index: 15, kind: input, shape index: {}]
  %s16 = inlined_call_operand.vmem [shape: f32[8,1], index: 16, kind: input, shape index: {}]
  %s17 = inlined_call_operand.vmem [shape: f32[8,8], index: 17, kind: input, shape index: {}, may-alias: {10,17,24}]
  %s18 = inlined_call_operand.vmem [shape: f32[16,8], index: 18, kind: input, shape index: {}]
  %s19 = inlined_call_operand.vmem [shape: f32[16,1], index: 19, kind: input, shape index: {}]
  %s20 = inlined_call_operand.vmem [shape: f32[2,8,8,8], index: 20, kind: input, shape index: {}]
  %s21 = inlined_call_operand.vmem [shape: f32[2,8,8], index: 21, kind: input, shape index: {}]
  %s22 = inlined_call_operand.vmem [shape: f32[8,1], index: 22, kind: input, shape index: {}]
  %s23 = inlined_call_operand.vmem [shape: f32[8,1], index: 23, kind: input, shape index: {}]
  %s24 = inlined_call_operand.vmem [shape: f32[8,8], index: 24, kind: input, shape index: {}, may-alias: {10,17,24}]
  %s25 = inlined_call_operand.vmem [shape: f32[2,8,256], index: 25, kind: output, shape index: {}]
  %s26 = sld [smem:[#allocation0]]
  $region133: #{sconv_nr3_gn_forward.1} parent=0
    _
  %s28 = ssub.s32 1, %s26
  %s29 = scalar_select 0, %s28, %s26
  loop: start=0, step=1, limit=4
  $region2: #{sconv_nr3_gn_forward.1} parent=0 // loop_pre_header
    _
  $region3: #{sconv_nr3_gn_forward.1} parent=0 // loop_header
    %s31 = sphi 0, %s35
    %p32 = scmp.ge.s32.totalorder %s31, 4
    %s41 = sphi 0, %s43
    %s44 = sphi 0, %s41
    %s45 = sphi 0, %s44
    %s61 = sphi 0, %s45
    %s67 = sphi 0, %s69
    %s70 = sphi 0, %s67
    %s71 = sphi 0, %s70
    %s87 = sphi 0, %s71
    %s91 = sphi 0, %s91
    %s93 = sphi 0, %s91
    %s94 = sphi 0, %s93
    %s108 = sphi 0, %s94
    %s112 = sphi 0, %s112
    %s114 = sphi 0, %s112
    %s115 = sphi 0, %s114
    %s129 = sphi 0, %s115
    %s133 = sphi 0, %s133
    %s135 = sphi 0, %s133
    %s136 = sphi 0, %s135
    %s150 = sphi 0, %s136
    %s154 = sphi 0, %s154
    %s156 = sphi 0, %s154
    %s157 = sphi 0, %s156
    %s171 = sphi 0, %s157
    %s175 = sphi 0, %s175
    %s177 = sphi 0, %s175
    %s178 = sphi 0, %s177
    %s192 = sphi 0, %s178
    %s196 = sphi 0, %s196
    %s198 = sphi 0, %s196
    %s199 = sphi 0, %s198
    %s213 = sphi 0, %s199
    %s217 = sphi 0, %s217
    %s219 = sphi 0, %s217
    %s220 = sphi 0, %s219
    %s234 = sphi 0, %s220
    %s238 = sphi 0, %s238
    %s240 = sphi 0, %s238
    %s241 = sphi 0, %s240
    %s255 = sphi 0, %s241
    %s259 = sphi 0, %s259
    %s261 = sphi 0, %s259
    %s262 = sphi 0, %s261
    %s276 = sphi 0, %s262
    %s280 = sphi 0, %s280
    %s282 = sphi 0, %s280
    %s283 = sphi 0, %s282
    %s297 = sphi 0, %s283
    %s301 = sphi 0, %s301
    %s303 = sphi 0, %s301
    %s304 = sphi 0, %s303
    %s318 = sphi 0, %s304
    %s322 = sphi 0, %s322
    %s324 = sphi 0, %s322
    %s325 = sphi 0, %s324
    %s339 = sphi 0, %s325
    %s343 = sphi 0, %s343
    %s345 = sphi 0, %s343
    %s346 = sphi 0, %s345
    %s360 = sphi 0, %s346
    %s364 = sphi 0, %s364
    %s366 = sphi 0, %s364
    %s367 = sphi 0, %s366
    %s381 = sphi 0, %s367
    %s385 = sphi 0, %s385
    %s387 = sphi 0, %s385
    %s388 = sphi 0, %s387
    %s402 = sphi 0, %s388
    %s406 = sphi 0, %s406
    %s408 = sphi 0, %s406
    %s409 = sphi 0, %s408
    %s423 = sphi 0, %s409
    %s427 = sphi 0, %s427
    %s429 = sphi 0, %s427
    %s430 = sphi 0, %s429
    %s444 = sphi 0, %s430
    %s448 = sphi 0, %s448
    %s450 = sphi 0, %s448
    %s451 = sphi 0, %s450
    %s465 = sphi 0, %s451
    %s469 = sphi 0, %s469
    %s471 = sphi 0, %s469
    %s472 = sphi 0, %s471
    %s486 = sphi 0, %s472
    %s490 = sphi 0, %s490
    %s492 = sphi 0, %s490
    %s493 = sphi 0, %s492
    %s507 = sphi 0, %s493
    %s511 = sphi 0, %s511
    %s513 = sphi 0, %s511
    %s514 = sphi 0, %s513
    %s528 = sphi 0, %s514
    %s532 = sphi 0, %s532
    %s534 = sphi 0, %s532
    %s535 = sphi 0, %s534
    %s549 = sphi 0, %s535
    %s553 = sphi 0, %s553
    %s555 = sphi 0, %s553
    %s556 = sphi 0, %s555
    %s570 = sphi 0, %s556
    %s576 = sphi 0, %s578
    %s579 = sphi 0, %s576
    %s580 = sphi 0, %s579
    %s596 = sphi 0, %s580
  $region4: #{sconv_nr3_gn_forward.1} parent=0 // loop_header_branch
    %34 = sbr.rel (%p32) target = $region8
  $region5: #{sconv_nr3_gn_forward.1} parent=0 // loop_body
    %s36 = ssub.s32 %s31, 1
    %s37 = ssub.s32 %s31, 2
    %s38 = sadd.s32 %s31, 1
    %s39 = ssub.s32 %s31, %s38
    %p40 = scmp.eq.s32.totalorder %s39, 0
    %s42 = sadd.s32 %s41, 1
    %s43 = scalar_select %p40, %s41, %s42
    %p46 = pneg %p40
    %p47 = scmp.eq.s32.totalorder %s31, 1
    %p48 = por %p46, %p47
    %p49 = scmp.ne.s32.totalorder %s41, %s44
    %p50 = scmp.eq.s32.totalorder %s31, 0
    %p51 = por %p49, %p50
    %p52 = scmp.ne.s32.totalorder %s41, %s44
    %p53 = scmp.eq.s32.totalorder %s36, 1
    %p54 = por %p52, %p53
    %p55 = scmp.ne.s32.totalorder %s44, %s45
    %p56 = scmp.eq.s32.totalorder %s36, 0
    %p57 = por %p55, %p56
    %p58 = scmp.ne.s32.totalorder %s44, %s45
    %p59 = scmp.eq.s32.totalorder %s37, 1
    %p60 = por %p58, %p59
    %p62 = scmp.ne.s32.totalorder %s45, %s61
    %p63 = scmp.eq.s32.totalorder %s37, 0
    %p64 = por %p62, %p63
    %s65 = ssub.s32 %s31, %s38
    %p66 = scmp.eq.s32.totalorder %s65, 0
    %s68 = sadd.s32 %s67, 1
    %s69 = scalar_select %p66, %s67, %s68
    %p72 = pneg %p66
    %p73 = scmp.eq.s32.totalorder %s31, 1
    %p74 = por %p72, %p73
    %p75 = scmp.ne.s32.totalorder %s67, %s70
    %p76 = scmp.eq.s32.totalorder %s31, 0
    %p77 = por %p75, %p76
    %p78 = scmp.ne.s32.totalorder %s67, %s70
    %p79 = scmp.eq.s32.totalorder %s36, 1
    %p80 = por %p78, %p79
    %p81 = scmp.ne.s32.totalorder %s70, %s71
    %p82 = scmp.eq.s32.totalorder %s36, 0
    %p83 = por %p81, %p82
    %p84 = scmp.ne.s32.totalorder %s70, %s71
    %p85 = scmp.eq.s32.totalorder %s37, 1
    %p86 = por %p84, %p85
    %p88 = scmp.ne.s32.totalorder %s71, %s87
    %p89 = scmp.eq.s32.totalorder %s37, 0
    %p90 = por %p88, %p89
    %s92 = sadd.s32 %s91, 1
    %p95 = scmp.eq.s32.totalorder %s31, 1
    %p96 = scmp.ne.s32.totalorder %s91, %s93
    %p97 = scmp.eq.s32.totalorder %s31, 0
    %p98 = por %p96, %p97
    %p99 = scmp.ne.s32.totalorder %s91, %s93
    %p100 = scmp.eq.s32.totalorder %s36, 1
    %p101 = por %p99, %p100
    %p102 = scmp.ne.s32.totalorder %s93, %s94
    %p103 = scmp.eq.s32.totalorder %s36, 0
    %p104 = por %p102, %p103
    %p105 = scmp.ne.s32.totalorder %s93, %s94
    %p106 = scmp.eq.s32.totalorder %s37, 1
    %p107 = por %p105, %p106
    %p109 = scmp.ne.s32.totalorder %s94, %s108
    %p110 = scmp.eq.s32.totalorder %s37, 0
    %p111 = por %p109, %p110
    %s113 = sadd.s32 %s112, 1
    %p116 = scmp.eq.s32.totalorder %s31, 1
    %p117 = scmp.ne.s32.totalorder %s112, %s114
    %p118 = scmp.eq.s32.totalorder %s31, 0
    %p119 = por %p117, %p118
    %p120 = scmp.ne.s32.totalorder %s112, %s114
    %p121 = scmp.eq.s32.totalorder %s36, 1
    %p122 = por %p120, %p121
    %p123 = scmp.ne.s32.totalorder %s114, %s115
    %p124 = scmp.eq.s32.totalorder %s36, 0
    %p125 = por %p123, %p124
    %p126 = scmp.ne.s32.totalorder %s114, %s115
    %p127 = scmp.eq.s32.totalorder %s37, 1
    %p128 = por %p126, %p127
    %p130 = scmp.ne.s32.totalorder %s115, %s129
    %p131 = scmp.eq.s32.totalorder %s37, 0
    %p132 = por %p130, %p131
    %s134 = sadd.s32 %s133, 1
    %p137 = scmp.eq.s32.totalorder %s31, 1
    %p138 = scmp.ne.s32.totalorder %s133, %s135
    %p139 = scmp.eq.s32.totalorder %s31, 0
    %p140 = por %p138, %p139
    %p141 = scmp.ne.s32.totalorder %s133, %s135
    %p142 = scmp.eq.s32.totalorder %s36, 1
    %p143 = por %p141, %p142
    %p144 = scmp.ne.s32.totalorder %s135, %s136
    %p145 = scmp.eq.s32.totalorder %s36, 0
    %p146 = por %p144, %p145
    %p147 = scmp.ne.s32.totalorder %s135, %s136
    %p148 = scmp.eq.s32.totalorder %s37, 1
    %p149 = por %p147, %p148
    %p151 = scmp.ne.s32.totalorder %s136, %s150
    %p152 = scmp.eq.s32.totalorder %s37, 0
    %p153 = por %p151, %p152
    %s155 = sadd.s32 %s154, 1
    %p158 = scmp.eq.s32.totalorder %s31, 1
    %p159 = scmp.ne.s32.totalorder %s154, %s156
    %p160 = scmp.eq.s32.totalorder %s31, 0
    %p161 = por %p159, %p160
    %p162 = scmp.ne.s32.totalorder %s154, %s156
    %p163 = scmp.eq.s32.totalorder %s36, 1
    %p164 = por %p162, %p163
    %p165 = scmp.ne.s32.totalorder %s156, %s157
    %p166 = scmp.eq.s32.totalorder %s36, 0
    %p167 = por %p165, %p166
    %p168 = scmp.ne.s32.totalorder %s156, %s157
    %p169 = scmp.eq.s32.totalorder %s37, 1
    %p170 = por %p168, %p169
    %p172 = scmp.ne.s32.totalorder %s157, %s171
    %p173 = scmp.eq.s32.totalorder %s37, 0
    %p174 = por %p172, %p173
    %s176 = sadd.s32 %s175, 1
    %p179 = scmp.eq.s32.totalorder %s31, 1
    %p180 = scmp.ne.s32.totalorder %s175, %s177
    %p181 = scmp.eq.s32.totalorder %s31, 0
    %p182 = por %p180, %p181
    %p183 = scmp.ne.s32.totalorder %s175, %s177
    %p184 = scmp.eq.s32.totalorder %s36, 1
    %p185 = por %p183, %p184
    %p186 = scmp.ne.s32.totalorder %s177, %s178
    %p187 = scmp.eq.s32.totalorder %s36, 0
    %p188 = por %p186, %p187
    %p189 = scmp.ne.s32.totalorder %s177, %s178
    %p190 = scmp.eq.s32.totalorder %s37, 1
    %p191 = por %p189, %p190
    %p193 = scmp.ne.s32.totalorder %s178, %s192
    %p194 = scmp.eq.s32.totalorder %s37, 0
    %p195 = por %p193, %p194
    %s197 = sadd.s32 %s196, 1
    %p200 = scmp.eq.s32.totalorder %s31, 1
    %p201 = scmp.ne.s32.totalorder %s196, %s198
    %p202 = scmp.eq.s32.totalorder %s31, 0
    %p203 = por %p201, %p202
    %p204 = scmp.ne.s32.totalorder %s196, %s198
    %p205 = scmp.eq.s32.totalorder %s36, 1
    %p206 = por %p204, %p205
    %p207 = scmp.ne.s32.totalorder %s198, %s199
    %p208 = scmp.eq.s32.totalorder %s36, 0
    %p209 = por %p207, %p208
    %p210 = scmp.ne.s32.totalorder %s198, %s199
    %p211 = scmp.eq.s32.totalorder %s37, 1
    %p212 = por %p210, %p211
    %p214 = scmp.ne.s32.totalorder %s199, %s213
    %p215 = scmp.eq.s32.totalorder %s37, 0
    %p216 = por %p214, %p215
    %s218 = sadd.s32 %s217, 1
    %p221 = scmp.eq.s32.totalorder %s31, 1
    %p222 = scmp.ne.s32.totalorder %s217, %s219
    %p223 = scmp.eq.s32.totalorder %s31, 0
    %p224 = por %p222, %p223
    %p225 = scmp.ne.s32.totalorder %s217, %s219
    %p226 = scmp.eq.s32.totalorder %s36, 1
    %p227 = por %p225, %p226
    %p228 = scmp.ne.s32.totalorder %s219, %s220
    %p229 = scmp.eq.s32.totalorder %s36, 0
    %p230 = por %p228, %p229
    %p231 = scmp.ne.s32.totalorder %s219, %s220
    %p232 = scmp.eq.s32.totalorder %s37, 1
    %p233 = por %p231, %p232
    %p235 = scmp.ne.s32.totalorder %s220, %s234
    %p236 = scmp.eq.s32.totalorder %s37, 0
    %p237 = por %p235, %p236
    %s239 = sadd.s32 %s238, 1
    %p242 = scmp.eq.s32.totalorder %s31, 1
    %p243 = scmp.ne.s32.totalorder %s238, %s240
    %p244 = scmp.eq.s32.totalorder %s31, 0
    %p245 = por %p243, %p244
    %p246 = scmp.ne.s32.totalorder %s238, %s240
    %p247 = scmp.eq.s32.totalorder %s36, 1
    %p248 = por %p246, %p247
    %p249 = scmp.ne.s32.totalorder %s240, %s241
    %p250 = scmp.eq.s32.totalorder %s36, 0
    %p251 = por %p249, %p250
    %p252 = scmp.ne.s32.totalorder %s240, %s241
    %p253 = scmp.eq.s32.totalorder %s37, 1
    %p254 = por %p252, %p253
    %p256 = scmp.ne.s32.totalorder %s241, %s255
    %p257 = scmp.eq.s32.totalorder %s37, 0
    %p258 = por %p256, %p257
    %s260 = sadd.s32 %s259, 1
    %p263 = scmp.eq.s32.totalorder %s31, 1
    %p264 = scmp.ne.s32.totalorder %s259, %s261
    %p265 = scmp.eq.s32.totalorder %s31, 0
    %p266 = por %p264, %p265
    %p267 = scmp.ne.s32.totalorder %s259, %s261
    %p268 = scmp.eq.s32.totalorder %s36, 1
    %p269 = por %p267, %p268
    %p270 = scmp.ne.s32.totalorder %s261, %s262
    %p271 = scmp.eq.s32.totalorder %s36, 0
    %p272 = por %p270, %p271
    %p273 = scmp.ne.s32.totalorder %s261, %s262
    %p274 = scmp.eq.s32.totalorder %s37, 1
    %p275 = por %p273, %p274
    %p277 = scmp.ne.s32.totalorder %s262, %s276
    %p278 = scmp.eq.s32.totalorder %s37, 0
    %p279 = por %p277, %p278
    %s281 = sadd.s32 %s280, 1
    %p284 = scmp.eq.s32.totalorder %s31, 1
    %p285 = scmp.ne.s32.totalorder %s280, %s282
    %p286 = scmp.eq.s32.totalorder %s31, 0
    %p287 = por %p285, %p286
    %p288 = scmp.ne.s32.totalorder %s280, %s282
    %p289 = scmp.eq.s32.totalorder %s36, 1
    %p290 = por %p288, %p289
    %p291 = scmp.ne.s32.totalorder %s282, %s283
    %p292 = scmp.eq.s32.totalorder %s36, 0
    %p293 = por %p291, %p292
    %p294 = scmp.ne.s32.totalorder %s282, %s283
    %p295 = scmp.eq.s32.totalorder %s37, 1
    %p296 = por %p294, %p295
    %p298 = scmp.ne.s32.totalorder %s283, %s297
    %p299 = scmp.eq.s32.totalorder %s37, 0
    %p300 = por %p298, %p299
    %s302 = sadd.s32 %s301, 1
    %p305 = scmp.eq.s32.totalorder %s31, 1
    %p306 = scmp.ne.s32.totalorder %s301, %s303
    %p307 = scmp.eq.s32.totalorder %s31, 0
    %p308 = por %p306, %p307
    %p309 = scmp.ne.s32.totalorder %s301, %s303
    %p310 = scmp.eq.s32.totalorder %s36, 1
    %p311 = por %p309, %p310
    %p312 = scmp.ne.s32.totalorder %s303, %s304
    %p313 = scmp.eq.s32.totalorder %s36, 0
    %p314 = por %p312, %p313
    %p315 = scmp.ne.s32.totalorder %s303, %s304
    %p316 = scmp.eq.s32.totalorder %s37, 1
    %p317 = por %p315, %p316
    %p319 = scmp.ne.s32.totalorder %s304, %s318
    %p320 = scmp.eq.s32.totalorder %s37, 0
    %p321 = por %p319, %p320
    %s323 = sadd.s32 %s322, 1
    %p326 = scmp.eq.s32.totalorder %s31, 1
    %p327 = scmp.ne.s32.totalorder %s322, %s324
    %p328 = scmp.eq.s32.totalorder %s31, 0
    %p329 = por %p327, %p328
    %p330 = scmp.ne.s32.totalorder %s322, %s324
    %p331 = scmp.eq.s32.totalorder %s36, 1
    %p332 = por %p330, %p331
    %p333 = scmp.ne.s32.totalorder %s324, %s325
    %p334 = scmp.eq.s32.totalorder %s36, 0
    %p335 = por %p333, %p334
    %p336 = scmp.ne.s32.totalorder %s324, %s325
    %p337 = scmp.eq.s32.totalorder %s37, 1
    %p338 = por %p336, %p337
    %p340 = scmp.ne.s32.totalorder %s325, %s339
    %p341 = scmp.eq.s32.totalorder %s37, 0
    %p342 = por %p340, %p341
    %s344 = sadd.s32 %s343, 1
    %p347 = scmp.eq.s32.totalorder %s31, 1
    %p348 = scmp.ne.s32.totalorder %s343, %s345
    %p349 = scmp.eq.s32.totalorder %s31, 0
    %p350 = por %p348, %p349
    %p351 = scmp.ne.s32.totalorder %s343, %s345
    %p352 = scmp.eq.s32.totalorder %s36, 1
    %p353 = por %p351, %p352
    %p354 = scmp.ne.s32.totalorder %s345, %s346
    %p355 = scmp.eq.s32.totalorder %s36, 0
    %p356 = por %p354, %p355
    %p357 = scmp.ne.s32.totalorder %s345, %s346
    %p358 = scmp.eq.s32.totalorder %s37, 1
    %p359 = por %p357, %p358
    %p361 = scmp.ne.s32.totalorder %s346, %s360
    %p362 = scmp.eq.s32.totalorder %s37, 0
    %p363 = por %p361, %p362
    %s365 = sadd.s32 %s364, 1
    %p368 = scmp.eq.s32.totalorder %s31, 1
    %p369 = scmp.ne.s32.totalorder %s364, %s366
    %p370 = scmp.eq.s32.totalorder %s31, 0
    %p371 = por %p369, %p370
    %p372 = scmp.ne.s32.totalorder %s364, %s366
    %p373 = scmp.eq.s32.totalorder %s36, 1
    %p374 = por %p372, %p373
    %p375 = scmp.ne.s32.totalorder %s366, %s367
    %p376 = scmp.eq.s32.totalorder %s36, 0
    %p377 = por %p375, %p376
    %p378 = scmp.ne.s32.totalorder %s366, %s367
    %p379 = scmp.eq.s32.totalorder %s37, 1
    %p380 = por %p378, %p379
    %p382 = scmp.ne.s32.totalorder %s367, %s381
    %p383 = scmp.eq.s32.totalorder %s37, 0
    %p384 = por %p382, %p383
    %s386 = sadd.s32 %s385, 1
    %p389 = scmp.eq.s32.totalorder %s31, 1
    %p390 = scmp.ne.s32.totalorder %s385, %s387
    %p391 = scmp.eq.s32.totalorder %s31, 0
    %p392 = por %p390, %p391
    %p393 = scmp.ne.s32.totalorder %s385, %s387
    %p394 = scmp.eq.s32.totalorder %s36, 1
    %p395 = por %p393, %p394
    %p396 = scmp.ne.s32.totalorder %s387, %s388
    %p397 = scmp.eq.s32.totalorder %s36, 0
    %p398 = por %p396, %p397
    %p399 = scmp.ne.s32.totalorder %s387, %s388
    %p400 = scmp.eq.s32.totalorder %s37, 1
    %p401 = por %p399, %p400
    %p403 = scmp.ne.s32.totalorder %s388, %s402
    %p404 = scmp.eq.s32.totalorder %s37, 0
    %p405 = por %p403, %p404
    %s407 = sadd.s32 %s406, 1
    %p410 = scmp.eq.s32.totalorder %s31, 1
    %p411 = scmp.ne.s32.totalorder %s406, %s408
    %p412 = scmp.eq.s32.totalorder %s31, 0
    %p413 = por %p411, %p412
    %p414 = scmp.ne.s32.totalorder %s406, %s408
    %p415 = scmp.eq.s32.totalorder %s36, 1
    %p416 = por %p414, %p415
    %p417 = scmp.ne.s32.totalorder %s408, %s409
    %p418 = scmp.eq.s32.totalorder %s36, 0
    %p419 = por %p417, %p418
    %p420 = scmp.ne.s32.totalorder %s408, %s409
    %p421 = scmp.eq.s32.totalorder %s37, 1
    %p422 = por %p420, %p421
    %p424 = scmp.ne.s32.totalorder %s409, %s423
    %p425 = scmp.eq.s32.totalorder %s37, 0
    %p426 = por %p424, %p425
    %s428 = sadd.s32 %s427, 1
    %p431 = scmp.eq.s32.totalorder %s31, 1
    %p432 = scmp.ne.s32.totalorder %s427, %s429
    %p433 = scmp.eq.s32.totalorder %s31, 0
    %p434 = por %p432, %p433
    %p435 = scmp.ne.s32.totalorder %s427, %s429
    %p436 = scmp.eq.s32.totalorder %s36, 1
    %p437 = por %p435, %p436
    %p438 = scmp.ne.s32.totalorder %s429, %s430
    %p439 = scmp.eq.s32.totalorder %s36, 0
    %p440 = por %p438, %p439
    %p441 = scmp.ne.s32.totalorder %s429, %s430
    %p442 = scmp.eq.s32.totalorder %s37, 1
    %p443 = por %p441, %p442
    %p445 = scmp.ne.s32.totalorder %s430, %s444
    %p446 = scmp.eq.s32.totalorder %s37, 0
    %p447 = por %p445, %p446
    %s449 = sadd.s32 %s448, 1
    %p452 = scmp.eq.s32.totalorder %s31, 1
    %p453 = scmp.ne.s32.totalorder %s448, %s450
    %p454 = scmp.eq.s32.totalorder %s31, 0
    %p455 = por %p453, %p454
    %p456 = scmp.ne.s32.totalorder %s448, %s450
    %p457 = scmp.eq.s32.totalorder %s36, 1
    %p458 = por %p456, %p457
    %p459 = scmp.ne.s32.totalorder %s450, %s451
    %p460 = scmp.eq.s32.totalorder %s36, 0
    %p461 = por %p459, %p460
    %p462 = scmp.ne.s32.totalorder %s450, %s451
    %p463 = scmp.eq.s32.totalorder %s37, 1
    %p464 = por %p462, %p463
    %p466 = scmp.ne.s32.totalorder %s451, %s465
    %p467 = scmp.eq.s32.totalorder %s37, 0
    %p468 = por %p466, %p467
    %s470 = sadd.s32 %s469, 1
    %p473 = scmp.eq.s32.totalorder %s31, 1
    %p474 = scmp.ne.s32.totalorder %s469, %s471
    %p475 = scmp.eq.s32.totalorder %s31, 0
    %p476 = por %p474, %p475
    %p477 = scmp.ne.s32.totalorder %s469, %s471
    %p478 = scmp.eq.s32.totalorder %s36, 1
    %p479 = por %p477, %p478
    %p480 = scmp.ne.s32.totalorder %s471, %s472
    %p481 = scmp.eq.s32.totalorder %s36, 0
    %p482 = por %p480, %p481
    %p483 = scmp.ne.s32.totalorder %s471, %s472
    %p484 = scmp.eq.s32.totalorder %s37, 1
    %p485 = por %p483, %p484
    %p487 = scmp.ne.s32.totalorder %s472, %s486
    %p488 = scmp.eq.s32.totalorder %s37, 0
    %p489 = por %p487, %p488
    %s491 = sadd.s32 %s490, 1
    %p494 = scmp.eq.s32.totalorder %s31, 1
    %p495 = scmp.ne.s32.totalorder %s490, %s492
    %p496 = scmp.eq.s32.totalorder %s31, 0
    %p497 = por %p495, %p496
    %p498 = scmp.ne.s32.totalorder %s490, %s492
    %p499 = scmp.eq.s32.totalorder %s36, 1
    %p500 = por %p498, %p499
    %p501 = scmp.ne.s32.totalorder %s492, %s493
    %p502 = scmp.eq.s32.totalorder %s36, 0
    %p503 = por %p501, %p502
    %p504 = scmp.ne.s32.totalorder %s492, %s493
    %p505 = scmp.eq.s32.totalorder %s37, 1
    %p506 = por %p504, %p505
    %p508 = scmp.ne.s32.totalorder %s493, %s507
    %p509 = scmp.eq.s32.totalorder %s37, 0
    %p510 = por %p508, %p509
    %s512 = sadd.s32 %s511, 1
    %p515 = scmp.eq.s32.totalorder %s31, 1
    %p516 = scmp.ne.s32.totalorder %s511, %s513
    %p517 = scmp.eq.s32.totalorder %s31, 0
    %p518 = por %p516, %p517
    %p519 = scmp.ne.s32.totalorder %s511, %s513
    %p520 = scmp.eq.s32.totalorder %s36, 1
    %p521 = por %p519, %p520
    %p522 = scmp.ne.s32.totalorder %s513, %s514
    %p523 = scmp.eq.s32.totalorder %s36, 0
    %p524 = por %p522, %p523
    %p525 = scmp.ne.s32.totalorder %s513, %s514
    %p526 = scmp.eq.s32.totalorder %s37, 1
    %p527 = por %p525, %p526
    %p529 = scmp.ne.s32.totalorder %s514, %s528
    %p530 = scmp.eq.s32.totalorder %s37, 0
    %p531 = por %p529, %p530
    %s533 = sadd.s32 %s532, 1
    %p536 = scmp.eq.s32.totalorder %s31, 1
    %p537 = scmp.ne.s32.totalorder %s532, %s534
    %p538 = scmp.eq.s32.totalorder %s31, 0
    %p539 = por %p537, %p538
    %p540 = scmp.ne.s32.totalorder %s532, %s534
    %p541 = scmp.eq.s32.totalorder %s36, 1
    %p542 = por %p540, %p541
    %p543 = scmp.ne.s32.totalorder %s534, %s535
    %p544 = scmp.eq.s32.totalorder %s36, 0
    %p545 = por %p543, %p544
    %p546 = scmp.ne.s32.totalorder %s534, %s535
    %p547 = scmp.eq.s32.totalorder %s37, 1
    %p548 = por %p546, %p547
    %p550 = scmp.ne.s32.totalorder %s535, %s549
    %p551 = scmp.eq.s32.totalorder %s37, 0
    %p552 = por %p550, %p551
    %s554 = sadd.s32 %s553, 1
    %p557 = scmp.eq.s32.totalorder %s31, 1
    %p558 = scmp.ne.s32.totalorder %s553, %s555
    %p559 = scmp.eq.s32.totalorder %s31, 0
    %p560 = por %p558, %p559
    %p561 = scmp.ne.s32.totalorder %s553, %s555
    %p562 = scmp.eq.s32.totalorder %s36, 1
    %p563 = por %p561, %p562
    %p564 = scmp.ne.s32.totalorder %s555, %s556
    %p565 = scmp.eq.s32.totalorder %s36, 0
    %p566 = por %p564, %p565
    %p567 = scmp.ne.s32.totalorder %s555, %s556
    %p568 = scmp.eq.s32.totalorder %s37, 1
    %p569 = por %p567, %p568
    %p571 = scmp.ne.s32.totalorder %s556, %s570
    %p572 = scmp.eq.s32.totalorder %s37, 0
    %p573 = por %p571, %p572
    %s574 = ssub.s32 %s31, %s38
    %p575 = scmp.eq.s32.totalorder %s574, 0
    %s577 = sadd.s32 %s576, 1
    %s578 = scalar_select %p575, %s576, %s577
    %p581 = pneg %p575
    %p582 = scmp.eq.s32.totalorder %s31, 1
    %p583 = por %p581, %p582
    %p584 = scmp.ne.s32.totalorder %s576, %s579
    %p585 = scmp.eq.s32.totalorder %s31, 0
    %p586 = por %p584, %p585
    %p587 = scmp.ne.s32.totalorder %s576, %s579
    %p588 = scmp.eq.s32.totalorder %s36, 1
    %p589 = por %p587, %p588
    %p590 = scmp.ne.s32.totalorder %s579, %s580
    %p591 = scmp.eq.s32.totalorder %s36, 0
    %p592 = por %p590, %p591
    %p593 = scmp.ne.s32.totalorder %s579, %s580
    %p594 = scmp.eq.s32.totalorder %s37, 1
    %p595 = por %p593, %p594
    %p597 = scmp.ne.s32.totalorder %s580, %s596
    %p598 = scmp.eq.s32.totalorder %s37, 0
    %p599 = por %p597, %p598
    %p600 = scmp.le.s32.totalorder 1, %s31
    %p601 = scmp.lt.s32.totalorder %s31, 3
    %p602 = pnand %p600, %p601
    %p603 = pneg %p602
    // Predicated region
    $region9: #{sconv_nr3_gn_forward.1} parent=5 // pred_check
      _
    $region10: #{sconv_nr3_gn_forward.1} parent=5 // pred_check_branch
      %605 = sbr.rel (%p602) target = $region12
    $region11: #{sconv_nr3_gn_forward.1} parent=5 // pred_region
      %s606 = ssub.s32 %s31, 1
      // Predicated region
      $region13: #{sconv_nr3_gn_forward.1} parent=11 // pred_check
        %p607 = pneg %p104
      $region14: #{sconv_nr3_gn_forward.1} parent=11 // pred_check_branch
        %609 = sbr.rel (%p607) target = $region16
      $region15: #{sconv_nr3_gn_forward.1} parent=11 // pred_region
        _
      $region16: #{sconv_nr3_gn_forward.1} parent=11 // pred_fallthru
        _
      // Predicated region
      $region17: #{sconv_nr3_gn_forward.1} parent=11 // pred_check
        %p610 = pneg %p125
      $region18: #{sconv_nr3_gn_forward.1} parent=11 // pred_check_branch
        %612 = sbr.rel (%p610) target = $region20
      $region19: #{sconv_nr3_gn_forward.1} parent=11 // pred_region
        _
      $region20: #{sconv_nr3_gn_forward.1} parent=11 // pred_fallthru
        _
      // Predicated region
      $region21: #{sconv_nr3_gn_forward.1} parent=11 // pred_check
        %p613 = pneg %p146
      $region22: #{sconv_nr3_gn_forward.1} parent=11 // pred_check_branch
        %615 = sbr.rel (%p613) target = $region24
      $region23: #{sconv_nr3_gn_forward.1} parent=11 // pred_region
        _
      $region24: #{sconv_nr3_gn_forward.1} parent=11 // pred_fallthru
        _
      // Predicated region
      $region25: #{sconv_nr3_gn_forward.1} parent=11 // pred_check
        %p616 = pneg %p167
      $region26: #{sconv_nr3_gn_forward.1} parent=11 // pred_check_branch
        %618 = sbr.rel (%p616) target = $region28
      $region27: #{sconv_nr3_gn_forward.1} parent=11 // pred_region
        _
      $region28: #{sconv_nr3_gn_forward.1} parent=11 // pred_fallthru
        _
      // Predicated region
      $region29: #{sconv_nr3_gn_forward.1} parent=11 // pred_check
        %p619 = pneg %p188
      $region30: #{sconv_nr3_gn_forward.1} parent=11 // pred_check_branch
        %621 = sbr.rel (%p619) target = $region32
      $region31: #{sconv_nr3_gn_forward.1} parent=11 // pred_region
        _
      $region32: #{sconv_nr3_gn_forward.1} parent=11 // pred_fallthru
        _
      // Predicated region
      $region33: #{sconv_nr3_gn_forward.1} parent=11 // pred_check
        %p622 = pneg %p209
      $region34: #{sconv_nr3_gn_forward.1} parent=11 // pred_check_branch
        %624 = sbr.rel (%p622) target = $region36
      $region35: #{sconv_nr3_gn_forward.1} parent=11 // pred_region
        _
      $region36: #{sconv_nr3_gn_forward.1} parent=11 // pred_fallthru
        _
      // Predicated region
      $region37: #{sconv_nr3_gn_forward.1} parent=11 // pred_check
        %p625 = pneg %p230
      $region38: #{sconv_nr3_gn_forward.1} parent=11 // pred_check_branch
        %627 = sbr.rel (%p625) target = $region40
      $region39: #{sconv_nr3_gn_forward.1} parent=11 // pred_region
        _
      $region40: #{sconv_nr3_gn_forward.1} parent=11 // pred_fallthru
        _
      // Predicated region
      $region41: #{sconv_nr3_gn_forward.1} parent=11 // pred_check
        %p628 = pneg %p251
      $region42: #{sconv_nr3_gn_forward.1} parent=11 // pred_check_branch
        %630 = sbr.rel (%p628) target = $region44
      $region43: #{sconv_nr3_gn_forward.1} parent=11 // pred_region
        _
      $region44: #{sconv_nr3_gn_forward.1} parent=11 // pred_fallthru
        _
      // Predicated region
      $region45: #{sconv_nr3_gn_forward.1} parent=11 // pred_check
        %p631 = pneg %p272
      $region46: #{sconv_nr3_gn_forward.1} parent=11 // pred_check_branch
        %633 = sbr.rel (%p631) target = $region48
      $region47: #{sconv_nr3_gn_forward.1} parent=11 // pred_region
        _
      $region48: #{sconv_nr3_gn_forward.1} parent=11 // pred_fallthru
        _
      // Predicated region
      $region49: #{sconv_nr3_gn_forward.1} parent=11 // pred_check
        %p634 = pneg %p293
      $region50: #{sconv_nr3_gn_forward.1} parent=11 // pred_check_branch
        %636 = sbr.rel (%p634) target = $region52
      $region51: #{sconv_nr3_gn_forward.1} parent=11 // pred_region
        _
      $region52: #{sconv_nr3_gn_forward.1} parent=11 // pred_fallthru
        _
      // Predicated region
      $region53: #{sconv_nr3_gn_forward.1} parent=11 // pred_check
        %p637 = pneg %p314
      $region54: #{sconv_nr3_gn_forward.1} parent=11 // pred_check_branch
        %639 = sbr.rel (%p637) target = $region56
      $region55: #{sconv_nr3_gn_forward.1} parent=11 // pred_region
        _
      $region56: #{sconv_nr3_gn_forward.1} parent=11 // pred_fallthru
        _
      // Predicated region
      $region57: #{sconv_nr3_gn_forward.1} parent=11 // pred_check
        %p640 = pneg %p335
      $region58: #{sconv_nr3_gn_forward.1} parent=11 // pred_check_branch
        %642 = sbr.rel (%p640) target = $region60
      $region59: #{sconv_nr3_gn_forward.1} parent=11 // pred_region
        _
      $region60: #{sconv_nr3_gn_forward.1} parent=11 // pred_fallthru
        _
      // Predicated region
      $region61: #{sconv_nr3_gn_forward.1} parent=11 // pred_check
        %p643 = pneg %p356
      $region62: #{sconv_nr3_gn_forward.1} parent=11 // pred_check_branch
        %645 = sbr.rel (%p643) target = $region64
      $region63: #{sconv_nr3_gn_forward.1} parent=11 // pred_region
        _
      $region64: #{sconv_nr3_gn_forward.1} parent=11 // pred_fallthru
        _
      // Predicated region
      $region65: #{sconv_nr3_gn_forward.1} parent=11 // pred_check
        %p646 = pneg %p377
      $region66: #{sconv_nr3_gn_forward.1} parent=11 // pred_check_branch
        %648 = sbr.rel (%p646) target = $region68
      $region67: #{sconv_nr3_gn_forward.1} parent=11 // pred_region
        _
      $region68: #{sconv_nr3_gn_forward.1} parent=11 // pred_fallthru
        _
      // Predicated region
      $region69: #{sconv_nr3_gn_forward.1} parent=11 // pred_check
        %p649 = pneg %p398
      $region70: #{sconv_nr3_gn_forward.1} parent=11 // pred_check_branch
        %651 = sbr.rel (%p649) target = $region72
      $region71: #{sconv_nr3_gn_forward.1} parent=11 // pred_region
        _
      $region72: #{sconv_nr3_gn_forward.1} parent=11 // pred_fallthru
        _
      // Predicated region
      $region73: #{sconv_nr3_gn_forward.1} parent=11 // pred_check
        %p652 = pneg %p419
      $region74: #{sconv_nr3_gn_forward.1} parent=11 // pred_check_branch
        %654 = sbr.rel (%p652) target = $region76
      $region75: #{sconv_nr3_gn_forward.1} parent=11 // pred_region
        _
      $region76: #{sconv_nr3_gn_forward.1} parent=11 // pred_fallthru
        _
      // Predicated region
      $region77: #{sconv_nr3_gn_forward.1} parent=11 // pred_check
        %p655 = pneg %p440
      $region78: #{sconv_nr3_gn_forward.1} parent=11 // pred_check_branch
        %657 = sbr.rel (%p655) target = $region80
      $region79: #{sconv_nr3_gn_forward.1} parent=11 // pred_region
        _
      $region80: #{sconv_nr3_gn_forward.1} parent=11 // pred_fallthru
        _
      // Predicated region
      $region81: #{sconv_nr3_gn_forward.1} parent=11 // pred_check
        %p658 = pneg %p461
      $region82: #{sconv_nr3_gn_forward.1} parent=11 // pred_check_branch
        %660 = sbr.rel (%p658) target = $region84
      $region83: #{sconv_nr3_gn_forward.1} parent=11 // pred_region
        _
      $region84: #{sconv_nr3_gn_forward.1} parent=11 // pred_fallthru
        _
      // Predicated region
      $region85: #{sconv_nr3_gn_forward.1} parent=11 // pred_check
        %p661 = pneg %p482
      $region86: #{sconv_nr3_gn_forward.1} parent=11 // pred_check_branch
        %663 = sbr.rel (%p661) target = $region88
      $region87: #{sconv_nr3_gn_forward.1} parent=11 // pred_region
        _
      $region88: #{sconv_nr3_gn_forward.1} parent=11 // pred_fallthru
        _
      // Predicated region
      $region89: #{sconv_nr3_gn_forward.1} parent=11 // pred_check
        %p664 = pneg %p503
      $region90: #{sconv_nr3_gn_forward.1} parent=11 // pred_check_branch
        %666 = sbr.rel (%p664) target = $region92
      $region91: #{sconv_nr3_gn_forward.1} parent=11 // pred_region
        _
      $region92: #{sconv_nr3_gn_forward.1} parent=11 // pred_fallthru
        _
      // Predicated region
      $region93: #{sconv_nr3_gn_forward.1} parent=11 // pred_check
        %p667 = pneg %p524
      $region94: #{sconv_nr3_gn_forward.1} parent=11 // pred_check_branch
        %669 = sbr.rel (%p667) target = $region96
      $region95: #{sconv_nr3_gn_forward.1} parent=11 // pred_region
        _
      $region96: #{sconv_nr3_gn_forward.1} parent=11 // pred_fallthru
        _
      // Predicated region
      $region97: #{sconv_nr3_gn_forward.1} parent=11 // pred_check
        %p670 = pneg %p545
      $region98: #{sconv_nr3_gn_forward.1} parent=11 // pred_check_branch
        %672 = sbr.rel (%p670) target = $region100
      $region99: #{sconv_nr3_gn_forward.1} parent=11 // pred_region
        _
      $region100: #{sconv_nr3_gn_forward.1} parent=11 // pred_fallthru
        _
      // Predicated region
      $region101: #{sconv_nr3_gn_forward.1} parent=11 // pred_check
        %p673 = pneg %p566
      $region102: #{sconv_nr3_gn_forward.1} parent=11 // pred_check_branch
        %675 = sbr.rel (%p673) target = $region104
      $region103: #{sconv_nr3_gn_forward.1} parent=11 // pred_region
        _
      $region104: #{sconv_nr3_gn_forward.1} parent=11 // pred_fallthru
        _
    $region12: #{sconv_nr3_gn_forward.1} parent=5 // pred_fallthru
      _
    %p676 = scmp.lt.s32.totalorder %s31, 2
    // Predicated region
    $region105: #{sconv_nr3_gn_forward.1} parent=5 // pred_check
      %p677 = pneg %p676
    $region106: #{sconv_nr3_gn_forward.1} parent=5 // pred_check_branch
      %679 = sbr.rel (%p677) target = $region108
    $region107: #{sconv_nr3_gn_forward.1} parent=5 // pred_region
      // Predicated region
      $region109: #{sconv_nr3_gn_forward.1} parent=107 // pred_check
        %p680 = pneg %p51
      $region110: #{sconv_nr3_gn_forward.1} parent=107 // pred_check_branch
        %682 = sbr.rel (%p680) target = $region112
      $region111: #{sconv_nr3_gn_forward.1} parent=107 // pred_region
        %p683 = scmp.lt.s32.totalorder %s31, 1
        %s684 = scalar_select %p683, %s31, 1
        %s685 = smul.addr %s684, 2
        %s686 = smul.addr %s685, 8
        %s687 = scalar_lea.vmem %s0, %s686
      $region112: #{sconv_nr3_gn_forward.1} parent=107 // pred_fallthru
        _
      // Predicated region
      $region113: #{sconv_nr3_gn_forward.1} parent=107 // pred_check
        %p688 = pneg %p77
      $region114: #{sconv_nr3_gn_forward.1} parent=107 // pred_check_branch
        %690 = sbr.rel (%p688) target = $region116
      $region115: #{sconv_nr3_gn_forward.1} parent=107 // pred_region
        %p691 = scmp.lt.s32.totalorder %s31, 1
        %s692 = scalar_select %p691, %s31, 1
        %s693 = smul.addr %s692, 2
        %s694 = scalar_lea.vmem %s1, %s693
      $region116: #{sconv_nr3_gn_forward.1} parent=107 // pred_fallthru
        _
    $region108: #{sconv_nr3_gn_forward.1} parent=5 // pred_fallthru
      _
    %p695 = scmp.le.s32.totalorder 1, %s31
    %p696 = scmp.lt.s32.totalorder %s31, 3
    %p697 = pnand %p695, %p696
    %p698 = pneg %p697
    // Predicated region
    $region117: #{sconv_nr3_gn_forward.1} parent=5 // pred_check
      _
    $region118: #{sconv_nr3_gn_forward.1} parent=5 // pred_check_branch
      %700 = sbr.rel (%p697) target = $region120
    $region119: #{sconv_nr3_gn_forward.1} parent=5 // pred_region
      %s701 = ssub.s32 %s31, 1
      %p702 = scmp.lt.s32.totalorder %s36, 1
      %s703 = scalar_select %p702, %s36, 1
      %s704 = smul.addr %s703, 2
      %s705 = smul.addr %s704, 8
      %s706 = scalar_lea.vmem %s0, %s705
      %p707 = pneg %p57
      %p708 = pneg %p54
      %p709 = scmp.lt.s32.totalorder %s36, 1
      %s710 = scalar_select %p709, %s36, 1
      %s711 = smul.addr %s710, 2
      %s712 = scalar_lea.vmem %s1, %s711
      %p713 = pneg %p83
      %p714 = pneg %p80
      %p715 = pneg %p104
      %p716 = pneg %p101
      %p717 = pneg %p125
      %p718 = pneg %p122
      %p719 = pneg %p146
      %p720 = pneg %p143
      %p721 = pneg %p167
      %p722 = pneg %p164
      %p723 = pneg %p188
      %p724 = pneg %p185
      %p725 = pneg %p209
      %p726 = pneg %p206
      %p727 = pneg %p230
      %p728 = pneg %p227
      %p729 = pneg %p251
      %p730 = pneg %p248
      %p731 = pneg %p272
      %p732 = pneg %p269
      %p733 = pneg %p293
      %p734 = pneg %p290
      %p735 = pneg %p314
      %p736 = pneg %p311
      %p737 = pneg %p335
      %p738 = pneg %p332
      %p739 = pneg %p356
      %p740 = pneg %p353
      %p741 = pneg %p377
      %p742 = pneg %p374
      %p743 = pneg %p398
      %p744 = pneg %p395
      %p745 = pneg %p419
      %p746 = pneg %p416
      %p747 = pneg %p440
      %p748 = pneg %p437
      %p749 = pneg %p461
      %p750 = pneg %p458
      %p751 = pneg %p482
      %p752 = pneg %p479
      %p753 = pneg %p503
      %p754 = pneg %p500
      %p755 = pneg %p524
      %p756 = pneg %p521
      %p757 = pneg %p545
      %p758 = pneg %p542
      %p759 = pneg %p566
      %p760 = pneg %p563
      %p761 = pneg %p592
      %p762 = pneg %p589
      %p763 = scmp.lt.s32.totalorder %s36, 1
      %s764 = scalar_select %p763, %s36, 1
      %s765 = smul.addr %s764, 2
      %s766 = smul.addr %s765, 8
      %s767 = scalar_lea.vmem %s25, %s766
      %p768 = scmp.lt.s32.totalorder %s36, 1
      %s769 = scalar_select %p768, %s36, 1
      %s770 = smul.addr %s769, 2
      %s771 = smul.addr %s770, 8
      %s772 = scalar_lea.vmem %s0, %s771
      %p773 = scmp.lt.s32.totalorder %s36, 1
      %s774 = scalar_select %p773, %s36, 1
      %s775 = smul.addr %s774, 2
      %s776 = scalar_lea.vmem %s1, %s775
      %p777 = scmp.lt.s32.totalorder %s36, 1
      %s778 = scalar_select %p777, %s36, 1
      %s779 = smul.addr %s778, 2
      %s780 = smul.addr %s779, 8
      %s781 = scalar_lea.vmem %s25, %s780
      %v782 = vld [vmem:[%s2] sm:$0x3]
      %v783 = vld [vmem:[%s3] sm:$0x3]
      %v784 = vld [vmem:[%s776] sm:$0x3]
      %v785 = vsub.f32 0.0, %v784
      %v786 = vmul.f32 %v785, 1.442695
      %v787 = vpow.pop %v786
      %v788 = vadd.f32 %v787, 1.0
      %v789 = vrcp.pop %v788
      %v790 = vmul.f32 %v788, %v789
      %v791 = vsub.f32 1.0, %v790
      %v792 = vmul.f32 %v789, %v791
      %v793 = vadd.f32 %v789, %v792
      %vm794 = vweird.f32 %v788
      %vm795 = vweird.f32 %v789
      %vm796 = vmor %vm794, %vm795
      %v797 = vsel %vm796, %v789, %v793
      %v798 = vand.u32 2147483647, %v788
      %vm799 = vcmp.eq.f32.partialorder %v798, 8.507059e+37
      %v800 = vand.u32 %v788, 2147483648
      %v801 = vor.u32 1.1754944e-38, %v800
      %v802 = vsel %vm799, %v801, %v797
      %v803 = vmul.f32 1.0, %v802
      %v805 = vperm.slane %v803, 0
      %v806 = vperm.slane %v803, 1
      %v807 = vadd.f32 %v782, -7.0
      %vm808 = vcmp.gt.f32.partialorder %v807, -0.5
      %vm809 = vcmp.lt.f32.partialorder %v807, 15.5
      %vm810 = vmand %vm808, %vm809
      %v812 = vrot.slane %v805, 7
      %v813 = vrot.slane %v806, 6
      %vm814 = vcmask 1040384
      %v815 = vsel %vm814, 0.0, %v812
      %vm816 = vcmask 1041408
      %v817 = vsel %vm816, %v815, %v813
      %818 = vrot.lane.b32.xlu0 %v817, 7
      %v819 = vpop.permute.xlu0 %818
      %v820 = vrot.slane %v819, 1
      %vm821 = vcmask 56320
      %v822 = vsel %vm821, %v819, %v820
      %v824 = vsel %vm810, %v822, 0.0
      %v825 = vmul.f32 %v824, 0.020222438
      %v826 = vadd.f32 %v825, 0.0
      %v827 = vadd.f32 %v782, -6.0
      %vm828 = vcmp.gt.f32.partialorder %v827, -0.5
      %vm829 = vcmp.lt.f32.partialorder %v827, 15.5
      %vm830 = vmand %vm828, %vm829
      %831 = vrot.lane.b32.xlu0 %v817, 6
      %v832 = vpop.permute.xlu0 %831
      %v833 = vrot.slane %v832, 1
      %vm834 = vcmask 48128
      %v835 = vsel %vm834, %v832, %v833
      %v837 = vsel %vm830, %v835, 0.0
      %v838 = vmul.f32 %v837, 0.03171262
      %v839 = vadd.f32 %v826, %v838
      %v840 = vadd.f32 %v782, -5.0
      %vm841 = vcmp.gt.f32.partialorder %v840, -0.5
      %vm842 = vcmp.lt.f32.partialorder %v840, 15.5
      %vm843 = vmand %vm841, %vm842
      %844 = vrot.lane.b32.xlu0 %v817, 5
      %v845 = vpop.permute.xlu0 %844
      %v846 = vrot.slane %v845, 1
      %vm847 = vcmask 39936
      %v848 = vsel %vm847, %v845, %v846
      %v850 = vsel %vm843, %v848, 0.0
      %v851 = vmul.f32 %v850, 0.04640472
      %v852 = vadd.f32 %v839, %v851
      %v853 = vadd.f32 %v782, -4.0
      %vm854 = vcmp.gt.f32.partialorder %v853, -0.5
      %vm855 = vcmp.lt.f32.partialorder %v853, 15.5
      %vm856 = vmand %vm854, %vm855
      %857 = vrot.lane.b32.xlu0 %v817, 4
      %v858 = vpop.permute.xlu0 %857
      %v859 = vrot.slane %v858, 1
      %vm860 = vcmask 31744
      %v861 = vsel %vm860, %v858, %v859
      %v863 = vsel %vm856, %v861, 0.0
      %v864 = vmul.f32 %v863, 0.06336174
      %v865 = vadd.f32 %v852, %v864
      %v866 = vadd.f32 %v782, -3.0
      %vm867 = vcmp.gt.f32.partialorder %v866, -0.5
      %vm868 = vcmp.lt.f32.partialorder %v866, 15.5
      %vm869 = vmand %vm867, %vm868
      %870 = vrot.lane.b32.xlu0 %v817, 3
      %v871 = vpop.permute.xlu0 %870
      %v872 = vrot.slane %v871, 1
      %vm873 = vcmask 23552
      %v874 = vsel %vm873, %v871, %v872
      %v876 = vsel %vm869, %v874, 0.0
      %v877 = vmul.f32 %v876, 0.08072909
      %v878 = vadd.f32 %v865, %v877
      %v879 = vadd.f32 %v782, -2.0
      %vm880 = vcmp.gt.f32.partialorder %v879, -0.5
      %vm881 = vcmp.lt.f32.partialorder %v879, 15.5
      %vm882 = vmand %vm880, %vm881
      %883 = vrot.lane.b32.xlu0 %v817, 2
      %v884 = vpop.permute.xlu0 %883
      %v885 = vrot.slane %v884, 1
      %vm886 = vcmask 15360
      %v887 = vsel %vm886, %v884, %v885
      %v889 = vsel %vm882, %v887, 0.0
      %v890 = vmul.f32 %v889, 0.09597836
      %v891 = vadd.f32 %v878, %v890
      %v892 = vadd.f32 %v782, -1.0
      %vm893 = vcmp.gt.f32.partialorder %v892, -0.5
      %vm894 = vcmp.lt.f32.partialorder %v892, 15.5
      %vm895 = vmand %vm893, %vm894
      %896 = vrot.lane.b32.xlu0 %v817, 1
      %v897 = vpop.permute.xlu0 %896
      %v898 = vrot.slane %v897, 1
      %vm899 = vcmask 7168
      %v900 = vsel %vm899, %v897, %v898
      %v902 = vsel %vm895, %v900, 0.0
      %v903 = vmul.f32 %v902, 0.10647768
      %v904 = vadd.f32 %v891, %v903
      %v905 = vadd.f32 %v782, 0.0
      %vm906 = vcmp.gt.f32.partialorder %v905, -0.5
      %vm907 = vcmp.lt.f32.partialorder %v905, 15.5
      %vm908 = vmand %vm906, %vm907
      %v909 = vrot.slane %v806, 7
      %v910 = vsel %vm814, %v805, %v909
      %v912 = vsel %vm908, %v910, 0.0
      %v913 = vmul.f32 %v912, 0.11022672
      %v914 = vadd.f32 %v904, %v913
      %v915 = vadd.f32 %v782, 1.0
      %vm916 = vcmp.gt.f32.partialorder %v915, -0.5
      %vm917 = vcmp.lt.f32.partialorder %v915, 15.5
      %vm918 = vmand %vm916, %vm917
      %v919 = vrot.slane 0.0, 6
      %v920 = vsel %vm816, %v910, %v919
      %921 = vrot.lane.b32.xlu0 %v920, 127
      %v922 = vpop.permute.xlu0 %921
      %v923 = vrot.slane %v922, 1
      %vm924 = vcmask 1039360
      %v925 = vsel %vm924, %v922, %v923
      %v927 = vsel %vm918, %v925, 0.0
      %v928 = vmul.f32 %v927, 0.10647768
      %v929 = vadd.f32 %v914, %v928
      %v930 = vadd.f32 %v782, 2.0
      %vm931 = vcmp.gt.f32.partialorder %v930, -0.5
      %vm932 = vcmp.lt.f32.partialorder %v930, 15.5
      %vm933 = vmand %vm931, %vm932
      %934 = vrot.lane.b32.xlu0 %v920, 126
      %v935 = vpop.permute.xlu0 %934
      %v936 = vrot.slane %v935, 1
      %vm937 = vcmask 1031168
      %v938 = vsel %vm937, %v935, %v936
      %v940 = vsel %vm933, %v938, 0.0
      %v941 = vmul.f32 %v940, 0.09597836
      %v942 = vadd.f32 %v929, %v941
      %v943 = vadd.f32 %v782, 3.0
      %vm944 = vcmp.gt.f32.partialorder %v943, -0.5
      %vm945 = vcmp.lt.f32.partialorder %v943, 15.5
      %vm946 = vmand %vm944, %vm945
      %947 = vrot.lane.b32.xlu0 %v920, 125
      %v948 = vpop.permute.xlu0 %947
      %v949 = vrot.slane %v948, 1
      %vm950 = vcmask 1022976
      %v951 = vsel %vm950, %v948, %v949
      %v953 = vsel %vm946, %v951, 0.0
      %v954 = vmul.f32 %v953, 0.08072909
      %v955 = vadd.f32 %v942, %v954
      %v956 = vadd.f32 %v782, 4.0
      %vm957 = vcmp.gt.f32.partialorder %v956, -0.5
      %vm958 = vcmp.lt.f32.partialorder %v956, 15.5
      %vm959 = vmand %vm957, %vm958
      %960 = vrot.lane.b32.xlu0 %v920, 124
      %v961 = vpop.permute.xlu0 %960
      %v962 = vrot.slane %v961, 1
      %vm963 = vcmask 1014784
      %v964 = vsel %vm963, %v961, %v962
      %v966 = vsel %vm959, %v964, 0.0
      %v967 = vmul.f32 %v966, 0.06336174
      %v968 = vadd.f32 %v955, %v967
      %v969 = vadd.f32 %v782, 5.0
      %vm970 = vcmp.gt.f32.partialorder %v969, -0.5
      %vm971 = vcmp.lt.f32.partialorder %v969, 15.5
      %vm972 = vmand %vm970, %vm971
      %973 = vrot.lane.b32.xlu0 %v920, 123
      %v974 = vpop.permute.xlu0 %973
      %v975 = vrot.slane %v974, 1
      %vm976 = vcmask 1006592
      %v977 = vsel %vm976, %v974, %v975
      %v979 = vsel %vm972, %v977, 0.0
      %v980 = vmul.f32 %v979, 0.04640472
      %v981 = vadd.f32 %v968, %v980
      %v982 = vadd.f32 %v782, 6.0
      %vm983 = vcmp.gt.f32.partialorder %v982, -0.5
      %vm984 = vcmp.lt.f32.partialorder %v982, 15.5
      %vm985 = vmand %vm983, %vm984
      %986 = vrot.lane.b32.xlu0 %v920, 122
      %v987 = vpop.permute.xlu0 %986
      %v988 = vrot.slane %v987, 1
      %vm989 = vcmask 998400
      %v990 = vsel %vm989, %v987, %v988
      %v992 = vsel %vm985, %v990, 0.0
      %v993 = vmul.f32 %v992, 0.03171262
      %v994 = vadd.f32 %v981, %v993
      %v995 = vadd.f32 %v782, 7.0
      %vm996 = vcmp.gt.f32.partialorder %v995, -0.5
      %vm997 = vcmp.lt.f32.partialorder %v995, 15.5
      %vm998 = vmand %vm996, %vm997
      %999 = vrot.lane.b32.xlu0 %v920, 121
      %v1000 = vpop.permute.xlu0 %999
      %v1001 = vrot.slane %v1000, 1
      %vm1002 = vcmask 990208
      %v1003 = vsel %vm1002, %v1000, %v1001
      %v1005 = vsel %vm998, %v1003, 0.0
      %v1006 = vmul.f32 %v1005, 0.020222438
      %v1007 = vadd.f32 %v994, %v1006
      %v1009 = vperm.slane %v1007, 0
      %v1010 = vperm.slane %v1007, 1
      %v1011 = vadd.f32 %v783, -7.0
      %vm1012 = vcmp.gt.f32.partialorder %v1011, -0.5
      %vm1013 = vcmp.lt.f32.partialorder %v1011, 15.5
      %vm1014 = vmand %vm1012, %vm1013
      %v1015 = vrot.slane %v1009, 7
      %v1016 = vrot.slane %v1010, 6
      %v1017 = vsel %vm814, 0.0, %v1015
      %v1018 = vsel %vm816, %v1017, %v1016
      %1019 = vrot.lane.b32.xlu0 %v1018, 112
      %v1020 = vpop.permute.xlu0 %1019
      %v1021 = vrot.slane %v1020, 1
      %vm1022 = vcmask 916480
      %v1023 = vsel %vm1022, %v1020, %v1021
      %v1025 = vsel %vm1014, %v1023, 0.0
      %v1026 = vmul.f32 %v1025, 0.020222438
      %v1027 = vadd.f32 %v1026, 0.0
      %v1028 = vadd.f32 %v783, -6.0
      %vm1029 = vcmp.gt.f32.partialorder %v1028, -0.5
      %vm1030 = vcmp.lt.f32.partialorder %v1028, 15.5
      %vm1031 = vmand %vm1029, %vm1030
      %1032 = vrot.lane.b32.xlu0 %v1018, 96
      %v1033 = vpop.permute.xlu0 %1032
      %v1034 = vrot.slane %v1033, 1
      %vm1035 = vcmask 785408
      %v1036 = vsel %vm1035, %v1033, %v1034
      %v1038 = vsel %vm1031, %v1036, 0.0
      %v1039 = vmul.f32 %v1038, 0.03171262
      %v1040 = vadd.f32 %v1027, %v1039
      %v1041 = vadd.f32 %v783, -5.0
      %vm1042 = vcmp.gt.f32.partialorder %v1041, -0.5
      %vm1043 = vcmp.lt.f32.partialorder %v1041, 15.5
      %vm1044 = vmand %vm1042, %vm1043
      %1045 = vrot.lane.b32.xlu0 %v1018, 80
      %v1046 = vpop.permute.xlu0 %1045
      %v1047 = vrot.slane %v1046, 1
      %vm1048 = vcmask 654336
      %v1049 = vsel %vm1048, %v1046, %v1047
      %v1051 = vsel %vm1044, %v1049, 0.0
      %v1052 = vmul.f32 %v1051, 0.04640472
      %v1053 = vadd.f32 %v1040, %v1052
      %v1054 = vadd.f32 %v783, -4.0
      %vm1055 = vcmp.gt.f32.partialorder %v1054, -0.5
      %vm1056 = vcmp.lt.f32.partialorder %v1054, 15.5
      %vm1057 = vmand %vm1055, %vm1056
      %1058 = vrot.lane.b32.xlu0 %v1018, 64
      %v1059 = vpop.permute.xlu0 %1058
      %v1060 = vrot.slane %v1059, 1
      %vm1061 = vcmask 523264
      %v1062 = vsel %vm1061, %v1059, %v1060
      %v1064 = vsel %vm1057, %v1062, 0.0
      %v1065 = vmul.f32 %v1064, 0.06336174
      %v1066 = vadd.f32 %v1053, %v1065
      %v1067 = vadd.f32 %v783, -3.0
      %vm1068 = vcmp.gt.f32.partialorder %v1067, -0.5
      %vm1069 = vcmp.lt.f32.partialorder %v1067, 15.5
      %vm1070 = vmand %vm1068, %vm1069
      %1071 = vrot.lane.b32.xlu0 %v1018, 48
      %v1072 = vpop.permute.xlu0 %1071
      %v1073 = vrot.slane %v1072, 1
      %vm1074 = vcmask 392192
      %v1075 = vsel %vm1074, %v1072, %v1073
      %v1077 = vsel %vm1070, %v1075, 0.0
      %v1078 = vmul.f32 %v1077, 0.08072909
      %v1079 = vadd.f32 %v1066, %v1078
      %v1080 = vadd.f32 %v783, -2.0
      %vm1081 = vcmp.gt.f32.partialorder %v1080, -0.5
      %vm1082 = vcmp.lt.f32.partialorder %v1080, 15.5
      %vm1083 = vmand %vm1081, %vm1082
      %1084 = vrot.lane.b32.xlu0 %v1018, 32
      %v1085 = vpop.permute.xlu0 %1084
      %v1086 = vrot.slane %v1085, 1
      %vm1087 = vcmask 261120
      %v1088 = vsel %vm1087, %v1085, %v1086
      %v1090 = vsel %vm1083, %v1088, 0.0
      %v1091 = vmul.f32 %v1090, 0.09597836
      %v1092 = vadd.f32 %v1079, %v1091
      %v1093 = vadd.f32 %v783, -1.0
      %vm1094 = vcmp.gt.f32.partialorder %v1093, -0.5
      %vm1095 = vcmp.lt.f32.partialorder %v1093, 15.5
      %vm1096 = vmand %vm1094, %vm1095
      %1097 = vrot.lane.b32.xlu0 %v1018, 16
      %v1098 = vpop.permute.xlu0 %1097
      %v1099 = vrot.slane %v1098, 1
      %vm1100 = vcmask 130048
      %v1101 = vsel %vm1100, %v1098, %v1099
      %v1103 = vsel %vm1096, %v1101, 0.0
      %v1104 = vmul.f32 %v1103, 0.10647768
      %v1105 = vadd.f32 %v1092, %v1104
      %v1106 = vadd.f32 %v783, 0.0
      %vm1107 = vcmp.gt.f32.partialorder %v1106, -0.5
      %vm1108 = vcmp.lt.f32.partialorder %v1106, 15.5
      %vm1109 = vmand %vm1107, %vm1108
      %v1110 = vrot.slane %v1010, 7
      %v1111 = vsel %vm814, %v1009, %v1110
      %v1113 = vsel %vm1109, %v1111, 0.0
      %v1114 = vmul.f32 %v1113, 0.11022672
      %v1115 = vadd.f32 %v1105, %v1114
      %v1116 = vadd.f32 %v783, 1.0
      %vm1117 = vcmp.gt.f32.partialorder %v1116, -0.5
      %vm1118 = vcmp.lt.f32.partialorder %v1116, 15.5
      %vm1119 = vmand %vm1117, %vm1118
      %v1120 = vsel %vm816, %v1111, %v919
      %1121 = vrot.lane.b32.xlu0 %v1120, 112
      %v1122 = vpop.permute.xlu0 %1121
      %v1123 = vrot.slane %v1122, 1
      %v1124 = vsel %vm1022, %v1122, %v1123
      %v1126 = vsel %vm1119, %v1124, 0.0
      %v1127 = vmul.f32 %v1126, 0.10647768
      %v1128 = vadd.f32 %v1115, %v1127
      %v1129 = vadd.f32 %v783, 2.0
      %vm1130 = vcmp.gt.f32.partialorder %v1129, -0.5
      %vm1131 = vcmp.lt.f32.partialorder %v1129, 15.5
      %vm1132 = vmand %vm1130, %vm1131
      %1133 = vrot.lane.b32.xlu0 %v1120, 96
      %v1134 = vpop.permute.xlu0 %1133
      %v1135 = vrot.slane %v1134, 1
      %v1136 = vsel %vm1035, %v1134, %v1135
      %v1138 = vsel %vm1132, %v1136, 0.0
      %v1139 = vmul.f32 %v1138, 0.09597836
      %v1140 = vadd.f32 %v1128, %v1139
      %v1141 = vadd.f32 %v783, 3.0
      %vm1142 = vcmp.gt.f32.partialorder %v1141, -0.5
      %vm1143 = vcmp.lt.f32.partialorder %v1141, 15.5
      %vm1144 = vmand %vm1142, %vm1143
      %1145 = vrot.lane.b32.xlu0 %v1120, 80
      %v1146 = vpop.permute.xlu0 %1145
      %v1147 = vrot.slane %v1146, 1
      %v1148 = vsel %vm1048, %v1146, %v1147
      %v1150 = vsel %vm1144, %v1148, 0.0
      %v1151 = vmul.f32 %v1150, 0.08072909
      %v1152 = vadd.f32 %v1140, %v1151
      %v1153 = vadd.f32 %v783, 4.0
      %vm1154 = vcmp.gt.f32.partialorder %v1153, -0.5
      %vm1155 = vcmp.lt.f32.partialorder %v1153, 15.5
      %vm1156 = vmand %vm1154, %vm1155
      %1157 = vrot.lane.b32.xlu0 %v1120, 64
      %v1158 = vpop.permute.xlu0 %1157
      %v1159 = vrot.slane %v1158, 1
      %v1160 = vsel %vm1061, %v1158, %v1159
      %v1162 = vsel %vm1156, %v1160, 0.0
      %v1163 = vmul.f32 %v1162, 0.06336174
      %v1164 = vadd.f32 %v1152, %v1163
      %v1165 = vadd.f32 %v783, 5.0
      %vm1166 = vcmp.gt.f32.partialorder %v1165, -0.5
      %vm1167 = vcmp.lt.f32.partialorder %v1165, 15.5
      %vm1168 = vmand %vm1166, %vm1167
      %1169 = vrot.lane.b32.xlu0 %v1120, 48
      %v1170 = vpop.permute.xlu0 %1169
      %v1171 = vrot.slane %v1170, 1
      %v1172 = vsel %vm1074, %v1170, %v1171
      %v1174 = vsel %vm1168, %v1172, 0.0
      %v1175 = vmul.f32 %v1174, 0.04640472
      %v1176 = vadd.f32 %v1164, %v1175
      %v1177 = vadd.f32 %v783, 6.0
      %vm1178 = vcmp.gt.f32.partialorder %v1177, -0.5
      %vm1179 = vcmp.lt.f32.partialorder %v1177, 15.5
      %vm1180 = vmand %vm1178, %vm1179
      %1181 = vrot.lane.b32.xlu0 %v1120, 32
      %v1182 = vpop.permute.xlu0 %1181
      %v1183 = vrot.slane %v1182, 1
      %v1184 = vsel %vm1087, %v1182, %v1183
      %v1186 = vsel %vm1180, %v1184, 0.0
      %v1187 = vmul.f32 %v1186, 0.03171262
      %v1188 = vadd.f32 %v1176, %v1187
      %v1189 = vadd.f32 %v783, 7.0
      %vm1190 = vcmp.gt.f32.partialorder %v1189, -0.5
      %vm1191 = vcmp.lt.f32.partialorder %v1189, 15.5
      %vm1192 = vmand %vm1190, %vm1191
      %1193 = vrot.lane.b32.xlu0 %v1120, 16
      %v1194 = vpop.permute.xlu0 %1193
      %v1195 = vrot.slane %v1194, 1
      %v1196 = vsel %vm1100, %v1194, %v1195
      %v1198 = vsel %vm1192, %v1196, 0.0
      %v1199 = vmul.f32 %v1198, 0.020222438
      %v1200 = vadd.f32 %v1188, %v1199
      %v1202 = vperm.slane %v1200, 0
      %v1203 = vperm.slane %v1200, 1
      %v1206 = vsel %vm814, %v1202, inf
      %v1207 = vsel %vm814, %v1203, inf
      %v1208 = vmin.f32 %v1206, %v1207
      %1209 = vmin.xlane.f32.xlu0 %v1208
      %v1210 = vpop.xlane.xlu0 %1209
      %v1211 = vsel %vm814, %v1202, -inf
      %v1212 = vsel %vm814, %v1203, -inf
      %v1213 = vmax.f32 %v1211, %v1212
      %1214 = vmax.xlane.f32.xlu0 %v1213
      %v1215 = vpop.xlane.xlu0 %1214
      %v1217 = vperm.slane %v1210, 0
      %v1219 = vsub.f32 %v1200, %v1217
      %v1220 = vsub.f32 %v1215, %v1210
      %v1221 = vadd.f32 %v1220, 1e-08
      %v1223 = vperm.slane %v1221, 0
      %v1225 = vrcp.pop %v1223
      %v1226 = vmul.f32 %v1223, %v1225
      %v1227 = vsub.f32 1.0, %v1226
      %v1228 = vmul.f32 %v1225, %v1227
      %v1229 = vadd.f32 %v1225, %v1228
      %vm1230 = vweird.f32 %v1223
      %vm1231 = vweird.f32 %v1225
      %vm1232 = vmor %vm1230, %vm1231
      %v1233 = vsel %vm1232, %v1225, %v1229
      %v1234 = vand.u32 2147483647, %v1223
      %vm1235 = vcmp.eq.f32.partialorder %v1234, 8.507059e+37
      %v1236 = vand.u32 %v1223, 2147483648
      %v1237 = vor.u32 1.1754944e-38, %v1236
      %v1238 = vsel %vm1235, %v1237, %v1233
      %v1239 = vmul.f32 %v1219, %v1238
      %v1240 = vmax.f32 %v1239, %v803
      %vm1241 = vcmp.lt.f32.partialorder %v1240, 0.5
      %v1242 = vsel %vm1241, 1.0, 0.0
      %v1243 = vld [vmem:[%s772] sm:$0xff]
      %v1244 = vld [vmem:[%s772 + $0x8] sm:$0xff]
      %v1245 = vadd.f32 %v1243, %v1244
      %1246 = vadd.xlane.f32.xlu0 %v1245
      %v1247 = vpop.xlane.xlu0 %1246
      %v1248 = vmul.f32 %v1247, 0.00390625
      %v1249 = vld [vmem:[%s4] sm:$0xff]
      %v1250 = vld [vmem:[%s4 + $0x8] sm:$0xff]
      %v1251 = vld [vmem:[%s5] sm:$0xff]
      %v1252 = vld [vmem:[%s5 + $0x8] sm:$0xff]
      %v1253 = vperm.slane %v1248, 0
      %v1254 = vmul.f32 %v1249, %v1253
      %v1255 = vmul.f32 %v1250, %v1253
      %v1256 = vadd.f32 %v1251, %v1254
      %v1257 = vadd.f32 %v1252, %v1255
      %v1258 = vperm.slane %v1248, 1
      %v1259 = vmul.f32 %v1249, %v1258
      %v1260 = vmul.f32 %v1250, %v1258
      %1263 = vrot.lane.b32.xlu0 %v1259, 127
      %v1264 = vpop.permute.xlu0 %1263
      %1265 = vrot.lane.b32.xlu0 %v1260, 127
      %v1266 = vpop.permute.xlu0 %1265
      %v1269 = vadd.f32 %v1256, %v1264
      %v1270 = vadd.f32 %v1257, %v1266
      %v1271 = vperm.slane %v1248, 2
      %v1272 = vmul.f32 %v1249, %v1271
      %v1273 = vmul.f32 %v1250, %v1271
      %1276 = vrot.lane.b32.xlu0 %v1272, 126
      %v1277 = vpop.permute.xlu0 %1276
      %1278 = vrot.lane.b32.xlu0 %v1273, 126
      %v1279 = vpop.permute.xlu0 %1278
      %v1282 = vadd.f32 %v1269, %v1277
      %v1283 = vadd.f32 %v1270, %v1279
      %v1284 = vperm.slane %v1248, 3
      %v1285 = vmul.f32 %v1249, %v1284
      %v1286 = vmul.f32 %v1250, %v1284
      %1289 = vrot.lane.b32.xlu0 %v1285, 125
      %v1290 = vpop.permute.xlu0 %1289
      %1291 = vrot.lane.b32.xlu0 %v1286, 125
      %v1292 = vpop.permute.xlu0 %1291
      %v1295 = vadd.f32 %v1282, %v1290
      %v1296 = vadd.f32 %v1283, %v1292
      %v1297 = vperm.slane %v1248, 4
      %v1298 = vmul.f32 %v1249, %v1297
      %v1299 = vmul.f32 %v1250, %v1297
      %1302 = vrot.lane.b32.xlu0 %v1298, 124
      %v1303 = vpop.permute.xlu0 %1302
      %1304 = vrot.lane.b32.xlu0 %v1299, 124
      %v1305 = vpop.permute.xlu0 %1304
      %v1308 = vadd.f32 %v1295, %v1303
      %v1309 = vadd.f32 %v1296, %v1305
      %v1310 = vperm.slane %v1248, 5
      %v1311 = vmul.f32 %v1249, %v1310
      %v1312 = vmul.f32 %v1250, %v1310
      %1315 = vrot.lane.b32.xlu0 %v1311, 123
      %v1316 = vpop.permute.xlu0 %1315
      %1317 = vrot.lane.b32.xlu0 %v1312, 123
      %v1318 = vpop.permute.xlu0 %1317
      %v1321 = vadd.f32 %v1308, %v1316
      %v1322 = vadd.f32 %v1309, %v1318
      %v1323 = vperm.slane %v1248, 6
      %v1324 = vmul.f32 %v1249, %v1323
      %v1325 = vmul.f32 %v1250, %v1323
      %1328 = vrot.lane.b32.xlu0 %v1324, 122
      %v1329 = vpop.permute.xlu0 %1328
      %1330 = vrot.lane.b32.xlu0 %v1325, 122
      %v1331 = vpop.permute.xlu0 %1330
      %v1334 = vadd.f32 %v1321, %v1329
      %v1335 = vadd.f32 %v1322, %v1331
      %v1336 = vperm.slane %v1248, 7
      %v1337 = vmul.f32 %v1249, %v1336
      %v1338 = vmul.f32 %v1250, %v1336
      %1341 = vrot.lane.b32.xlu0 %v1337, 121
      %v1342 = vpop.permute.xlu0 %1341
      %1343 = vrot.lane.b32.xlu0 %v1338, 121
      %v1344 = vpop.permute.xlu0 %1343
      %v1347 = vadd.f32 %v1334, %v1342
      %v1348 = vadd.f32 %v1335, %v1344
      %v1349 = vsub.f32 0.0, %v1347
      %v1350 = vsub.f32 0.0, %v1348
      %v1351 = vmul.f32 %v1349, 1.442695
      %v1352 = vpow.pop %v1351
      %v1353 = vmul.f32 %v1350, 1.442695
      %v1354 = vpow.pop %v1353
      %v1355 = vadd.f32 %v1352, 1.0
      %v1356 = vadd.f32 %v1354, 1.0
      %v1357 = vrcp.pop %v1355
      %v1358 = vmul.f32 %v1355, %v1357
      %v1359 = vsub.f32 1.0, %v1358
      %v1360 = vmul.f32 %v1357, %v1359
      %v1361 = vadd.f32 %v1357, %v1360
      %vm1362 = vweird.f32 %v1355
      %vm1363 = vweird.f32 %v1357
      %vm1364 = vmor %vm1362, %vm1363
      %v1365 = vsel %vm1364, %v1357, %v1361
      %v1366 = vand.u32 2147483647, %v1355
      %vm1367 = vcmp.eq.f32.partialorder %v1366, 8.507059e+37
      %v1368 = vand.u32 %v1355, 2147483648
      %v1369 = vor.u32 1.1754944e-38, %v1368
      %v1370 = vsel %vm1367, %v1369, %v1365
      %v1371 = vmul.f32 1.0, %v1370
      %v1372 = vrcp.pop %v1356
      %v1373 = vmul.f32 %v1356, %v1372
      %v1374 = vsub.f32 1.0, %v1373
      %v1375 = vmul.f32 %v1372, %v1374
      %v1376 = vadd.f32 %v1372, %v1375
      %vm1377 = vweird.f32 %v1356
      %vm1378 = vweird.f32 %v1372
      %vm1379 = vmor %vm1377, %vm1378
      %v1380 = vsel %vm1379, %v1372, %v1376
      %v1381 = vand.u32 2147483647, %v1356
      %vm1382 = vcmp.eq.f32.partialorder %v1381, 8.507059e+37
      %v1383 = vand.u32 %v1356, 2147483648
      %v1384 = vor.u32 1.1754944e-38, %v1383
      %v1385 = vsel %vm1382, %v1384, %v1380
      %v1386 = vmul.f32 1.0, %v1385
      %v1387 = vld [vmem:[%s7] sm:$0xff]
      %v1388 = vld [vmem:[%s6] sm:$0xff]
      %s1390 = vtos %v1371
      %v1391 = vstv %s1390
      %v1393 = vmul.f32 %v1391, %v1388
      %v1394 = vadd.f32 %v1387, %v1393
      %s1395 = scalar_lea.vmem %s6, 8
      %v1396 = vld [vmem:[%s1395] sm:$0xff]
      %v1397 = vrot.slane %v1371, 1
      %s1398 = vtos %v1397
      %v1399 = vstv %s1398
      %v1401 = vmul.f32 %v1399, %v1396
      %v1402 = vadd.f32 %v1394, %v1401
      %s1403 = scalar_lea.vmem %s6, 16
      %v1404 = vld [vmem:[%s1403] sm:$0xff]
      %v1405 = vrot.slane %v1371, 2
      %s1406 = vtos %v1405
      %v1407 = vstv %s1406
      %v1409 = vmul.f32 %v1407, %v1404
      %v1410 = vadd.f32 %v1402, %v1409
      %s1411 = scalar_lea.vmem %s6, 24
      %v1412 = vld [vmem:[%s1411] sm:$0xff]
      %v1413 = vrot.slane %v1371, 3
      %s1414 = vtos %v1413
      %v1415 = vstv %s1414
      %v1417 = vmul.f32 %v1415, %v1412
      %v1418 = vadd.f32 %v1410, %v1417
      %s1419 = scalar_lea.vmem %s6, 32
      %v1420 = vld [vmem:[%s1419] sm:$0xff]
      %v1421 = vrot.slane %v1371, 4
      %s1422 = vtos %v1421
      %v1423 = vstv %s1422
      %v1425 = vmul.f32 %v1423, %v1420
      %v1426 = vadd.f32 %v1418, %v1425
      %s1427 = scalar_lea.vmem %s6, 40
      %v1428 = vld [vmem:[%s1427] sm:$0xff]
      %v1429 = vrot.slane %v1371, 5
      %s1430 = vtos %v1429
      %v1431 = vstv %s1430
      %v1433 = vmul.f32 %v1431, %v1428
      %v1434 = vadd.f32 %v1426, %v1433
      %s1435 = scalar_lea.vmem %s6, 48
      %v1436 = vld [vmem:[%s1435] sm:$0xff]
      %v1437 = vrot.slane %v1371, 6
      %s1438 = vtos %v1437
      %v1439 = vstv %s1438
      %v1441 = vmul.f32 %v1439, %v1436
      %v1442 = vadd.f32 %v1434, %v1441
      %s1443 = scalar_lea.vmem %s6, 56
      %v1444 = vld [vmem:[%s1443] sm:$0xff]
      %v1445 = vrot.slane %v1371, 7
      %s1446 = vtos %v1445
      %v1447 = vstv %s1446
      %v1449 = vmul.f32 %v1447, %v1444
      %v1450 = vadd.f32 %v1442, %v1449
      %vm1451 = vcmask 64512
      %v1453 = vsel %vm1451, %v1450, 0
      %1455 = vmatpush.msra.mxu0 0.0
      %1456 = vmatpush.msra.mxu0 0.0
      %1457 = vmatpush.msra.mxu0 0.0
      %1458 = vmatpush.msra.mxu0 0.0
      %1459 = vmatpush.msra.mxu0 0.0
      %1460 = vmatpush.msra.mxu0 0.0
      %1461 = vmatpush.msra.mxu0 0.0
      %1462 = vmatpush.msra.mxu0 0.0
      %1463 = vmatpush.msra.mxu0 0.0
      %1464 = vmatpush.msra.mxu0 0.0
      %1465 = vmatpush.msra.mxu0 0.0
      %1466 = vmatpush.msra.mxu0 0.0
      %1467 = vmatpush.msra.mxu0 0.0
      %1468 = vmatpush.msra.mxu0 0.0
      %1469 = vmatpush.msra.mxu0 0.0
      %1470 = vmatpush.msra.mxu0 %v1243
      %1471 = vmatmul.f32.gmra.mxu0 %v1453
      %v1472 = vpop.f32.mrf.mxu0
      %v1473 = vadd.f32 0.0, %v1472
      %1474 = vdwg.mxu0
      %1475 = vmatpush.msra.mxu0 0.0
      %1476 = vmatpush.msra.mxu0 0.0
      %1477 = vmatpush.msra.mxu0 0.0
      %1478 = vmatpush.msra.mxu0 0.0
      %1479 = vmatpush.msra.mxu0 0.0
      %1480 = vmatpush.msra.mxu0 0.0
      %1481 = vmatpush.msra.mxu0 0.0
      %1482 = vmatpush.msra.mxu0 0.0
      %1483 = vmatpush.msra.mxu0 0.0
      %1484 = vmatpush.msra.mxu0 0.0
      %1485 = vmatpush.msra.mxu0 0.0
      %1486 = vmatpush.msra.mxu0 0.0
      %1487 = vmatpush.msra.mxu0 0.0
      %1488 = vmatpush.msra.mxu0 0.0
      %1489 = vmatpush.msra.mxu0 0.0
      %1490 = vmatpush.msra.mxu0 %v1244
      %1491 = vmatmul.f32.gmra.mxu0 %v1453
      %v1492 = vpop.f32.mrf.mxu0
      %v1493 = vadd.f32 0.0, %v1492
      %1494 = vdwg.mxu0
      %s1495 = scalar_lea.vmem %s7, 8
      %v1496 = vld [vmem:[%s1495] sm:$0xff]
      %s1497 = scalar_lea.vmem %s6, 64
      %v1498 = vld [vmem:[%s1497] sm:$0xff]
      %s1500 = vtos %v1386
      %v1501 = vstv %s1500
      %v1503 = vmul.f32 %v1501, %v1498
      %v1504 = vadd.f32 %v1496, %v1503
      %s1505 = scalar_lea.vmem %s6, 72
      %v1506 = vld [vmem:[%s1505] sm:$0xff]
      %v1507 = vrot.slane %v1386, 1
      %s1508 = vtos %v1507
      %v1509 = vstv %s1508
      %v1511 = vmul.f32 %v1509, %v1506
      %v1512 = vadd.f32 %v1504, %v1511
      %s1513 = scalar_lea.vmem %s6, 80
      %v1514 = vld [vmem:[%s1513] sm:$0xff]
      %v1515 = vrot.slane %v1386, 2
      %s1516 = vtos %v1515
      %v1517 = vstv %s1516
      %v1519 = vmul.f32 %v1517, %v1514
      %v1520 = vadd.f32 %v1512, %v1519
      %s1521 = scalar_lea.vmem %s6, 88
      %v1522 = vld [vmem:[%s1521] sm:$0xff]
      %v1523 = vrot.slane %v1386, 3
      %s1524 = vtos %v1523
      %v1525 = vstv %s1524
      %v1527 = vmul.f32 %v1525, %v1522
      %v1528 = vadd.f32 %v1520, %v1527
      %s1529 = scalar_lea.vmem %s6, 96
      %v1530 = vld [vmem:[%s1529] sm:$0xff]
      %v1531 = vrot.slane %v1386, 4
      %s1532 = vtos %v1531
      %v1533 = vstv %s1532
      %v1535 = vmul.f32 %v1533, %v1530
      %v1536 = vadd.f32 %v1528, %v1535
      %s1537 = scalar_lea.vmem %s6, 104
      %v1538 = vld [vmem:[%s1537] sm:$0xff]
      %v1539 = vrot.slane %v1386, 5
      %s1540 = vtos %v1539
      %v1541 = vstv %s1540
      %v1543 = vmul.f32 %v1541, %v1538
      %v1544 = vadd.f32 %v1536, %v1543
      %s1545 = scalar_lea.vmem %s6, 112
      %v1546 = vld [vmem:[%s1545] sm:$0xff]
      %v1547 = vrot.slane %v1386, 6
      %s1548 = vtos %v1547
      %v1549 = vstv %s1548
      %v1551 = vmul.f32 %v1549, %v1546
      %v1552 = vadd.f32 %v1544, %v1551
      %s1553 = scalar_lea.vmem %s6, 120
      %v1554 = vld [vmem:[%s1553] sm:$0xff]
      %v1555 = vrot.slane %v1386, 7
      %s1556 = vtos %v1555
      %v1557 = vstv %s1556
      %v1559 = vmul.f32 %v1557, %v1554
      %v1560 = vadd.f32 %v1552, %v1559
      %v1562 = vsel %vm1451, %v1560, 0
      %1564 = vmatpush.msra.mxu0 0.0
      %1565 = vmatpush.msra.mxu0 0.0
      %1566 = vmatpush.msra.mxu0 0.0
      %1567 = vmatpush.msra.mxu0 0.0
      %1568 = vmatpush.msra.mxu0 0.0
      %1569 = vmatpush.msra.mxu0 0.0
      %1570 = vmatpush.msra.mxu0 0.0
      %1571 = vmatpush.msra.mxu0 0.0
      %1572 = vmatpush.msra.mxu0 0.0
      %1573 = vmatpush.msra.mxu0 0.0
      %1574 = vmatpush.msra.mxu0 0.0
      %1575 = vmatpush.msra.mxu0 0.0
      %1576 = vmatpush.msra.mxu0 0.0
      %1577 = vmatpush.msra.mxu0 0.0
      %1578 = vmatpush.msra.mxu0 0.0
      %1579 = vmatpush.msra.mxu0 %v1243
      %1580 = vmatmul.f32.gmra.mxu0 %v1562
      %v1581 = vpop.f32.mrf.mxu0
      %v1582 = vadd.f32 0.0, %v1581
      %1583 = vdwg.mxu0
      %1584 = vmatpush.msra.mxu0 0.0
      %1585 = vmatpush.msra.mxu0 0.0
      %1586 = vmatpush.msra.mxu0 0.0
      %1587 = vmatpush.msra.mxu0 0.0
      %1588 = vmatpush.msra.mxu0 0.0
      %1589 = vmatpush.msra.mxu0 0.0
      %1590 = vmatpush.msra.mxu0 0.0
      %1591 = vmatpush.msra.mxu0 0.0
      %1592 = vmatpush.msra.mxu0 0.0
      %1593 = vmatpush.msra.mxu0 0.0
      %1594 = vmatpush.msra.mxu0 0.0
      %1595 = vmatpush.msra.mxu0 0.0
      %1596 = vmatpush.msra.mxu0 0.0
      %1597 = vmatpush.msra.mxu0 0.0
      %1598 = vmatpush.msra.mxu0 0.0
      %1599 = vmatpush.msra.mxu0 %v1244
      %1600 = vmatmul.f32.gmra.mxu0 %v1562
      %v1601 = vpop.f32.mrf.mxu0
      %v1602 = vadd.f32 0.0, %v1601
      %1603 = vdwg.mxu0
      %v1604 = vsub.f32 %v1582, %v1473
      %v1605 = vsub.f32 %v1602, %v1493
      %v1607 = vperm.slane %v1242, 0
      %v1608 = vperm.slane %v1242, 1
      %v1611 = vmul.f32 %v1607, %v1604
      %v1612 = vmul.f32 %v1608, %v1605
      %v1613 = vadd.f32 %v1473, %v1611
      %v1614 = vadd.f32 %v1493, %v1612
      %v1615 = vadd.f32 %v1613, %v1614
      %1616 = vadd.xlane.f32.xlu0 %v1615
      %v1617 = vpop.xlane.xlu0 %1616
      %v1618 = vmul.f32 %v1613, %v1613
      %v1619 = vmul.f32 %v1614, %v1614
      %v1620 = vadd.f32 %v1618, %v1619
      %1621 = vadd.xlane.f32.xlu0 %v1620
      %v1622 = vpop.xlane.xlu0 %1621
      %v1623 = vld [vmem:[%s10] sm:$0xff]
      %v1624 = vperm.slane %v1617, 0
      %v1625 = vmul.f32 %v1623, %v1624
      %v1626 = vadd.f32 %v1625, 0.0
      %v1627 = vperm.slane %v1622, 0
      %v1628 = vmul.f32 %v1623, %v1627
      %v1629 = vadd.f32 %v1628, 0.0
      %v1630 = vperm.slane %v1617, 1
      %v1631 = vmul.f32 %v1623, %v1630
      %1633 = vrot.lane.b32.xlu0 %v1631, 127
      %v1634 = vpop.permute.xlu0 %1633
      %v1636 = vadd.f32 %v1626, %v1634
      %v1637 = vperm.slane %v1622, 1
      %v1638 = vmul.f32 %v1623, %v1637
      %1640 = vrot.lane.b32.xlu0 %v1638, 127
      %v1641 = vpop.permute.xlu0 %1640
      %v1643 = vadd.f32 %v1629, %v1641
      %v1644 = vperm.slane %v1617, 2
      %v1645 = vmul.f32 %v1623, %v1644
      %1647 = vrot.lane.b32.xlu0 %v1645, 126
      %v1648 = vpop.permute.xlu0 %1647
      %v1650 = vadd.f32 %v1636, %v1648
      %v1651 = vperm.slane %v1622, 2
      %v1652 = vmul.f32 %v1623, %v1651
      %1654 = vrot.lane.b32.xlu0 %v1652, 126
      %v1655 = vpop.permute.xlu0 %1654
      %v1657 = vadd.f32 %v1643, %v1655
      %v1658 = vperm.slane %v1617, 3
      %v1659 = vmul.f32 %v1623, %v1658
      %1661 = vrot.lane.b32.xlu0 %v1659, 125
      %v1662 = vpop.permute.xlu0 %1661
      %v1664 = vadd.f32 %v1650, %v1662
      %v1665 = vperm.slane %v1622, 3
      %v1666 = vmul.f32 %v1623, %v1665
      %1668 = vrot.lane.b32.xlu0 %v1666, 125
      %v1669 = vpop.permute.xlu0 %1668
      %v1671 = vadd.f32 %v1657, %v1669
      %v1672 = vperm.slane %v1617, 4
      %v1673 = vmul.f32 %v1623, %v1672
      %1675 = vrot.lane.b32.xlu0 %v1673, 124
      %v1676 = vpop.permute.xlu0 %1675
      %v1678 = vadd.f32 %v1664, %v1676
      %v1679 = vperm.slane %v1622, 4
      %v1680 = vmul.f32 %v1623, %v1679
      %1682 = vrot.lane.b32.xlu0 %v1680, 124
      %v1683 = vpop.permute.xlu0 %1682
      %v1685 = vadd.f32 %v1671, %v1683
      %v1686 = vperm.slane %v1617, 5
      %v1687 = vmul.f32 %v1623, %v1686
      %1689 = vrot.lane.b32.xlu0 %v1687, 123
      %v1690 = vpop.permute.xlu0 %1689
      %v1692 = vadd.f32 %v1678, %v1690
      %v1693 = vperm.slane %v1622, 5
      %v1694 = vmul.f32 %v1623, %v1693
      %1696 = vrot.lane.b32.xlu0 %v1694, 123
      %v1697 = vpop.permute.xlu0 %1696
      %v1699 = vadd.f32 %v1685, %v1697
      %v1700 = vperm.slane %v1617, 6
      %v1701 = vmul.f32 %v1623, %v1700
      %1703 = vrot.lane.b32.xlu0 %v1701, 122
      %v1704 = vpop.permute.xlu0 %1703
      %v1706 = vadd.f32 %v1692, %v1704
      %v1707 = vperm.slane %v1622, 6
      %v1708 = vmul.f32 %v1623, %v1707
      %1710 = vrot.lane.b32.xlu0 %v1708, 122
      %v1711 = vpop.permute.xlu0 %1710
      %v1713 = vadd.f32 %v1699, %v1711
      %v1714 = vperm.slane %v1617, 7
      %v1715 = vmul.f32 %v1623, %v1714
      %1717 = vrot.lane.b32.xlu0 %v1715, 121
      %v1718 = vpop.permute.xlu0 %1717
      %v1720 = vadd.f32 %v1706, %v1718
      %v1721 = vperm.slane %v1622, 7
      %v1722 = vmul.f32 %v1623, %v1721
      %1724 = vrot.lane.b32.xlu0 %v1722, 121
      %v1725 = vpop.permute.xlu0 %1724
      %v1727 = vadd.f32 %v1713, %v1725
      %v1728 = vmul.f32 %v1720, 0.00390625
      %v1729 = vmul.f32 %v1727, 0.00390625
      %v1730 = vmul.f32 %v1728, %v1728
      %v1731 = vsub.f32 %v1729, %v1730
      %v1732 = vmax.f32 %v1731, 0.0
      %v1733 = vadd.f32 %v1732, 1e-05
      %v1734 = vrsqrt.pop %v1733
      %v1735 = vmul.f32 %v1734, %v1733
      %v1736 = vmul.f32 %v1735, %v1734
      %v1737 = vmul.f32 0.5, %v1736
      %v1738 = vsub.f32 1.5, %v1737
      %v1739 = vmul.f32 %v1734, %v1738
      %vm1740 = vweird.f32 %v1733
      %vm1741 = vweird.f32 %v1734
      %vm1742 = vmor %vm1740, %vm1741
      %v1743 = vsel %vm1742, %v1734, %v1739
      %1745 = vset.pattern.permute.xlu0 0
      %1746 = vperm.xlu0 %1745, %v1728
      %v1747 = vpop.permute.xlu0 %1746
      %v1749 = vsub.f32 %v1613, %v1747
      %v1750 = vsub.f32 %v1614, %v1747
      %1752 = vset.pattern.permute.xlu0 0
      %1753 = vperm.xlu0 %1752, %v1743
      %v1754 = vpop.permute.xlu0 %1753
      %v1756 = vmul.f32 %v1749, %v1754
      %v1757 = vmul.f32 %v1750, %v1754
      %v1758 = vld [vmem:[%s8] sm:$0xff]
      %1760 = vset.pattern.permute.xlu0 0
      %1761 = vperm.xlu0 %1760, %v1758
      %v1762 = vpop.permute.xlu0 %1761
      %v1764 = vmul.f32 %v1756, %v1762
      %v1765 = vmul.f32 %v1757, %v1762
      %v1766 = vld [vmem:[%s9] sm:$0xff]
      %1768 = vset.pattern.permute.xlu0 0
      %1769 = vperm.xlu0 %1768, %v1766
      %v1770 = vpop.permute.xlu0 %1769
      %v1772 = vadd.f32 %v1764, %v1770
      %v1773 = vadd.f32 %v1765, %v1770
      %v1774 = vmax.f32 %v1772, 0.0
      %v1775 = vmax.f32 %v1773, 0.0
      %v1776 = vadd.f32 %v1774, %v1775
      %1777 = vadd.xlane.f32.xlu0 %v1776
      %v1778 = vpop.xlane.xlu0 %1777
      %v1779 = vmul.f32 %v1778, 0.00390625
      %v1780 = vld [vmem:[%s11] sm:$0xff]
      %v1781 = vld [vmem:[%s11 + $0x8] sm:$0xff]
      %v1782 = vld [vmem:[%s12] sm:$0xff]
      %v1783 = vld [vmem:[%s12 + $0x8] sm:$0xff]
      %v1784 = vperm.slane %v1779, 0
      %v1785 = vmul.f32 %v1780, %v1784
      %v1786 = vmul.f32 %v1781, %v1784
      %v1787 = vadd.f32 %v1782, %v1785
      %v1788 = vadd.f32 %v1783, %v1786
      %v1789 = vperm.slane %v1779, 1
      %v1790 = vmul.f32 %v1780, %v1789
      %v1791 = vmul.f32 %v1781, %v1789
      %1794 = vrot.lane.b32.xlu0 %v1790, 127
      %v1795 = vpop.permute.xlu0 %1794
      %1796 = vrot.lane.b32.xlu0 %v1791, 127
      %v1797 = vpop.permute.xlu0 %1796
      %v1800 = vadd.f32 %v1787, %v1795
      %v1801 = vadd.f32 %v1788, %v1797
      %v1802 = vperm.slane %v1779, 2
      %v1803 = vmul.f32 %v1780, %v1802
      %v1804 = vmul.f32 %v1781, %v1802
      %1807 = vrot.lane.b32.xlu0 %v1803, 126
      %v1808 = vpop.permute.xlu0 %1807
      %1809 = vrot.lane.b32.xlu0 %v1804, 126
      %v1810 = vpop.permute.xlu0 %1809
      %v1813 = vadd.f32 %v1800, %v1808
      %v1814 = vadd.f32 %v1801, %v1810
      %v1815 = vperm.slane %v1779, 3
      %v1816 = vmul.f32 %v1780, %v1815
      %v1817 = vmul.f32 %v1781, %v1815
      %1820 = vrot.lane.b32.xlu0 %v1816, 125
      %v1821 = vpop.permute.xlu0 %1820
      %1822 = vrot.lane.b32.xlu0 %v1817, 125
      %v1823 = vpop.permute.xlu0 %1822
      %v1826 = vadd.f32 %v1813, %v1821
      %v1827 = vadd.f32 %v1814, %v1823
      %v1828 = vperm.slane %v1779, 4
      %v1829 = vmul.f32 %v1780, %v1828
      %v1830 = vmul.f32 %v1781, %v1828
      %1833 = vrot.lane.b32.xlu0 %v1829, 124
      %v1834 = vpop.permute.xlu0 %1833
      %1835 = vrot.lane.b32.xlu0 %v1830, 124
      %v1836 = vpop.permute.xlu0 %1835
      %v1839 = vadd.f32 %v1826, %v1834
      %v1840 = vadd.f32 %v1827, %v1836
      %v1841 = vperm.slane %v1779, 5
      %v1842 = vmul.f32 %v1780, %v1841
      %v1843 = vmul.f32 %v1781, %v1841
      %1846 = vrot.lane.b32.xlu0 %v1842, 123
      %v1847 = vpop.permute.xlu0 %1846
      %1848 = vrot.lane.b32.xlu0 %v1843, 123
      %v1849 = vpop.permute.xlu0 %1848
      %v1852 = vadd.f32 %v1839, %v1847
      %v1853 = vadd.f32 %v1840, %v1849
      %v1854 = vperm.slane %v1779, 6
      %v1855 = vmul.f32 %v1780, %v1854
      %v1856 = vmul.f32 %v1781, %v1854
      %1859 = vrot.lane.b32.xlu0 %v1855, 122
      %v1860 = vpop.permute.xlu0 %1859
      %1861 = vrot.lane.b32.xlu0 %v1856, 122
      %v1862 = vpop.permute.xlu0 %1861
      %v1865 = vadd.f32 %v1852, %v1860
      %v1866 = vadd.f32 %v1853, %v1862
      %v1867 = vperm.slane %v1779, 7
      %v1868 = vmul.f32 %v1780, %v1867
      %v1869 = vmul.f32 %v1781, %v1867
      %1872 = vrot.lane.b32.xlu0 %v1868, 121
      %v1873 = vpop.permute.xlu0 %1872
      %1874 = vrot.lane.b32.xlu0 %v1869, 121
      %v1875 = vpop.permute.xlu0 %1874
      %v1878 = vadd.f32 %v1865, %v1873
      %v1879 = vadd.f32 %v1866, %v1875
      %v1880 = vsub.f32 0.0, %v1878
      %v1881 = vsub.f32 0.0, %v1879
      %v1882 = vmul.f32 %v1880, 1.442695
      %v1883 = vpow.pop %v1882
      %v1884 = vmul.f32 %v1881, 1.442695
      %v1885 = vpow.pop %v1884
      %v1886 = vadd.f32 %v1883, 1.0
      %v1887 = vadd.f32 %v1885, 1.0
      %v1888 = vrcp.pop %v1886
      %v1889 = vmul.f32 %v1886, %v1888
      %v1890 = vsub.f32 1.0, %v1889
      %v1891 = vmul.f32 %v1888, %v1890
      %v1892 = vadd.f32 %v1888, %v1891
      %vm1893 = vweird.f32 %v1886
      %vm1894 = vweird.f32 %v1888
      %vm1895 = vmor %vm1893, %vm1894
      %v1896 = vsel %vm1895, %v1888, %v1892
      %v1897 = vand.u32 2147483647, %v1886
      %vm1898 = vcmp.eq.f32.partialorder %v1897, 8.507059e+37
      %v1899 = vand.u32 %v1886, 2147483648
      %v1900 = vor.u32 1.1754944e-38, %v1899
      %v1901 = vsel %vm1898, %v1900, %v1896
      %v1902 = vmul.f32 1.0, %v1901
      %v1903 = vrcp.pop %v1887
      %v1904 = vmul.f32 %v1887, %v1903
      %v1905 = vsub.f32 1.0, %v1904
      %v1906 = vmul.f32 %v1903, %v1905
      %v1907 = vadd.f32 %v1903, %v1906
      %vm1908 = vweird.f32 %v1887
      %vm1909 = vweird.f32 %v1903
      %vm1910 = vmor %vm1908, %vm1909
      %v1911 = vsel %vm1910, %v1903, %v1907
      %v1912 = vand.u32 2147483647, %v1887
      %vm1913 = vcmp.eq.f32.partialorder %v1912, 8.507059e+37
      %v1914 = vand.u32 %v1887, 2147483648
      %v1915 = vor.u32 1.1754944e-38, %v1914
      %v1916 = vsel %vm1913, %v1915, %v1911
      %v1917 = vmul.f32 1.0, %v1916
      %v1918 = vld [vmem:[%s14] sm:$0xff]
      %v1919 = vld [vmem:[%s13] sm:$0xff]
      %s1921 = vtos %v1902
      %v1922 = vstv %s1921
      %v1924 = vmul.f32 %v1922, %v1919
      %v1925 = vadd.f32 %v1918, %v1924
      %s1926 = scalar_lea.vmem %s13, 8
      %v1927 = vld [vmem:[%s1926] sm:$0xff]
      %v1928 = vrot.slane %v1902, 1
      %s1929 = vtos %v1928
      %v1930 = vstv %s1929
      %v1932 = vmul.f32 %v1930, %v1927
      %v1933 = vadd.f32 %v1925, %v1932
      %s1934 = scalar_lea.vmem %s13, 16
      %v1935 = vld [vmem:[%s1934] sm:$0xff]
      %v1936 = vrot.slane %v1902, 2
      %s1937 = vtos %v1936
      %v1938 = vstv %s1937
      %v1940 = vmul.f32 %v1938, %v1935
      %v1941 = vadd.f32 %v1933, %v1940
      %s1942 = scalar_lea.vmem %s13, 24
      %v1943 = vld [vmem:[%s1942] sm:$0xff]
      %v1944 = vrot.slane %v1902, 3
      %s1945 = vtos %v1944
      %v1946 = vstv %s1945
      %v1948 = vmul.f32 %v1946, %v1943
      %v1949 = vadd.f32 %v1941, %v1948
      %s1950 = scalar_lea.vmem %s13, 32
      %v1951 = vld [vmem:[%s1950] sm:$0xff]
      %v1952 = vrot.slane %v1902, 4
      %s1953 = vtos %v1952
      %v1954 = vstv %s1953
      %v1956 = vmul.f32 %v1954, %v1951
      %v1957 = vadd.f32 %v1949, %v1956
      %s1958 = scalar_lea.vmem %s13, 40
      %v1959 = vld [vmem:[%s1958] sm:$0xff]
      %v1960 = vrot.slane %v1902, 5
      %s1961 = vtos %v1960
      %v1962 = vstv %s1961
      %v1964 = vmul.f32 %v1962, %v1959
      %v1965 = vadd.f32 %v1957, %v1964
      %s1966 = scalar_lea.vmem %s13, 48
      %v1967 = vld [vmem:[%s1966] sm:$0xff]
      %v1968 = vrot.slane %v1902, 6
      %s1969 = vtos %v1968
      %v1970 = vstv %s1969
      %v1972 = vmul.f32 %v1970, %v1967
      %v1973 = vadd.f32 %v1965, %v1972
      %s1974 = scalar_lea.vmem %s13, 56
      %v1975 = vld [vmem:[%s1974] sm:$0xff]
      %v1976 = vrot.slane %v1902, 7
      %s1977 = vtos %v1976
      %v1978 = vstv %s1977
      %v1980 = vmul.f32 %v1978, %v1975
      %v1981 = vadd.f32 %v1973, %v1980
      %v1983 = vsel %vm1451, %v1981, 0
      %1985 = vmatpush.msra.mxu0 0.0
      %1986 = vmatpush.msra.mxu0 0.0
      %1987 = vmatpush.msra.mxu0 0.0
      %1988 = vmatpush.msra.mxu0 0.0
      %1989 = vmatpush.msra.mxu0 0.0
      %1990 = vmatpush.msra.mxu0 0.0
      %1991 = vmatpush.msra.mxu0 0.0
      %1992 = vmatpush.msra.mxu0 0.0
      %1993 = vmatpush.msra.mxu0 0.0
      %1994 = vmatpush.msra.mxu0 0.0
      %1995 = vmatpush.msra.mxu0 0.0
      %1996 = vmatpush.msra.mxu0 0.0
      %1997 = vmatpush.msra.mxu0 0.0
      %1998 = vmatpush.msra.mxu0 0.0
      %1999 = vmatpush.msra.mxu0 0.0
      %2000 = vmatpush.msra.mxu0 %v1774
      %2001 = vmatmul.f32.gmra.mxu0 %v1983
      %v2002 = vpop.f32.mrf.mxu0
      %v2003 = vadd.f32 0.0, %v2002
      %2004 = vdwg.mxu0
      %2005 = vmatpush.msra.mxu0 0.0
      %2006 = vmatpush.msra.mxu0 0.0
      %2007 = vmatpush.msra.mxu0 0.0
      %2008 = vmatpush.msra.mxu0 0.0
      %2009 = vmatpush.msra.mxu0 0.0
      %2010 = vmatpush.msra.mxu0 0.0
      %2011 = vmatpush.msra.mxu0 0.0
      %2012 = vmatpush.msra.mxu0 0.0
      %2013 = vmatpush.msra.mxu0 0.0
      %2014 = vmatpush.msra.mxu0 0.0
      %2015 = vmatpush.msra.mxu0 0.0
      %2016 = vmatpush.msra.mxu0 0.0
      %2017 = vmatpush.msra.mxu0 0.0
      %2018 = vmatpush.msra.mxu0 0.0
      %2019 = vmatpush.msra.mxu0 0.0
      %2020 = vmatpush.msra.mxu0 %v1775
      %2021 = vmatmul.f32.gmra.mxu0 %v1983
      %v2022 = vpop.f32.mrf.mxu0
      %v2023 = vadd.f32 0.0, %v2022
      %2024 = vdwg.mxu0
      %s2025 = scalar_lea.vmem %s14, 8
      %v2026 = vld [vmem:[%s2025] sm:$0xff]
      %s2027 = scalar_lea.vmem %s13, 64
      %v2028 = vld [vmem:[%s2027] sm:$0xff]
      %s2030 = vtos %v1917
      %v2031 = vstv %s2030
      %v2033 = vmul.f32 %v2031, %v2028
      %v2034 = vadd.f32 %v2026, %v2033
      %s2035 = scalar_lea.vmem %s13, 72
      %v2036 = vld [vmem:[%s2035] sm:$0xff]
      %v2037 = vrot.slane %v1917, 1
      %s2038 = vtos %v2037
      %v2039 = vstv %s2038
      %v2041 = vmul.f32 %v2039, %v2036
      %v2042 = vadd.f32 %v2034, %v2041
      %s2043 = scalar_lea.vmem %s13, 80
      %v2044 = vld [vmem:[%s2043] sm:$0xff]
      %v2045 = vrot.slane %v1917, 2
      %s2046 = vtos %v2045
      %v2047 = vstv %s2046
      %v2049 = vmul.f32 %v2047, %v2044
      %v2050 = vadd.f32 %v2042, %v2049
      %s2051 = scalar_lea.vmem %s13, 88
      %v2052 = vld [vmem:[%s2051] sm:$0xff]
      %v2053 = vrot.slane %v1917, 3
      %s2054 = vtos %v2053
      %v2055 = vstv %s2054
      %v2057 = vmul.f32 %v2055, %v2052
      %v2058 = vadd.f32 %v2050, %v2057
      %s2059 = scalar_lea.vmem %s13, 96
      %v2060 = vld [vmem:[%s2059] sm:$0xff]
      %v2061 = vrot.slane %v1917, 4
      %s2062 = vtos %v2061
      %v2063 = vstv %s2062
      %v2065 = vmul.f32 %v2063, %v2060
      %v2066 = vadd.f32 %v2058, %v2065
      %s2067 = scalar_lea.vmem %s13, 104
      %v2068 = vld [vmem:[%s2067] sm:$0xff]
      %v2069 = vrot.slane %v1917, 5
      %s2070 = vtos %v2069
      %v2071 = vstv %s2070
      %v2073 = vmul.f32 %v2071, %v2068
      %v2074 = vadd.f32 %v2066, %v2073
      %s2075 = scalar_lea.vmem %s13, 112
      %v2076 = vld [vmem:[%s2075] sm:$0xff]
      %v2077 = vrot.slane %v1917, 6
      %s2078 = vtos %v2077
      %v2079 = vstv %s2078
      %v2081 = vmul.f32 %v2079, %v2076
      %v2082 = vadd.f32 %v2074, %v2081
      %s2083 = scalar_lea.vmem %s13, 120
      %v2084 = vld [vmem:[%s2083] sm:$0xff]
      %v2085 = vrot.slane %v1917, 7
      %s2086 = vtos %v2085
      %v2087 = vstv %s2086
      %v2089 = vmul.f32 %v2087, %v2084
      %v2090 = vadd.f32 %v2082, %v2089
      %v2092 = vsel %vm1451, %v2090, 0
      %2094 = vmatpush.msra.mxu0 0.0
      %2095 = vmatpush.msra.mxu0 0.0
      %2096 = vmatpush.msra.mxu0 0.0
      %2097 = vmatpush.msra.mxu0 0.0
      %2098 = vmatpush.msra.mxu0 0.0
      %2099 = vmatpush.msra.mxu0 0.0
      %2100 = vmatpush.msra.mxu0 0.0
      %2101 = vmatpush.msra.mxu0 0.0
      %2102 = vmatpush.msra.mxu0 0.0
      %2103 = vmatpush.msra.mxu0 0.0
      %2104 = vmatpush.msra.mxu0 0.0
      %2105 = vmatpush.msra.mxu0 0.0
      %2106 = vmatpush.msra.mxu0 0.0
      %2107 = vmatpush.msra.mxu0 0.0
      %2108 = vmatpush.msra.mxu0 0.0
      %2109 = vmatpush.msra.mxu0 %v1774
      %2110 = vmatmul.f32.gmra.mxu0 %v2092
      %v2111 = vpop.f32.mrf.mxu0
      %v2112 = vadd.f32 0.0, %v2111
      %2113 = vdwg.mxu0
      %2114 = vmatpush.msra.mxu0 0.0
      %2115 = vmatpush.msra.mxu0 0.0
      %2116 = vmatpush.msra.mxu0 0.0
      %2117 = vmatpush.msra.mxu0 0.0
      %2118 = vmatpush.msra.mxu0 0.0
      %2119 = vmatpush.msra.mxu0 0.0
      %2120 = vmatpush.msra.mxu0 0.0
      %2121 = vmatpush.msra.mxu0 0.0
      %2122 = vmatpush.msra.mxu0 0.0
      %2123 = vmatpush.msra.mxu0 0.0
      %2124 = vmatpush.msra.mxu0 0.0
      %2125 = vmatpush.msra.mxu0 0.0
      %2126 = vmatpush.msra.mxu0 0.0
      %2127 = vmatpush.msra.mxu0 0.0
      %2128 = vmatpush.msra.mxu0 0.0
      %2129 = vmatpush.msra.mxu0 %v1775
      %2130 = vmatmul.f32.gmra.mxu0 %v2092
      %v2131 = vpop.f32.mrf.mxu0
      %v2132 = vadd.f32 0.0, %v2131
      %2133 = vdwg.mxu0
      %v2134 = vsub.f32 %v2112, %v2003
      %v2135 = vsub.f32 %v2132, %v2023
      %v2136 = vmul.f32 %v1607, %v2134
      %v2137 = vmul.f32 %v1608, %v2135
      %v2138 = vadd.f32 %v2003, %v2136
      %v2139 = vadd.f32 %v2023, %v2137
      %v2140 = vadd.f32 %v2138, %v2139
      %2141 = vadd.xlane.f32.xlu0 %v2140
      %v2142 = vpop.xlane.xlu0 %2141
      %v2143 = vmul.f32 %v2138, %v2138
      %v2144 = vmul.f32 %v2139, %v2139
      %v2145 = vadd.f32 %v2143, %v2144
      %2146 = vadd.xlane.f32.xlu0 %v2145
      %v2147 = vpop.xlane.xlu0 %2146
      %v2148 = vld [vmem:[%s17] sm:$0xff]
      %v2149 = vperm.slane %v2142, 0
      %v2150 = vmul.f32 %v2148, %v2149
      %v2151 = vadd.f32 %v2150, 0.0
      %v2152 = vperm.slane %v2147, 0
      %v2153 = vmul.f32 %v2148, %v2152
      %v2154 = vadd.f32 %v2153, 0.0
      %v2155 = vperm.slane %v2142, 1
      %v2156 = vmul.f32 %v2148, %v2155
      %2158 = vrot.lane.b32.xlu0 %v2156, 127
      %v2159 = vpop.permute.xlu0 %2158
      %v2161 = vadd.f32 %v2151, %v2159
      %v2162 = vperm.slane %v2147, 1
      %v2163 = vmul.f32 %v2148, %v2162
      %2165 = vrot.lane.b32.xlu0 %v2163, 127
      %v2166 = vpop.permute.xlu0 %2165
      %v2168 = vadd.f32 %v2154, %v2166
      %v2169 = vperm.slane %v2142, 2
      %v2170 = vmul.f32 %v2148, %v2169
      %2172 = vrot.lane.b32.xlu0 %v2170, 126
      %v2173 = vpop.permute.xlu0 %2172
      %v2175 = vadd.f32 %v2161, %v2173
      %v2176 = vperm.slane %v2147, 2
      %v2177 = vmul.f32 %v2148, %v2176
      %2179 = vrot.lane.b32.xlu0 %v2177, 126
      %v2180 = vpop.permute.xlu0 %2179
      %v2182 = vadd.f32 %v2168, %v2180
      %v2183 = vperm.slane %v2142, 3
      %v2184 = vmul.f32 %v2148, %v2183
      %2186 = vrot.lane.b32.xlu0 %v2184, 125
      %v2187 = vpop.permute.xlu0 %2186
      %v2189 = vadd.f32 %v2175, %v2187
      %v2190 = vperm.slane %v2147, 3
      %v2191 = vmul.f32 %v2148, %v2190
      %2193 = vrot.lane.b32.xlu0 %v2191, 125
      %v2194 = vpop.permute.xlu0 %2193
      %v2196 = vadd.f32 %v2182, %v2194
      %v2197 = vperm.slane %v2142, 4
      %v2198 = vmul.f32 %v2148, %v2197
      %2200 = vrot.lane.b32.xlu0 %v2198, 124
      %v2201 = vpop.permute.xlu0 %2200
      %v2203 = vadd.f32 %v2189, %v2201
      %v2204 = vperm.slane %v2147, 4
      %v2205 = vmul.f32 %v2148, %v2204
      %2207 = vrot.lane.b32.xlu0 %v2205, 124
      %v2208 = vpop.permute.xlu0 %2207
      %v2210 = vadd.f32 %v2196, %v2208
      %v2211 = vperm.slane %v2142, 5
      %v2212 = vmul.f32 %v2148, %v2211
      %2214 = vrot.lane.b32.xlu0 %v2212, 123
      %v2215 = vpop.permute.xlu0 %2214
      %v2217 = vadd.f32 %v2203, %v2215
      %v2218 = vperm.slane %v2147, 5
      %v2219 = vmul.f32 %v2148, %v2218
      %2221 = vrot.lane.b32.xlu0 %v2219, 123
      %v2222 = vpop.permute.xlu0 %2221
      %v2224 = vadd.f32 %v2210, %v2222
      %v2225 = vperm.slane %v2142, 6
      %v2226 = vmul.f32 %v2148, %v2225
      %2228 = vrot.lane.b32.xlu0 %v2226, 122
      %v2229 = vpop.permute.xlu0 %2228
      %v2231 = vadd.f32 %v2217, %v2229
      %v2232 = vperm.slane %v2147, 6
      %v2233 = vmul.f32 %v2148, %v2232
      %2235 = vrot.lane.b32.xlu0 %v2233, 122
      %v2236 = vpop.permute.xlu0 %2235
      %v2238 = vadd.f32 %v2224, %v2236
      %v2239 = vperm.slane %v2142, 7
      %v2240 = vmul.f32 %v2148, %v2239
      %2242 = vrot.lane.b32.xlu0 %v2240, 121
      %v2243 = vpop.permute.xlu0 %2242
      %v2245 = vadd.f32 %v2231, %v2243
      %v2246 = vperm.slane %v2147, 7
      %v2247 = vmul.f32 %v2148, %v2246
      %2249 = vrot.lane.b32.xlu0 %v2247, 121
      %v2250 = vpop.permute.xlu0 %2249
      %v2252 = vadd.f32 %v2238, %v2250
      %v2253 = vmul.f32 %v2245, 0.00390625
      %v2254 = vmul.f32 %v2252, 0.00390625
      %v2255 = vmul.f32 %v2253, %v2253
      %v2256 = vsub.f32 %v2254, %v2255
      %v2257 = vmax.f32 %v2256, 0.0
      %v2258 = vadd.f32 %v2257, 1e-05
      %v2259 = vrsqrt.pop %v2258
      %v2260 = vmul.f32 %v2259, %v2258
      %v2261 = vmul.f32 %v2260, %v2259
      %v2262 = vmul.f32 0.5, %v2261
      %v2263 = vsub.f32 1.5, %v2262
      %v2264 = vmul.f32 %v2259, %v2263
      %vm2265 = vweird.f32 %v2258
      %vm2266 = vweird.f32 %v2259
      %vm2267 = vmor %vm2265, %vm2266
      %v2268 = vsel %vm2267, %v2259, %v2264
      %2270 = vset.pattern.permute.xlu0 0
      %2271 = vperm.xlu0 %2270, %v2253
      %v2272 = vpop.permute.xlu0 %2271
      %v2274 = vsub.f32 %v2138, %v2272
      %v2275 = vsub.f32 %v2139, %v2272
      %2277 = vset.pattern.permute.xlu0 0
      %2278 = vperm.xlu0 %2277, %v2268
      %v2279 = vpop.permute.xlu0 %2278
      %v2281 = vmul.f32 %v2274, %v2279
      %v2282 = vmul.f32 %v2275, %v2279
      %v2283 = vld [vmem:[%s15] sm:$0xff]
      %2285 = vset.pattern.permute.xlu0 0
      %2286 = vperm.xlu0 %2285, %v2283
      %v2287 = vpop.permute.xlu0 %2286
      %v2289 = vmul.f32 %v2281, %v2287
      %v2290 = vmul.f32 %v2282, %v2287
      %v2291 = vld [vmem:[%s16] sm:$0xff]
      %2293 = vset.pattern.permute.xlu0 0
      %2294 = vperm.xlu0 %2293, %v2291
      %v2295 = vpop.permute.xlu0 %2294
      %v2297 = vadd.f32 %v2289, %v2295
      %v2298 = vadd.f32 %v2290, %v2295
      %v2299 = vmax.f32 %v2297, 0.0
      %v2300 = vmax.f32 %v2298, 0.0
      %v2301 = vadd.f32 %v2299, %v2300
      %2302 = vadd.xlane.f32.xlu0 %v2301
      %v2303 = vpop.xlane.xlu0 %2302
      %v2304 = vmul.f32 %v2303, 0.00390625
      %v2305 = vld [vmem:[%s18] sm:$0xff]
      %v2306 = vld [vmem:[%s18 + $0x8] sm:$0xff]
      %v2307 = vld [vmem:[%s19] sm:$0xff]
      %v2308 = vld [vmem:[%s19 + $0x8] sm:$0xff]
      %v2309 = vperm.slane %v2304, 0
      %v2310 = vmul.f32 %v2305, %v2309
      %v2311 = vmul.f32 %v2306, %v2309
      %v2312 = vadd.f32 %v2307, %v2310
      %v2313 = vadd.f32 %v2308, %v2311
      %v2314 = vperm.slane %v2304, 1
      %v2315 = vmul.f32 %v2305, %v2314
      %v2316 = vmul.f32 %v2306, %v2314
      %2319 = vrot.lane.b32.xlu0 %v2315, 127
      %v2320 = vpop.permute.xlu0 %2319
      %2321 = vrot.lane.b32.xlu0 %v2316, 127
      %v2322 = vpop.permute.xlu0 %2321
      %v2325 = vadd.f32 %v2312, %v2320
      %v2326 = vadd.f32 %v2313, %v2322
      %v2327 = vperm.slane %v2304, 2
      %v2328 = vmul.f32 %v2305, %v2327
      %v2329 = vmul.f32 %v2306, %v2327
      %2332 = vrot.lane.b32.xlu0 %v2328, 126
      %v2333 = vpop.permute.xlu0 %2332
      %2334 = vrot.lane.b32.xlu0 %v2329, 126
      %v2335 = vpop.permute.xlu0 %2334
      %v2338 = vadd.f32 %v2325, %v2333
      %v2339 = vadd.f32 %v2326, %v2335
      %v2340 = vperm.slane %v2304, 3
      %v2341 = vmul.f32 %v2305, %v2340
      %v2342 = vmul.f32 %v2306, %v2340
      %2345 = vrot.lane.b32.xlu0 %v2341, 125
      %v2346 = vpop.permute.xlu0 %2345
      %2347 = vrot.lane.b32.xlu0 %v2342, 125
      %v2348 = vpop.permute.xlu0 %2347
      %v2351 = vadd.f32 %v2338, %v2346
      %v2352 = vadd.f32 %v2339, %v2348
      %v2353 = vperm.slane %v2304, 4
      %v2354 = vmul.f32 %v2305, %v2353
      %v2355 = vmul.f32 %v2306, %v2353
      %2358 = vrot.lane.b32.xlu0 %v2354, 124
      %v2359 = vpop.permute.xlu0 %2358
      %2360 = vrot.lane.b32.xlu0 %v2355, 124
      %v2361 = vpop.permute.xlu0 %2360
      %v2364 = vadd.f32 %v2351, %v2359
      %v2365 = vadd.f32 %v2352, %v2361
      %v2366 = vperm.slane %v2304, 5
      %v2367 = vmul.f32 %v2305, %v2366
      %v2368 = vmul.f32 %v2306, %v2366
      %2371 = vrot.lane.b32.xlu0 %v2367, 123
      %v2372 = vpop.permute.xlu0 %2371
      %2373 = vrot.lane.b32.xlu0 %v2368, 123
      %v2374 = vpop.permute.xlu0 %2373
      %v2377 = vadd.f32 %v2364, %v2372
      %v2378 = vadd.f32 %v2365, %v2374
      %v2379 = vperm.slane %v2304, 6
      %v2380 = vmul.f32 %v2305, %v2379
      %v2381 = vmul.f32 %v2306, %v2379
      %2384 = vrot.lane.b32.xlu0 %v2380, 122
      %v2385 = vpop.permute.xlu0 %2384
      %2386 = vrot.lane.b32.xlu0 %v2381, 122
      %v2387 = vpop.permute.xlu0 %2386
      %v2390 = vadd.f32 %v2377, %v2385
      %v2391 = vadd.f32 %v2378, %v2387
      %v2392 = vperm.slane %v2304, 7
      %v2393 = vmul.f32 %v2305, %v2392
      %v2394 = vmul.f32 %v2306, %v2392
      %2397 = vrot.lane.b32.xlu0 %v2393, 121
      %v2398 = vpop.permute.xlu0 %2397
      %2399 = vrot.lane.b32.xlu0 %v2394, 121
      %v2400 = vpop.permute.xlu0 %2399
      %v2403 = vadd.f32 %v2390, %v2398
      %v2404 = vadd.f32 %v2391, %v2400
      %v2405 = vsub.f32 0.0, %v2403
      %v2406 = vsub.f32 0.0, %v2404
      %v2407 = vmul.f32 %v2405, 1.442695
      %v2408 = vpow.pop %v2407
      %v2409 = vmul.f32 %v2406, 1.442695
      %v2410 = vpow.pop %v2409
      %v2411 = vadd.f32 %v2408, 1.0
      %v2412 = vadd.f32 %v2410, 1.0
      %v2413 = vrcp.pop %v2411
      %v2414 = vmul.f32 %v2411, %v2413
      %v2415 = vsub.f32 1.0, %v2414
      %v2416 = vmul.f32 %v2413, %v2415
      %v2417 = vadd.f32 %v2413, %v2416
      %vm2418 = vweird.f32 %v2411
      %vm2419 = vweird.f32 %v2413
      %vm2420 = vmor %vm2418, %vm2419
      %v2421 = vsel %vm2420, %v2413, %v2417
      %v2422 = vand.u32 2147483647, %v2411
      %vm2423 = vcmp.eq.f32.partialorder %v2422, 8.507059e+37
      %v2424 = vand.u32 %v2411, 2147483648
      %v2425 = vor.u32 1.1754944e-38, %v2424
      %v2426 = vsel %vm2423, %v2425, %v2421
      %v2427 = vmul.f32 1.0, %v2426
      %v2428 = vrcp.pop %v2412
      %v2429 = vmul.f32 %v2412, %v2428
      %v2430 = vsub.f32 1.0, %v2429
      %v2431 = vmul.f32 %v2428, %v2430
      %v2432 = vadd.f32 %v2428, %v2431
      %vm2433 = vweird.f32 %v2412
      %vm2434 = vweird.f32 %v2428
      %vm2435 = vmor %vm2433, %vm2434
      %v2436 = vsel %vm2435, %v2428, %v2432
      %v2437 = vand.u32 2147483647, %v2412
      %vm2438 = vcmp.eq.f32.partialorder %v2437, 8.507059e+37
      %v2439 = vand.u32 %v2412, 2147483648
      %v2440 = vor.u32 1.1754944e-38, %v2439
      %v2441 = vsel %vm2438, %v2440, %v2436
      %v2442 = vmul.f32 1.0, %v2441
      %v2443 = vld [vmem:[%s21] sm:$0xff]
      %v2444 = vld [vmem:[%s20] sm:$0xff]
      %s2446 = vtos %v2427
      %v2447 = vstv %s2446
      %v2449 = vmul.f32 %v2447, %v2444
      %v2450 = vadd.f32 %v2443, %v2449
      %s2451 = scalar_lea.vmem %s20, 8
      %v2452 = vld [vmem:[%s2451] sm:$0xff]
      %v2453 = vrot.slane %v2427, 1
      %s2454 = vtos %v2453
      %v2455 = vstv %s2454
      %v2457 = vmul.f32 %v2455, %v2452
      %v2458 = vadd.f32 %v2450, %v2457
      %s2459 = scalar_lea.vmem %s20, 16
      %v2460 = vld [vmem:[%s2459] sm:$0xff]
      %v2461 = vrot.slane %v2427, 2
      %s2462 = vtos %v2461
      %v2463 = vstv %s2462
      %v2465 = vmul.f32 %v2463, %v2460
      %v2466 = vadd.f32 %v2458, %v2465
      %s2467 = scalar_lea.vmem %s20, 24
      %v2468 = vld [vmem:[%s2467] sm:$0xff]
      %v2469 = vrot.slane %v2427, 3
      %s2470 = vtos %v2469
      %v2471 = vstv %s2470
      %v2473 = vmul.f32 %v2471, %v2468
      %v2474 = vadd.f32 %v2466, %v2473
      %s2475 = scalar_lea.vmem %s20, 32
      %v2476 = vld [vmem:[%s2475] sm:$0xff]
      %v2477 = vrot.slane %v2427, 4
      %s2478 = vtos %v2477
      %v2479 = vstv %s2478
      %v2481 = vmul.f32 %v2479, %v2476
      %v2482 = vadd.f32 %v2474, %v2481
      %s2483 = scalar_lea.vmem %s20, 40
      %v2484 = vld [vmem:[%s2483] sm:$0xff]
      %v2485 = vrot.slane %v2427, 5
      %s2486 = vtos %v2485
      %v2487 = vstv %s2486
      %v2489 = vmul.f32 %v2487, %v2484
      %v2490 = vadd.f32 %v2482, %v2489
      %s2491 = scalar_lea.vmem %s20, 48
      %v2492 = vld [vmem:[%s2491] sm:$0xff]
      %v2493 = vrot.slane %v2427, 6
      %s2494 = vtos %v2493
      %v2495 = vstv %s2494
      %v2497 = vmul.f32 %v2495, %v2492
      %v2498 = vadd.f32 %v2490, %v2497
      %s2499 = scalar_lea.vmem %s20, 56
      %v2500 = vld [vmem:[%s2499] sm:$0xff]
      %v2501 = vrot.slane %v2427, 7
      %s2502 = vtos %v2501
      %v2503 = vstv %s2502
      %v2505 = vmul.f32 %v2503, %v2500
      %v2506 = vadd.f32 %v2498, %v2505
      %v2508 = vsel %vm1451, %v2506, 0
      %2510 = vmatpush.msra.mxu0 0.0
      %2511 = vmatpush.msra.mxu0 0.0
      %2512 = vmatpush.msra.mxu0 0.0
      %2513 = vmatpush.msra.mxu0 0.0
      %2514 = vmatpush.msra.mxu0 0.0
      %2515 = vmatpush.msra.mxu0 0.0
      %2516 = vmatpush.msra.mxu0 0.0
      %2517 = vmatpush.msra.mxu0 0.0
      %2518 = vmatpush.msra.mxu0 0.0
      %2519 = vmatpush.msra.mxu0 0.0
      %2520 = vmatpush.msra.mxu0 0.0
      %2521 = vmatpush.msra.mxu0 0.0
      %2522 = vmatpush.msra.mxu0 0.0
      %2523 = vmatpush.msra.mxu0 0.0
      %2524 = vmatpush.msra.mxu0 0.0
      %2525 = vmatpush.msra.mxu0 %v2299
      %2526 = vmatmul.f32.gmra.mxu0 %v2508
      %v2527 = vpop.f32.mrf.mxu0
      %v2528 = vadd.f32 0.0, %v2527
      %2529 = vdwg.mxu0
      %2530 = vmatpush.msra.mxu0 0.0
      %2531 = vmatpush.msra.mxu0 0.0
      %2532 = vmatpush.msra.mxu0 0.0
      %2533 = vmatpush.msra.mxu0 0.0
      %2534 = vmatpush.msra.mxu0 0.0
      %2535 = vmatpush.msra.mxu0 0.0
      %2536 = vmatpush.msra.mxu0 0.0
      %2537 = vmatpush.msra.mxu0 0.0
      %2538 = vmatpush.msra.mxu0 0.0
      %2539 = vmatpush.msra.mxu0 0.0
      %2540 = vmatpush.msra.mxu0 0.0
      %2541 = vmatpush.msra.mxu0 0.0
      %2542 = vmatpush.msra.mxu0 0.0
      %2543 = vmatpush.msra.mxu0 0.0
      %2544 = vmatpush.msra.mxu0 0.0
      %2545 = vmatpush.msra.mxu0 %v2300
      %2546 = vmatmul.f32.gmra.mxu0 %v2508
      %v2547 = vpop.f32.mrf.mxu0
      %v2548 = vadd.f32 0.0, %v2547
      %2549 = vdwg.mxu0
      %s2550 = scalar_lea.vmem %s21, 8
      %v2551 = vld [vmem:[%s2550] sm:$0xff]
      %s2552 = scalar_lea.vmem %s20, 64
      %v2553 = vld [vmem:[%s2552] sm:$0xff]
      %s2555 = vtos %v2442
      %v2556 = vstv %s2555
      %v2558 = vmul.f32 %v2556, %v2553
      %v2559 = vadd.f32 %v2551, %v2558
      %s2560 = scalar_lea.vmem %s20, 72
      %v2561 = vld [vmem:[%s2560] sm:$0xff]
      %v2562 = vrot.slane %v2442, 1
      %s2563 = vtos %v2562
      %v2564 = vstv %s2563
      %v2566 = vmul.f32 %v2564, %v2561
      %v2567 = vadd.f32 %v2559, %v2566
      %s2568 = scalar_lea.vmem %s20, 80
      %v2569 = vld [vmem:[%s2568] sm:$0xff]
      %v2570 = vrot.slane %v2442, 2
      %s2571 = vtos %v2570
      %v2572 = vstv %s2571
      %v2574 = vmul.f32 %v2572, %v2569
      %v2575 = vadd.f32 %v2567, %v2574
      %s2576 = scalar_lea.vmem %s20, 88
      %v2577 = vld [vmem:[%s2576] sm:$0xff]
      %v2578 = vrot.slane %v2442, 3
      %s2579 = vtos %v2578
      %v2580 = vstv %s2579
      %v2582 = vmul.f32 %v2580, %v2577
      %v2583 = vadd.f32 %v2575, %v2582
      %s2584 = scalar_lea.vmem %s20, 96
      %v2585 = vld [vmem:[%s2584] sm:$0xff]
      %v2586 = vrot.slane %v2442, 4
      %s2587 = vtos %v2586
      %v2588 = vstv %s2587
      %v2590 = vmul.f32 %v2588, %v2585
      %v2591 = vadd.f32 %v2583, %v2590
      %s2592 = scalar_lea.vmem %s20, 104
      %v2593 = vld [vmem:[%s2592] sm:$0xff]
      %v2594 = vrot.slane %v2442, 5
      %s2595 = vtos %v2594
      %v2596 = vstv %s2595
      %v2598 = vmul.f32 %v2596, %v2593
      %v2599 = vadd.f32 %v2591, %v2598
      %s2600 = scalar_lea.vmem %s20, 112
      %v2601 = vld [vmem:[%s2600] sm:$0xff]
      %v2602 = vrot.slane %v2442, 6
      %s2603 = vtos %v2602
      %v2604 = vstv %s2603
      %v2606 = vmul.f32 %v2604, %v2601
      %v2607 = vadd.f32 %v2599, %v2606
      %s2608 = scalar_lea.vmem %s20, 120
      %v2609 = vld [vmem:[%s2608] sm:$0xff]
      %v2610 = vrot.slane %v2442, 7
      %s2611 = vtos %v2610
      %v2612 = vstv %s2611
      %v2614 = vmul.f32 %v2612, %v2609
      %v2615 = vadd.f32 %v2607, %v2614
      %v2617 = vsel %vm1451, %v2615, 0
      %2619 = vmatpush.msra.mxu0 0.0
      %2620 = vmatpush.msra.mxu0 0.0
      %2621 = vmatpush.msra.mxu0 0.0
      %2622 = vmatpush.msra.mxu0 0.0
      %2623 = vmatpush.msra.mxu0 0.0
      %2624 = vmatpush.msra.mxu0 0.0
      %2625 = vmatpush.msra.mxu0 0.0
      %2626 = vmatpush.msra.mxu0 0.0
      %2627 = vmatpush.msra.mxu0 0.0
      %2628 = vmatpush.msra.mxu0 0.0
      %2629 = vmatpush.msra.mxu0 0.0
      %2630 = vmatpush.msra.mxu0 0.0
      %2631 = vmatpush.msra.mxu0 0.0
      %2632 = vmatpush.msra.mxu0 0.0
      %2633 = vmatpush.msra.mxu0 0.0
      %2634 = vmatpush.msra.mxu0 %v2299
      %2635 = vmatmul.f32.gmra.mxu0 %v2617
      %v2636 = vpop.f32.mrf.mxu0
      %v2637 = vadd.f32 0.0, %v2636
      %2638 = vdwg.mxu0
      %2639 = vmatpush.msra.mxu0 0.0
      %2640 = vmatpush.msra.mxu0 0.0
      %2641 = vmatpush.msra.mxu0 0.0
      %2642 = vmatpush.msra.mxu0 0.0
      %2643 = vmatpush.msra.mxu0 0.0
      %2644 = vmatpush.msra.mxu0 0.0
      %2645 = vmatpush.msra.mxu0 0.0
      %2646 = vmatpush.msra.mxu0 0.0
      %2647 = vmatpush.msra.mxu0 0.0
      %2648 = vmatpush.msra.mxu0 0.0
      %2649 = vmatpush.msra.mxu0 0.0
      %2650 = vmatpush.msra.mxu0 0.0
      %2651 = vmatpush.msra.mxu0 0.0
      %2652 = vmatpush.msra.mxu0 0.0
      %2653 = vmatpush.msra.mxu0 0.0
      %2654 = vmatpush.msra.mxu0 %v2300
      %2655 = vmatmul.f32.gmra.mxu0 %v2617
      %v2656 = vpop.f32.mrf.mxu0
      %v2657 = vadd.f32 0.0, %v2656
      %2658 = vdwg.mxu0
      %v2659 = vsub.f32 %v2637, %v2528
      %v2660 = vsub.f32 %v2657, %v2548
      %v2661 = vmul.f32 %v1607, %v2659
      %v2662 = vmul.f32 %v1608, %v2660
      %v2663 = vadd.f32 %v2528, %v2661
      %v2664 = vadd.f32 %v2548, %v2662
      %v2665 = vadd.f32 %v2663, %v2664
      %2666 = vadd.xlane.f32.xlu0 %v2665
      %v2667 = vpop.xlane.xlu0 %2666
      %v2668 = vmul.f32 %v2663, %v2663
      %v2669 = vmul.f32 %v2664, %v2664
      %v2670 = vadd.f32 %v2668, %v2669
      %2671 = vadd.xlane.f32.xlu0 %v2670
      %v2672 = vpop.xlane.xlu0 %2671
      %v2673 = vld [vmem:[%s24] sm:$0xff]
      %v2674 = vperm.slane %v2667, 0
      %v2675 = vmul.f32 %v2673, %v2674
      %v2676 = vadd.f32 %v2675, 0.0
      %v2677 = vperm.slane %v2672, 0
      %v2678 = vmul.f32 %v2673, %v2677
      %v2679 = vadd.f32 %v2678, 0.0
      %v2680 = vperm.slane %v2667, 1
      %v2681 = vmul.f32 %v2673, %v2680
      %2683 = vrot.lane.b32.xlu0 %v2681, 127
      %v2684 = vpop.permute.xlu0 %2683
      %v2686 = vadd.f32 %v2676, %v2684
      %v2687 = vperm.slane %v2672, 1
      %v2688 = vmul.f32 %v2673, %v2687
      %2690 = vrot.lane.b32.xlu0 %v2688, 127
      %v2691 = vpop.permute.xlu0 %2690
      %v2693 = vadd.f32 %v2679, %v2691
      %v2694 = vperm.slane %v2667, 2
      %v2695 = vmul.f32 %v2673, %v2694
      %2697 = vrot.lane.b32.xlu0 %v2695, 126
      %v2698 = vpop.permute.xlu0 %2697
      %v2700 = vadd.f32 %v2686, %v2698
      %v2701 = vperm.slane %v2672, 2
      %v2702 = vmul.f32 %v2673, %v2701
      %2704 = vrot.lane.b32.xlu0 %v2702, 126
      %v2705 = vpop.permute.xlu0 %2704
      %v2707 = vadd.f32 %v2693, %v2705
      %v2708 = vperm.slane %v2667, 3
      %v2709 = vmul.f32 %v2673, %v2708
      %2711 = vrot.lane.b32.xlu0 %v2709, 125
      %v2712 = vpop.permute.xlu0 %2711
      %v2714 = vadd.f32 %v2700, %v2712
      %v2715 = vperm.slane %v2672, 3
      %v2716 = vmul.f32 %v2673, %v2715
      %2718 = vrot.lane.b32.xlu0 %v2716, 125
      %v2719 = vpop.permute.xlu0 %2718
      %v2721 = vadd.f32 %v2707, %v2719
      %v2722 = vperm.slane %v2667, 4
      %v2723 = vmul.f32 %v2673, %v2722
      %2725 = vrot.lane.b32.xlu0 %v2723, 124
      %v2726 = vpop.permute.xlu0 %2725
      %v2728 = vadd.f32 %v2714, %v2726
      %v2729 = vperm.slane %v2672, 4
      %v2730 = vmul.f32 %v2673, %v2729
      %2732 = vrot.lane.b32.xlu0 %v2730, 124
      %v2733 = vpop.permute.xlu0 %2732
      %v2735 = vadd.f32 %v2721, %v2733
      %v2736 = vperm.slane %v2667, 5
      %v2737 = vmul.f32 %v2673, %v2736
      %2739 = vrot.lane.b32.xlu0 %v2737, 123
      %v2740 = vpop.permute.xlu0 %2739
      %v2742 = vadd.f32 %v2728, %v2740
      %v2743 = vperm.slane %v2672, 5
      %v2744 = vmul.f32 %v2673, %v2743
      %2746 = vrot.lane.b32.xlu0 %v2744, 123
      %v2747 = vpop.permute.xlu0 %2746
      %v2749 = vadd.f32 %v2735, %v2747
      %v2750 = vperm.slane %v2667, 6
      %v2751 = vmul.f32 %v2673, %v2750
      %2753 = vrot.lane.b32.xlu0 %v2751, 122
      %v2754 = vpop.permute.xlu0 %2753
      %v2756 = vadd.f32 %v2742, %v2754
      %v2757 = vperm.slane %v2672, 6
      %v2758 = vmul.f32 %v2673, %v2757
      %2760 = vrot.lane.b32.xlu0 %v2758, 122
      %v2761 = vpop.permute.xlu0 %2760
      %v2763 = vadd.f32 %v2749, %v2761
      %v2764 = vperm.slane %v2667, 7
      %v2765 = vmul.f32 %v2673, %v2764
      %2767 = vrot.lane.b32.xlu0 %v2765, 121
      %v2768 = vpop.permute.xlu0 %2767
      %v2770 = vadd.f32 %v2756, %v2768
      %v2771 = vperm.slane %v2672, 7
      %v2772 = vmul.f32 %v2673, %v2771
      %2774 = vrot.lane.b32.xlu0 %v2772, 121
      %v2775 = vpop.permute.xlu0 %2774
      %v2777 = vadd.f32 %v2763, %v2775
      %v2778 = vmul.f32 %v2770, 0.00390625
      %v2779 = vmul.f32 %v2777, 0.00390625
      %v2780 = vmul.f32 %v2778, %v2778
      %v2781 = vsub.f32 %v2779, %v2780
      %v2782 = vmax.f32 %v2781, 0.0
      %v2783 = vadd.f32 %v2782, 1e-05
      %v2784 = vrsqrt.pop %v2783
      %v2785 = vmul.f32 %v2784, %v2783
      %v2786 = vmul.f32 %v2785, %v2784
      %v2787 = vmul.f32 0.5, %v2786
      %v2788 = vsub.f32 1.5, %v2787
      %v2789 = vmul.f32 %v2784, %v2788
      %vm2790 = vweird.f32 %v2783
      %vm2791 = vweird.f32 %v2784
      %vm2792 = vmor %vm2790, %vm2791
      %v2793 = vsel %vm2792, %v2784, %v2789
      %2795 = vset.pattern.permute.xlu0 0
      %2796 = vperm.xlu0 %2795, %v2778
      %v2797 = vpop.permute.xlu0 %2796
      %v2799 = vsub.f32 %v2663, %v2797
      %v2800 = vsub.f32 %v2664, %v2797
      %2802 = vset.pattern.permute.xlu0 0
      %2803 = vperm.xlu0 %2802, %v2793
      %v2804 = vpop.permute.xlu0 %2803
      %v2806 = vmul.f32 %v2799, %v2804
      %v2807 = vmul.f32 %v2800, %v2804
      %v2808 = vld [vmem:[%s22] sm:$0xff]
      %2810 = vset.pattern.permute.xlu0 0
      %2811 = vperm.xlu0 %2810, %v2808
      %v2812 = vpop.permute.xlu0 %2811
      %v2814 = vmul.f32 %v2806, %v2812
      %v2815 = vmul.f32 %v2807, %v2812
      %v2816 = vld [vmem:[%s23] sm:$0xff]
      %2818 = vset.pattern.permute.xlu0 0
      %2819 = vperm.xlu0 %2818, %v2816
      %v2820 = vpop.permute.xlu0 %2819
      %v2822 = vadd.f32 %v2814, %v2820
      %v2823 = vadd.f32 %v2815, %v2820
      %v2824 = vmax.f32 %v2822, 0.0
      %v2825 = vmax.f32 %v2823, 0.0
      %2826 = vst [vmem:[%s781] sm:$0xff] %v2824
      %2827 = vst [vmem:[%s781 + $0x8] sm:$0xff] %v2825
      %p2828 = scmp.lt.s32.totalorder %s36, 1
      %s2829 = scalar_select %p2828, %s36, 1
      %s2830 = smul.addr %s2829, 2
      %s2831 = smul.addr %s2830, 8
      %s2832 = scalar_lea.vmem %s25, %s2831
      // Predicated region
      $region121: #{sconv_nr3_gn_forward.1} parent=119 // pred_check
        %p2833 = pneg %p589
      $region122: #{sconv_nr3_gn_forward.1} parent=119 // pred_check_branch
        %2835 = sbr.rel (%p2833) target = $region124
      $region123: #{sconv_nr3_gn_forward.1} parent=119 // pred_region
        _
      $region124: #{sconv_nr3_gn_forward.1} parent=119 // pred_fallthru
        _
    $region120: #{sconv_nr3_gn_forward.1} parent=5 // pred_fallthru
      _
    %p2836 = scmp.le.s32.totalorder 2, %s31
    // Predicated region
    $region125: #{sconv_nr3_gn_forward.1} parent=5 // pred_check
      %p2837 = pneg %p2836
    $region126: #{sconv_nr3_gn_forward.1} parent=5 // pred_check_branch
      %2839 = sbr.rel (%p2837) target = $region128
    $region127: #{sconv_nr3_gn_forward.1} parent=5 // pred_region
      %s2840 = ssub.s32 %s31, 2
      // Predicated region
      $region129: #{sconv_nr3_gn_forward.1} parent=127 // pred_check
        %p2841 = pneg %p595
      $region130: #{sconv_nr3_gn_forward.1} parent=127 // pred_check_branch
        %2843 = sbr.rel (%p2841) target = $region132
      $region131: #{sconv_nr3_gn_forward.1} parent=127 // pred_region
        %p2844 = scmp.lt.s32.totalorder %s37, 1
        %s2845 = scalar_select %p2844, %s37, 1
        %s2846 = smul.addr %s2845, 2
        %s2847 = smul.addr %s2846, 8
        %s2848 = scalar_lea.vmem %s25, %s2847
      $region132: #{sconv_nr3_gn_forward.1} parent=127 // pred_fallthru
        _
    $region128: #{sconv_nr3_gn_forward.1} parent=5 // pred_fallthru
      _
  $region6: #{sconv_nr3_gn_forward.1} parent=0 // loop_footer
    %s35 = sadd.s32 1, %s31
  $region7: #{sconv_nr3_gn_forward.1} parent=0 // loop_footer_branch
    %30 = sbr.rel target = $region3
  $region8: #{sconv_nr3_gn_forward.1} parent=0 // loop_exit
    _

</llo_original>
